<compile_context>
chip_gen: v7x
topology: tpu7x:2x2x1
jax: 0.10.0
libtpu: 0.0.40
codegen_flags: <defaults>
</compile_context>

<pallas_src>
import functools

import jax
import jax.numpy as jnp
import numpy as np
from jax import lax
from jax.experimental import pallas as pl
from jax.experimental.pallas import tpu as pltpu

_LANE = 128


def _round_up(n, m):
    return ((n + m - 1) // m) * m


def _vmem_spec(shape):
    nd = len(shape)
    return pl.BlockSpec(shape, lambda *_: (0,) * nd)


# ----------------------------------------------------------------------------
# Fused kernel: all GRU layers + Linear(H->5) + softmax, single invocation.
# PyTorch GRU gate order (r, z, n):
#   r = sigmoid(x W_ir^T + b_ir + h W_hr^T + b_hr)
#   z = sigmoid(x W_iz^T + b_iz + h W_hz^T + b_hz)
#   n = tanh  (x W_in^T + b_in + r * (h W_hn^T + b_hn))
#   h' = (1 - z) * n + z * h
# Biases are pre-folded in the wrapper:
#   bx = b_ih + [b_hr, b_hz, 0]   (added to the hoisted input projection)
#   bh = [0, 0, b_hn]             (added to the per-step hidden projection)
# ----------------------------------------------------------------------------
def _build_fused_kernel(T, B, H, L, mm_dtype):
    def kernel(*refs):
        # refs = x, (wih, whh, bx, bh) * L, h0, wcls, bcls, probs_out, hn_out,
        #        gx_scratch, y_scratch
        x_ref = refs[0]
        layer_refs = [refs[1 + 4 * l: 5 + 4 * l] for l in range(L)]
        h0_ref, wcls_ref, bcls_ref = refs[1 + 4 * L: 4 + 4 * L]
        probs_ref, hn_ref = refs[4 + 4 * L: 6 + 4 * L]
        gx_s, y_s = refs[6 + 4 * L: 8 + 4 * L]

        def mm(a, w):
            return jnp.dot(a.astype(mm_dtype), w,
                           preferred_element_type=jnp.float32)

        def run_layer(l, layer_in):
            wih_ref, whh_ref, bx_ref, bh_ref = layer_refs[l]
            # Hoisted input projection: no recurrence dependence, so one
            # (T*B, in) x (in, GP) matmul for the whole sequence.
            gx_s[...] = mm(layer_in, wih_ref[...]) + bx_ref[...]
            whh = whh_ref[...]                                 # (H, GP)
            bh = bh_ref[...]                                   # (1, GP)

            def step(t, h_prev):
                off = pl.multiple_of(t * B, B)
                gx = gx_s[pl.ds(off, B), :]                    # (B, GP)
                gh = mm(h_prev, whh) + bh                      # (B, GP)
                r = jax.nn.sigmoid(gx[:, 0:H] + gh[:, 0:H])
                z = jax.nn.sigmoid(gx[:, H:2 * H] + gh[:, H:2 * H])
                n = jnp.tanh(gx[:, 2 * H:3 * H] + r * gh[:, 2 * H:3 * H])
                h_new = (1.0 - z) * n + z * h_prev
                y_s[pl.ds(off, B), :] = h_new
                return h_new

            h_last = lax.fori_loop(0, T, step, h0_ref[l], unroll=True)
            hn_ref[l] = h_last                                 # once per layer

        run_layer(0, x_ref[...])
        for l in range(1, L):
            run_layer(l, y_s[...])          # previous layer's outputs (VMEM)

        # Classifier + softmax over the (lane-padded) class dim. Padded bias is
        # -1e30 so padded columns contribute exp(.) == 0 to the softmax sum.
        logits = mm(y_s[...], wcls_ref[...]) + bcls_ref[...]   # (T*B, CP)
        m = jnp.max(logits, axis=-1, keepdims=True)
        e = jnp.exp(logits - m)
        probs_ref[...] = e / jnp.sum(e, axis=-1, keepdims=True)

    return kernel


def _prep_layer_params(w_ih, w_hh, b_ih, b_hh, *, hidden_size, gate_pad, mm_dtype):
    H = hidden_size
    pad = gate_pad - 3 * H
    wih_t = jnp.asarray(w_ih, jnp.float32).T                   # (in, 3H)
    whh_t = jnp.asarray(w_hh, jnp.float32).T                   # (H, 3H)
    wih_p = jnp.pad(wih_t, ((0, 0), (0, pad))).astype(mm_dtype)
    whh_p = jnp.pad(whh_t, ((0, 0), (0, pad))).astype(mm_dtype)
    b_ih = jnp.asarray(b_ih, jnp.float32)
    b_hh = jnp.asarray(b_hh, jnp.float32)
    # Fold hidden-side r/z biases into the hoisted input-side bias; keep b_hn
    # separate (it sits inside the r * (h W_hn^T + b_hn) term).
    bx = b_ih + jnp.concatenate([b_hh[:2 * H], jnp.zeros((H,), jnp.float32)])
    bh = jnp.concatenate([jnp.zeros((2 * H,), jnp.float32), b_hh[2 * H:]])
    bx_p = jnp.pad(bx, (0, pad)).reshape(1, gate_pad)
    bh_p = jnp.pad(bh, (0, pad)).reshape(1, gate_pad)
    return wih_p, whh_p, bx_p, bh_p


# ----------------------------------------------------------------------------
# Full GRUNetwork forward (single fused pallas_call)
# ----------------------------------------------------------------------------
def gru_network_forward(x, hidden, params, *, mm_dtype=jnp.float32):
    """x: (T, B, 7); hidden: (num_layers, B, H). Returns (probs (T,B,5), h_n)."""
    x = jnp.asarray(x, jnp.float32)
    hidden = jnp.asarray(hidden, jnp.float32)
    T, B, I = x.shape
    L, _, H = hidden.shape
    C = params["cls_w"].shape[0]
    TB = T * B
    GP = _round_up(3 * H, _LANE)          # padded gate width (3H -> 128-mult)
    CP = _round_up(C, _LANE)              # padded class width (5 -> 128)

    inputs = [x.reshape(TB, I).astype(mm_dtype)]
    for l in range(L):
        inputs.extend(_prep_layer_params(*params["gru"][l], hidden_size=H,
                                         gate_pad=GP, mm_dtype=mm_dtype))
    inputs.append(hidden)                                              # (L,B,H) f32
    wcls_t = jnp.asarray(params["cls_w"], jnp.float32).T               # (H, C)
    inputs.append(jnp.pad(wcls_t, ((0, 0), (0, CP - C))).astype(mm_dtype))
    inputs.append(jnp.pad(jnp.asarray(params["cls_b"], jnp.float32),
                          (0, CP - C), constant_values=-1e30).reshape(1, CP))

    out_shape = (jax.ShapeDtypeStruct((TB, CP), jnp.float32),          # probs (padded)
                 jax.ShapeDtypeStruct((L, B, H), jnp.float32))         # h_n

    grid_spec = pltpu.PrefetchScalarGridSpec(
        num_scalar_prefetch=0,
        grid=(1,),                                    # single fused invocation
        in_specs=[_vmem_spec(a.shape) for a in inputs],
        out_specs=[_vmem_spec(s.shape) for s in out_shape],
        scratch_shapes=[pltpu.VMEM((TB, GP), jnp.float32),   # hoisted gate proj
                        pltpu.VMEM((TB, H), jnp.float32)],   # layer outputs
    )

    probs_pad, h_n = pl.pallas_call(
        _build_fused_kernel(T, B, H, L, mm_dtype),
        grid_spec=grid_spec,
        out_shape=out_shape,
        compiler_params=pltpu.CompilerParams(
            dimension_semantics=("arbitrary",)),
    )(*inputs)

    probs = probs_pad[:, :C].reshape(T, B, C)
    return probs, h_n


# ----------------------------------------------------------------------------
# Pure-JAX reference (for correctness check)
# ----------------------------------------------------------------------------
def gru_network_reference(x, hidden, params):
    num_layers = hidden.shape[0]
    T = x.shape[0]
    layer_in = x
    h_finals = []
    for l in range(num_layers):
        w_ih, w_hh, b_ih, b_hh = params["gru"][l]
        H = w_hh.shape[1]
        h = hidden[l]
        outs = []
        for t in range(T):
            xt = layer_in[t]
            gx = xt @ w_ih.T + b_ih
            gh = h @ w_hh.T + b_hh
            r = jax.nn.sigmoid(gx[:, :H] + gh[:, :H])
            z = jax.nn.sigmoid(gx[:, H:2 * H] + gh[:, H:2 * H])
            n = jnp.tanh(gx[:, 2 * H:] + r * gh[:, 2 * H:])
            h = (1.0 - z) * n + z * h
            outs.append(h)
        layer_in = jnp.stack(outs, axis=0)
        h_finals.append(h)
    logits = jnp.einsum("tbh,ch->tbc", layer_in, params["cls_w"]) + params["cls_b"]
    return jax.nn.softmax(logits, axis=2), jnp.stack(h_finals, axis=0)


# ----------------------------------------------------------------------------
# Deterministic parameter init (PyTorch-style uniform(-1/sqrt(H), 1/sqrt(H)))
# ----------------------------------------------------------------------------
def init_params(key, input_size, hidden_size, num_layers, num_classes=5):
    bound = 1.0 / np.sqrt(hidden_size)
    params = {"gru": []}
    for l in range(num_layers):
        in_sz = input_size if l == 0 else hidden_size
        key, k1, k2, k3, k4 = jax.random.split(key, 5)
        w_ih = jax.random.uniform(k1, (3 * hidden_size, in_sz), jnp.float32,
                                  -bound, bound)
        w_hh = jax.random.uniform(k2, (3 * hidden_size, hidden_size), jnp.float32,
                                  -bound, bound)
        b_ih = jax.random.uniform(k3, (3 * hidden_size,), jnp.float32, -bound, bound)
        b_hh = jax.random.uniform(k4, (3 * hidden_size,), jnp.float32, -bound, bound)
        params["gru"].append((w_ih, w_hh, b_ih, b_hh))
    key, k5, k6 = jax.random.split(key, 3)
    params["cls_w"] = jax.random.uniform(k5, (num_classes, hidden_size), jnp.float32,
                                         -bound, bound)
    params["cls_b"] = jax.random.uniform(k6, (num_classes,), jnp.float32,
                                         -bound, bound)
    return params


if __name__ == "__main__":
    # Shapes consistent with the module: input_size=7 (fixed), hidden_size=32,
    # num_layers=2, seq_size=8; init_hidden() makes hidden (num_layers, seq_size, H),
    # so batch == seq_size == 8.
    T = 8          # sequence length
    B = 8          # batch (== seq_size, matching init_hidden)
    I = 7          # input_size
    H = 32         # hidden_size
    L = 2          # num_layers

    key = jax.random.PRNGKey(0)
    key, kx = jax.random.split(key)
    x = jax.random.normal(kx, (T, B, I), jnp.float32)
    hidden0 = jnp.zeros((L, B, H), jnp.float32)     # == init_hidden()
    params = init_params(key, I, H, L)

    ref_probs, ref_h = gru_network_reference(x, hidden0, params)

    # f32 matmul path (exact check).
    fwd_f32 = jax.jit(functools.partial(gru_network_forward, mm_dtype=jnp.float32))
    probs, h_n = fwd_f32(x, hidden0, params)
    probs = jax.block_until_ready(probs)
    h_n = jax.block_until_ready(h_n)
    np.testing.assert_allclose(np.asarray(probs), np.asarray(ref_probs),
                               rtol=1e-5, atol=1e-5)
    np.testing.assert_allclose(np.asarray(h_n), np.asarray(ref_h),
                               rtol=1e-5, atol=1e-5)
    assert probs.shape == (T, B, 5) and h_n.shape == (L, B, H)

    # bf16-operand MXU path (v6e/v7x native datapath; f32 accumulate, f32 gates).
    fwd_bf16 = jax.jit(functools.partial(gru_network_forward, mm_dtype=jnp.bfloat16))
    probs_b, h_n_b = fwd_bf16(x, hidden0, params)
    probs_b = jax.block_until_ready(probs_b)
    h_n_b = jax.block_until_ready(h_n_b)
    np.testing.assert_allclose(np.asarray(probs_b), np.asarray(ref_probs), atol=1e-1)
    np.testing.assert_allclose(np.asarray(h_n_b), np.asarray(ref_h), atol=1e-1)

    print("KERNEL_OK")
</pallas_src>

<mosaic_0001>
module attributes {stable_mosaic.version = 11 : i64} {
  func.func @kernel(%arg0: i32, %arg1: memref<64x7xf32, #tpu.memory_space<vmem>>, %arg2: memref<7x128xf32, #tpu.memory_space<vmem>>, %arg3: memref<32x128xf32, #tpu.memory_space<vmem>>, %arg4: memref<1x128xf32, #tpu.memory_space<vmem>>, %arg5: memref<1x128xf32, #tpu.memory_space<vmem>>, %arg6: memref<32x128xf32, #tpu.memory_space<vmem>>, %arg7: memref<32x128xf32, #tpu.memory_space<vmem>>, %arg8: memref<1x128xf32, #tpu.memory_space<vmem>>, %arg9: memref<1x128xf32, #tpu.memory_space<vmem>>, %arg10: memref<2x8x32xf32, #tpu.memory_space<vmem>>, %arg11: memref<32x128xf32, #tpu.memory_space<vmem>>, %arg12: memref<1x128xf32, #tpu.memory_space<vmem>>, %arg13: memref<64x128xf32, #tpu.memory_space<vmem>>, %arg14: memref<2x8x32xf32, #tpu.memory_space<vmem>>, %arg15: memref<64x128xf32, #tpu.memory_space<vmem>>, %arg16: memref<64x32xf32, #tpu.memory_space<vmem>>) attributes {dimension_semantics = [#tpu.dimension_semantics<arbitrary>], iteration_bounds = array<i64: 1>, scalar_prefetch = 0 : i64, scratch_operands = 2 : i64, tpu.core_type = #tpu.core_type<tc>, window_params = [{pipeline_mode = #tpu.pipeline_mode<synchronous>, transform_indices = @transform_0, window_bounds = array<i64: 64, 7>}, {pipeline_mode = #tpu.pipeline_mode<synchronous>, transform_indices = @transform_1, window_bounds = array<i64: 7, 128>}, {pipeline_mode = #tpu.pipeline_mode<synchronous>, transform_indices = @transform_2, window_bounds = array<i64: 32, 128>}, {pipeline_mode = #tpu.pipeline_mode<synchronous>, transform_indices = @transform_3, window_bounds = array<i64: 1, 128>}, {pipeline_mode = #tpu.pipeline_mode<synchronous>, transform_indices = @transform_4, window_bounds = array<i64: 1, 128>}, {pipeline_mode = #tpu.pipeline_mode<synchronous>, transform_indices = @transform_5, window_bounds = array<i64: 32, 128>}, {pipeline_mode = #tpu.pipeline_mode<synchronous>, transform_indices = @transform_6, window_bounds = array<i64: 32, 128>}, {pipeline_mode = #tpu.pipeline_mode<synchronous>, transform_indices = @transform_7, window_bounds = array<i64: 1, 128>}, {pipeline_mode = #tpu.pipeline_mode<synchronous>, transform_indices = @transform_8, window_bounds = array<i64: 1, 128>}, {pipeline_mode = #tpu.pipeline_mode<synchronous>, transform_indices = @transform_9, window_bounds = array<i64: 2, 8, 32>}, {pipeline_mode = #tpu.pipeline_mode<synchronous>, transform_indices = @transform_10, window_bounds = array<i64: 32, 128>}, {pipeline_mode = #tpu.pipeline_mode<synchronous>, transform_indices = @transform_11, window_bounds = array<i64: 1, 128>}, {pipeline_mode = #tpu.pipeline_mode<synchronous>, transform_indices = @transform_12, window_bounds = array<i64: 64, 128>}, {pipeline_mode = #tpu.pipeline_mode<synchronous>, transform_indices = @transform_13, window_bounds = array<i64: 2, 8, 32>}]} {
    %c0 = arith.constant 0 : index
    %c0_0 = arith.constant 0 : index
    %0 = vector.load %arg1[%c0, %c0_0] : memref<64x7xf32, #tpu.memory_space<vmem>>, vector<64x7xf32>
    %c0_1 = arith.constant 0 : index
    %c0_2 = arith.constant 0 : index
    %1 = vector.load %arg2[%c0_1, %c0_2] : memref<7x128xf32, #tpu.memory_space<vmem>>, vector<7x128xf32>
    %cst = arith.constant dense<0.000000e+00> : vector<64x128xf32>
    %2 = tpu.matmul %0, %1, %cst {dimension_numbers = #tpu.dot_dimension_numbers<[1], [0], [0], [1], [0, 0, 1, 1], [], []>} : vector<64x7xf32>, vector<7x128xf32>, vector<64x128xf32> -> vector<64x128xf32>
    %c0_3 = arith.constant 0 : index
    %c0_4 = arith.constant 0 : index
    %3 = vector.load %arg4[%c0_3, %c0_4] : memref<1x128xf32, #tpu.memory_space<vmem>>, vector<1x128xf32>
    %4 = vector.broadcast %3 : vector<1x128xf32> to vector<64x128xf32>
    %5 = arith.addf %2, %4 : vector<64x128xf32>
    %c0_5 = arith.constant 0 : index
    %c0_6 = arith.constant 0 : index
    %6 = vector.load %arg15[%c0_5, %c0_6] : memref<64x128xf32, #tpu.memory_space<vmem>>, vector<64x128xf32>
    tpu.vector_store %arg15[%c0_5, %c0_6], %5 {strides = array<i32>} : memref<64x128xf32, #tpu.memory_space<vmem>>, vector<64x128xf32>,
    %c0_7 = arith.constant 0 : index
    %c0_8 = arith.constant 0 : index
    %7 = vector.load %arg3[%c0_7, %c0_8] : memref<32x128xf32, #tpu.memory_space<vmem>>, vector<32x128xf32>
    %c0_9 = arith.constant 0 : index
    %c0_10 = arith.constant 0 : index
    %8 = vector.load %arg5[%c0_9, %c0_10] : memref<1x128xf32, #tpu.memory_space<vmem>>, vector<1x128xf32>
    %c0_11 = arith.constant 0 : index
    %c0_12 = arith.constant 0 : index
    %c0_13 = arith.constant 0 : index
    %9 = vector.load %arg10[%c0_11, %c0_12, %c0_13] : memref<2x8x32xf32, #tpu.memory_space<vmem>>, vector<1x8x32xf32>
    %10 = vector.shape_cast %9 : vector<1x8x32xf32> to vector<8x32xf32>
    %c0_i32 = arith.constant 0 : i32
    %c8_i32 = arith.constant 8 : i32
    %11 = arith.muli %c0_i32, %c8_i32 : i32
    %12 = tpu.assume_multiple %11, 8 : i32
    %13 = arith.index_cast %12 : i32 to index
    %c0_14 = arith.constant 0 : index
    %14 = vector.load %arg15[%13, %c0_14] : memref<64x128xf32, #tpu.memory_space<vmem>>, vector<8x128xf32>
    %cst_15 = arith.constant dense<0.000000e+00> : vector<8x128xf32>
    %15 = tpu.matmul %10, %7, %cst_15 {dimension_numbers = #tpu.dot_dimension_numbers<[1], [0], [0], [1], [0, 0, 1, 1], [], []>} : vector<8x32xf32>, vector<32x128xf32>, vector<8x128xf32> -> vector<8x128xf32>
    %16 = vector.broadcast %8 : vector<1x128xf32> to vector<8x128xf32>
    %17 = arith.addf %15, %16 : vector<8x128xf32>
    %18 = vector.extract_strided_slice %14 {offsets = [0, 0], sizes = [8, 32], strides = [1, 1]} : vector<8x128xf32> to vector<8x32xf32>
    %19 = vector.extract_strided_slice %17 {offsets = [0, 0], sizes = [8, 32], strides = [1, 1]} : vector<8x128xf32> to vector<8x32xf32>
    %20 = arith.addf %18, %19 : vector<8x32xf32>
    %21 = arith.negf %20 : vector<8x32xf32>
    %22 = math.exp %21 : vector<8x32xf32>
    %cst_16 = arith.constant 1.000000e+00 : f32
    %23 = vector.broadcast %cst_16 : f32 to vector<8x32xf32>
    %24 = arith.addf %23, %22 : vector<8x32xf32>
    %25 = arith.divf %23, %24 : vector<8x32xf32>
    %26 = vector.extract_strided_slice %14 {offsets = [0, 32], sizes = [8, 32], strides = [1, 1]} : vector<8x128xf32> to vector<8x32xf32>
    %27 = vector.extract_strided_slice %17 {offsets = [0, 32], sizes = [8, 32], strides = [1, 1]} : vector<8x128xf32> to vector<8x32xf32>
    %28 = arith.addf %26, %27 : vector<8x32xf32>
    %29 = arith.negf %28 : vector<8x32xf32>
    %30 = math.exp %29 : vector<8x32xf32>
    %cst_17 = arith.constant 1.000000e+00 : f32
    %31 = vector.broadcast %cst_17 : f32 to vector<8x32xf32>
    %32 = arith.addf %31, %30 : vector<8x32xf32>
    %33 = arith.divf %31, %32 : vector<8x32xf32>
    %34 = vector.extract_strided_slice %14 {offsets = [0, 64], sizes = [8, 32], strides = [1, 1]} : vector<8x128xf32> to vector<8x32xf32>
    %35 = vector.extract_strided_slice %17 {offsets = [0, 64], sizes = [8, 32], strides = [1, 1]} : vector<8x128xf32> to vector<8x32xf32>
    %36 = arith.mulf %25, %35 : vector<8x32xf32>
    %37 = arith.addf %34, %36 : vector<8x32xf32>
    %38 = math.tanh %37 : vector<8x32xf32>
    %cst_18 = arith.constant 1.000000e+00 : f32
    %39 = vector.broadcast %cst_18 : f32 to vector<8x32xf32>
    %40 = arith.subf %39, %33 : vector<8x32xf32>
    %41 = arith.mulf %40, %38 : vector<8x32xf32>
    %42 = arith.mulf %33, %10 : vector<8x32xf32>
    %43 = arith.addf %41, %42 : vector<8x32xf32>
    %44 = arith.index_cast %12 : i32 to index
    %c0_19 = arith.constant 0 : index
    %45 = vector.load %arg16[%44, %c0_19] : memref<64x32xf32, #tpu.memory_space<vmem>>, vector<8x32xf32>
    tpu.vector_store %arg16[%44, %c0_19], %43 {strides = array<i32>} : memref<64x32xf32, #tpu.memory_space<vmem>>, vector<8x32xf32>,
    %c1_i32 = arith.constant 1 : i32
    %c8_i32_20 = arith.constant 8 : i32
    %46 = arith.muli %c1_i32, %c8_i32_20 : i32
    %47 = tpu.assume_multiple %46, 8 : i32
    %48 = arith.index_cast %47 : i32 to index
    %c0_21 = arith.constant 0 : index
    %49 = vector.load %arg15[%48, %c0_21] : memref<64x128xf32, #tpu.memory_space<vmem>>, vector<8x128xf32>
    %cst_22 = arith.constant dense<0.000000e+00> : vector<8x128xf32>
    %50 = tpu.matmul %43, %7, %cst_22 {dimension_numbers = #tpu.dot_dimension_numbers<[1], [0], [0], [1], [0, 0, 1, 1], [], []>} : vector<8x32xf32>, vector<32x128xf32>, vector<8x128xf32> -> vector<8x128xf32>
    %51 = vector.broadcast %8 : vector<1x128xf32> to vector<8x128xf32>
    %52 = arith.addf %50, %51 : vector<8x128xf32>
    %53 = vector.extract_strided_slice %49 {offsets = [0, 0], sizes = [8, 32], strides = [1, 1]} : vector<8x128xf32> to vector<8x32xf32>
    %54 = vector.extract_strided_slice %52 {offsets = [0, 0], sizes = [8, 32], strides = [1, 1]} : vector<8x128xf32> to vector<8x32xf32>
    %55 = arith.addf %53, %54 : vector<8x32xf32>
    %56 = arith.negf %55 : vector<8x32xf32>
    %57 = math.exp %56 : vector<8x32xf32>
    %cst_23 = arith.constant 1.000000e+00 : f32
    %58 = vector.broadcast %cst_23 : f32 to vector<8x32xf32>
    %59 = arith.addf %58, %57 : vector<8x32xf32>
    %60 = arith.divf %58, %59 : vector<8x32xf32>
    %61 = vector.extract_strided_slice %49 {offsets = [0, 32], sizes = [8, 32], strides = [1, 1]} : vector<8x128xf32> to vector<8x32xf32>
    %62 = vector.extract_strided_slice %52 {offsets = [0, 32], sizes = [8, 32], strides = [1, 1]} : vector<8x128xf32> to vector<8x32xf32>
    %63 = arith.addf %61, %62 : vector<8x32xf32>
    %64 = arith.negf %63 : vector<8x32xf32>
    %65 = math.exp %64 : vector<8x32xf32>
    %cst_24 = arith.constant 1.000000e+00 : f32
    %66 = vector.broadcast %cst_24 : f32 to vector<8x32xf32>
    %67 = arith.addf %66, %65 : vector<8x32xf32>
    %68 = arith.divf %66, %67 : vector<8x32xf32>
    %69 = vector.extract_strided_slice %49 {offsets = [0, 64], sizes = [8, 32], strides = [1, 1]} : vector<8x128xf32> to vector<8x32xf32>
    %70 = vector.extract_strided_slice %52 {offsets = [0, 64], sizes = [8, 32], strides = [1, 1]} : vector<8x128xf32> to vector<8x32xf32>
    %71 = arith.mulf %60, %70 : vector<8x32xf32>
    %72 = arith.addf %69, %71 : vector<8x32xf32>
    %73 = math.tanh %72 : vector<8x32xf32>
    %cst_25 = arith.constant 1.000000e+00 : f32
    %74 = vector.broadcast %cst_25 : f32 to vector<8x32xf32>
    %75 = arith.subf %74, %68 : vector<8x32xf32>
    %76 = arith.mulf %75, %73 : vector<8x32xf32>
    %77 = arith.mulf %68, %43 : vector<8x32xf32>
    %78 = arith.addf %76, %77 : vector<8x32xf32>
    %79 = arith.index_cast %47 : i32 to index
    %c0_26 = arith.constant 0 : index
    %80 = vector.load %arg16[%79, %c0_26] : memref<64x32xf32, #tpu.memory_space<vmem>>, vector<8x32xf32>
    tpu.vector_store %arg16[%79, %c0_26], %78 {strides = array<i32>} : memref<64x32xf32, #tpu.memory_space<vmem>>, vector<8x32xf32>,
    %c2_i32 = arith.constant 2 : i32
    %c8_i32_27 = arith.constant 8 : i32
    %81 = arith.muli %c2_i32, %c8_i32_27 : i32
    %82 = tpu.assume_multiple %81, 8 : i32
    %83 = arith.index_cast %82 : i32 to index
    %c0_28 = arith.constant 0 : index
    %84 = vector.load %arg15[%83, %c0_28] : memref<64x128xf32, #tpu.memory_space<vmem>>, vector<8x128xf32>
    %cst_29 = arith.constant dense<0.000000e+00> : vector<8x128xf32>
    %85 = tpu.matmul %78, %7, %cst_29 {dimension_numbers = #tpu.dot_dimension_numbers<[1], [0], [0], [1], [0, 0, 1, 1], [], []>} : vector<8x32xf32>, vector<32x128xf32>, vector<8x128xf32> -> vector<8x128xf32>
    %86 = vector.broadcast %8 : vector<1x128xf32> to vector<8x128xf32>
    %87 = arith.addf %85, %86 : vector<8x128xf32>
    %88 = vector.extract_strided_slice %84 {offsets = [0, 0], sizes = [8, 32], strides = [1, 1]} : vector<8x128xf32> to vector<8x32xf32>
    %89 = vector.extract_strided_slice %87 {offsets = [0, 0], sizes = [8, 32], strides = [1, 1]} : vector<8x128xf32> to vector<8x32xf32>
    %90 = arith.addf %88, %89 : vector<8x32xf32>
    %91 = arith.negf %90 : vector<8x32xf32>
    %92 = math.exp %91 : vector<8x32xf32>
    %cst_30 = arith.constant 1.000000e+00 : f32
    %93 = vector.broadcast %cst_30 : f32 to vector<8x32xf32>
    %94 = arith.addf %93, %92 : vector<8x32xf32>
    %95 = arith.divf %93, %94 : vector<8x32xf32>
    %96 = vector.extract_strided_slice %84 {offsets = [0, 32], sizes = [8, 32], strides = [1, 1]} : vector<8x128xf32> to vector<8x32xf32>
    %97 = vector.extract_strided_slice %87 {offsets = [0, 32], sizes = [8, 32], strides = [1, 1]} : vector<8x128xf32> to vector<8x32xf32>
    %98 = arith.addf %96, %97 : vector<8x32xf32>
    %99 = arith.negf %98 : vector<8x32xf32>
    %100 = math.exp %99 : vector<8x32xf32>
    %cst_31 = arith.constant 1.000000e+00 : f32
    %101 = vector.broadcast %cst_31 : f32 to vector<8x32xf32>
    %102 = arith.addf %101, %100 : vector<8x32xf32>
    %103 = arith.divf %101, %102 : vector<8x32xf32>
    %104 = vector.extract_strided_slice %84 {offsets = [0, 64], sizes = [8, 32], strides = [1, 1]} : vector<8x128xf32> to vector<8x32xf32>
    %105 = vector.extract_strided_slice %87 {offsets = [0, 64], sizes = [8, 32], strides = [1, 1]} : vector<8x128xf32> to vector<8x32xf32>
    %106 = arith.mulf %95, %105 : vector<8x32xf32>
    %107 = arith.addf %104, %106 : vector<8x32xf32>
    %108 = math.tanh %107 : vector<8x32xf32>
    %cst_32 = arith.constant 1.000000e+00 : f32
    %109 = vector.broadcast %cst_32 : f32 to vector<8x32xf32>
    %110 = arith.subf %109, %103 : vector<8x32xf32>
    %111 = arith.mulf %110, %108 : vector<8x32xf32>
    %112 = arith.mulf %103, %78 : vector<8x32xf32>
    %113 = arith.addf %111, %112 : vector<8x32xf32>
    %114 = arith.index_cast %82 : i32 to index
    %c0_33 = arith.constant 0 : index
    %115 = vector.load %arg16[%114, %c0_33] : memref<64x32xf32, #tpu.memory_space<vmem>>, vector<8x32xf32>
    tpu.vector_store %arg16[%114, %c0_33], %113 {strides = array<i32>} : memref<64x32xf32, #tpu.memory_space<vmem>>, vector<8x32xf32>,
    %c3_i32 = arith.constant 3 : i32
    %c8_i32_34 = arith.constant 8 : i32
    %116 = arith.muli %c3_i32, %c8_i32_34 : i32
    %117 = tpu.assume_multiple %116, 8 : i32
    %118 = arith.index_cast %117 : i32 to index
    %c0_35 = arith.constant 0 : index
    %119 = vector.load %arg15[%118, %c0_35] : memref<64x128xf32, #tpu.memory_space<vmem>>, vector<8x128xf32>
    %cst_36 = arith.constant dense<0.000000e+00> : vector<8x128xf32>
    %120 = tpu.matmul %113, %7, %cst_36 {dimension_numbers = #tpu.dot_dimension_numbers<[1], [0], [0], [1], [0, 0, 1, 1], [], []>} : vector<8x32xf32>, vector<32x128xf32>, vector<8x128xf32> -> vector<8x128xf32>
    %121 = vector.broadcast %8 : vector<1x128xf32> to vector<8x128xf32>
    %122 = arith.addf %120, %121 : vector<8x128xf32>
    %123 = vector.extract_strided_slice %119 {offsets = [0, 0], sizes = [8, 32], strides = [1, 1]} : vector<8x128xf32> to vector<8x32xf32>
    %124 = vector.extract_strided_slice %122 {offsets = [0, 0], sizes = [8, 32], strides = [1, 1]} : vector<8x128xf32> to vector<8x32xf32>
    %125 = arith.addf %123, %124 : vector<8x32xf32>
    %126 = arith.negf %125 : vector<8x32xf32>
    %127 = math.exp %126 : vector<8x32xf32>
    %cst_37 = arith.constant 1.000000e+00 : f32
    %128 = vector.broadcast %cst_37 : f32 to vector<8x32xf32>
    %129 = arith.addf %128, %127 : vector<8x32xf32>
    %130 = arith.divf %128, %129 : vector<8x32xf32>
    %131 = vector.extract_strided_slice %119 {offsets = [0, 32], sizes = [8, 32], strides = [1, 1]} : vector<8x128xf32> to vector<8x32xf32>
    %132 = vector.extract_strided_slice %122 {offsets = [0, 32], sizes = [8, 32], strides = [1, 1]} : vector<8x128xf32> to vector<8x32xf32>
    %133 = arith.addf %131, %132 : vector<8x32xf32>
    %134 = arith.negf %133 : vector<8x32xf32>
    %135 = math.exp %134 : vector<8x32xf32>
    %cst_38 = arith.constant 1.000000e+00 : f32
    %136 = vector.broadcast %cst_38 : f32 to vector<8x32xf32>
    %137 = arith.addf %136, %135 : vector<8x32xf32>
    %138 = arith.divf %136, %137 : vector<8x32xf32>
    %139 = vector.extract_strided_slice %119 {offsets = [0, 64], sizes = [8, 32], strides = [1, 1]} : vector<8x128xf32> to vector<8x32xf32>
    %140 = vector.extract_strided_slice %122 {offsets = [0, 64], sizes = [8, 32], strides = [1, 1]} : vector<8x128xf32> to vector<8x32xf32>
    %141 = arith.mulf %130, %140 : vector<8x32xf32>
    %142 = arith.addf %139, %141 : vector<8x32xf32>
    %143 = math.tanh %142 : vector<8x32xf32>
    %cst_39 = arith.constant 1.000000e+00 : f32
    %144 = vector.broadcast %cst_39 : f32 to vector<8x32xf32>
    %145 = arith.subf %144, %138 : vector<8x32xf32>
    %146 = arith.mulf %145, %143 : vector<8x32xf32>
    %147 = arith.mulf %138, %113 : vector<8x32xf32>
    %148 = arith.addf %146, %147 : vector<8x32xf32>
    %149 = arith.index_cast %117 : i32 to index
    %c0_40 = arith.constant 0 : index
    %150 = vector.load %arg16[%149, %c0_40] : memref<64x32xf32, #tpu.memory_space<vmem>>, vector<8x32xf32>
    tpu.vector_store %arg16[%149, %c0_40], %148 {strides = array<i32>} : memref<64x32xf32, #tpu.memory_space<vmem>>, vector<8x32xf32>,
    %c4_i32 = arith.constant 4 : i32
    %c8_i32_41 = arith.constant 8 : i32
    %151 = arith.muli %c4_i32, %c8_i32_41 : i32
    %152 = tpu.assume_multiple %151, 8 : i32
    %153 = arith.index_cast %152 : i32 to index
    %c0_42 = arith.constant 0 : index
    %154 = vector.load %arg15[%153, %c0_42] : memref<64x128xf32, #tpu.memory_space<vmem>>, vector<8x128xf32>
    %cst_43 = arith.constant dense<0.000000e+00> : vector<8x128xf32>
    %155 = tpu.matmul %148, %7, %cst_43 {dimension_numbers = #tpu.dot_dimension_numbers<[1], [0], [0], [1], [0, 0, 1, 1], [], []>} : vector<8x32xf32>, vector<32x128xf32>, vector<8x128xf32> -> vector<8x128xf32>
    %156 = vector.broadcast %8 : vector<1x128xf32> to vector<8x128xf32>
    %157 = arith.addf %155, %156 : vector<8x128xf32>
    %158 = vector.extract_strided_slice %154 {offsets = [0, 0], sizes = [8, 32], strides = [1, 1]} : vector<8x128xf32> to vector<8x32xf32>
    %159 = vector.extract_strided_slice %157 {offsets = [0, 0], sizes = [8, 32], strides = [1, 1]} : vector<8x128xf32> to vector<8x32xf32>
    %160 = arith.addf %158, %159 : vector<8x32xf32>
    %161 = arith.negf %160 : vector<8x32xf32>
    %162 = math.exp %161 : vector<8x32xf32>
    %cst_44 = arith.constant 1.000000e+00 : f32
    %163 = vector.broadcast %cst_44 : f32 to vector<8x32xf32>
    %164 = arith.addf %163, %162 : vector<8x32xf32>
    %165 = arith.divf %163, %164 : vector<8x32xf32>
    %166 = vector.extract_strided_slice %154 {offsets = [0, 32], sizes = [8, 32], strides = [1, 1]} : vector<8x128xf32> to vector<8x32xf32>
    %167 = vector.extract_strided_slice %157 {offsets = [0, 32], sizes = [8, 32], strides = [1, 1]} : vector<8x128xf32> to vector<8x32xf32>
    %168 = arith.addf %166, %167 : vector<8x32xf32>
    %169 = arith.negf %168 : vector<8x32xf32>
    %170 = math.exp %169 : vector<8x32xf32>
    %cst_45 = arith.constant 1.000000e+00 : f32
    %171 = vector.broadcast %cst_45 : f32 to vector<8x32xf32>
    %172 = arith.addf %171, %170 : vector<8x32xf32>
    %173 = arith.divf %171, %172 : vector<8x32xf32>
    %174 = vector.extract_strided_slice %154 {offsets = [0, 64], sizes = [8, 32], strides = [1, 1]} : vector<8x128xf32> to vector<8x32xf32>
    %175 = vector.extract_strided_slice %157 {offsets = [0, 64], sizes = [8, 32], strides = [1, 1]} : vector<8x128xf32> to vector<8x32xf32>
    %176 = arith.mulf %165, %175 : vector<8x32xf32>
    %177 = arith.addf %174, %176 : vector<8x32xf32>
    %178 = math.tanh %177 : vector<8x32xf32>
    %cst_46 = arith.constant 1.000000e+00 : f32
    %179 = vector.broadcast %cst_46 : f32 to vector<8x32xf32>
    %180 = arith.subf %179, %173 : vector<8x32xf32>
    %181 = arith.mulf %180, %178 : vector<8x32xf32>
    %182 = arith.mulf %173, %148 : vector<8x32xf32>
    %183 = arith.addf %181, %182 : vector<8x32xf32>
    %184 = arith.index_cast %152 : i32 to index
    %c0_47 = arith.constant 0 : index
    %185 = vector.load %arg16[%184, %c0_47] : memref<64x32xf32, #tpu.memory_space<vmem>>, vector<8x32xf32>
    tpu.vector_store %arg16[%184, %c0_47], %183 {strides = array<i32>} : memref<64x32xf32, #tpu.memory_space<vmem>>, vector<8x32xf32>,
    %c5_i32 = arith.constant 5 : i32
    %c8_i32_48 = arith.constant 8 : i32
    %186 = arith.muli %c5_i32, %c8_i32_48 : i32
    %187 = tpu.assume_multiple %186, 8 : i32
    %188 = arith.index_cast %187 : i32 to index
    %c0_49 = arith.constant 0 : index
    %189 = vector.load %arg15[%188, %c0_49] : memref<64x128xf32, #tpu.memory_space<vmem>>, vector<8x128xf32>
    %cst_50 = arith.constant dense<0.000000e+00> : vector<8x128xf32>
    %190 = tpu.matmul %183, %7, %cst_50 {dimension_numbers = #tpu.dot_dimension_numbers<[1], [0], [0], [1], [0, 0, 1, 1], [], []>} : vector<8x32xf32>, vector<32x128xf32>, vector<8x128xf32> -> vector<8x128xf32>
    %191 = vector.broadcast %8 : vector<1x128xf32> to vector<8x128xf32>
    %192 = arith.addf %190, %191 : vector<8x128xf32>
    %193 = vector.extract_strided_slice %189 {offsets = [0, 0], sizes = [8, 32], strides = [1, 1]} : vector<8x128xf32> to vector<8x32xf32>
    %194 = vector.extract_strided_slice %192 {offsets = [0, 0], sizes = [8, 32], strides = [1, 1]} : vector<8x128xf32> to vector<8x32xf32>
    %195 = arith.addf %193, %194 : vector<8x32xf32>
    %196 = arith.negf %195 : vector<8x32xf32>
    %197 = math.exp %196 : vector<8x32xf32>
    %cst_51 = arith.constant 1.000000e+00 : f32
    %198 = vector.broadcast %cst_51 : f32 to vector<8x32xf32>
    %199 = arith.addf %198, %197 : vector<8x32xf32>
    %200 = arith.divf %198, %199 : vector<8x32xf32>
    %201 = vector.extract_strided_slice %189 {offsets = [0, 32], sizes = [8, 32], strides = [1, 1]} : vector<8x128xf32> to vector<8x32xf32>
    %202 = vector.extract_strided_slice %192 {offsets = [0, 32], sizes = [8, 32], strides = [1, 1]} : vector<8x128xf32> to vector<8x32xf32>
    %203 = arith.addf %201, %202 : vector<8x32xf32>
    %204 = arith.negf %203 : vector<8x32xf32>
    %205 = math.exp %204 : vector<8x32xf32>
    %cst_52 = arith.constant 1.000000e+00 : f32
    %206 = vector.broadcast %cst_52 : f32 to vector<8x32xf32>
    %207 = arith.addf %206, %205 : vector<8x32xf32>
    %208 = arith.divf %206, %207 : vector<8x32xf32>
    %209 = vector.extract_strided_slice %189 {offsets = [0, 64], sizes = [8, 32], strides = [1, 1]} : vector<8x128xf32> to vector<8x32xf32>
    %210 = vector.extract_strided_slice %192 {offsets = [0, 64], sizes = [8, 32], strides = [1, 1]} : vector<8x128xf32> to vector<8x32xf32>
    %211 = arith.mulf %200, %210 : vector<8x32xf32>
    %212 = arith.addf %209, %211 : vector<8x32xf32>
    %213 = math.tanh %212 : vector<8x32xf32>
    %cst_53 = arith.constant 1.000000e+00 : f32
    %214 = vector.broadcast %cst_53 : f32 to vector<8x32xf32>
    %215 = arith.subf %214, %208 : vector<8x32xf32>
    %216 = arith.mulf %215, %213 : vector<8x32xf32>
    %217 = arith.mulf %208, %183 : vector<8x32xf32>
    %218 = arith.addf %216, %217 : vector<8x32xf32>
    %219 = arith.index_cast %187 : i32 to index
    %c0_54 = arith.constant 0 : index
    %220 = vector.load %arg16[%219, %c0_54] : memref<64x32xf32, #tpu.memory_space<vmem>>, vector<8x32xf32>
    tpu.vector_store %arg16[%219, %c0_54], %218 {strides = array<i32>} : memref<64x32xf32, #tpu.memory_space<vmem>>, vector<8x32xf32>,
    %c6_i32 = arith.constant 6 : i32
    %c8_i32_55 = arith.constant 8 : i32
    %221 = arith.muli %c6_i32, %c8_i32_55 : i32
    %222 = tpu.assume_multiple %221, 8 : i32
    %223 = arith.index_cast %222 : i32 to index
    %c0_56 = arith.constant 0 : index
    %224 = vector.load %arg15[%223, %c0_56] : memref<64x128xf32, #tpu.memory_space<vmem>>, vector<8x128xf32>
    %cst_57 = arith.constant dense<0.000000e+00> : vector<8x128xf32>
    %225 = tpu.matmul %218, %7, %cst_57 {dimension_numbers = #tpu.dot_dimension_numbers<[1], [0], [0], [1], [0, 0, 1, 1], [], []>} : vector<8x32xf32>, vector<32x128xf32>, vector<8x128xf32> -> vector<8x128xf32>
    %226 = vector.broadcast %8 : vector<1x128xf32> to vector<8x128xf32>
    %227 = arith.addf %225, %226 : vector<8x128xf32>
    %228 = vector.extract_strided_slice %224 {offsets = [0, 0], sizes = [8, 32], strides = [1, 1]} : vector<8x128xf32> to vector<8x32xf32>
    %229 = vector.extract_strided_slice %227 {offsets = [0, 0], sizes = [8, 32], strides = [1, 1]} : vector<8x128xf32> to vector<8x32xf32>
    %230 = arith.addf %228, %229 : vector<8x32xf32>
    %231 = arith.negf %230 : vector<8x32xf32>
    %232 = math.exp %231 : vector<8x32xf32>
    %cst_58 = arith.constant 1.000000e+00 : f32
    %233 = vector.broadcast %cst_58 : f32 to vector<8x32xf32>
    %234 = arith.addf %233, %232 : vector<8x32xf32>
    %235 = arith.divf %233, %234 : vector<8x32xf32>
    %236 = vector.extract_strided_slice %224 {offsets = [0, 32], sizes = [8, 32], strides = [1, 1]} : vector<8x128xf32> to vector<8x32xf32>
    %237 = vector.extract_strided_slice %227 {offsets = [0, 32], sizes = [8, 32], strides = [1, 1]} : vector<8x128xf32> to vector<8x32xf32>
    %238 = arith.addf %236, %237 : vector<8x32xf32>
    %239 = arith.negf %238 : vector<8x32xf32>
    %240 = math.exp %239 : vector<8x32xf32>
    %cst_59 = arith.constant 1.000000e+00 : f32
    %241 = vector.broadcast %cst_59 : f32 to vector<8x32xf32>
    %242 = arith.addf %241, %240 : vector<8x32xf32>
    %243 = arith.divf %241, %242 : vector<8x32xf32>
    %244 = vector.extract_strided_slice %224 {offsets = [0, 64], sizes = [8, 32], strides = [1, 1]} : vector<8x128xf32> to vector<8x32xf32>
    %245 = vector.extract_strided_slice %227 {offsets = [0, 64], sizes = [8, 32], strides = [1, 1]} : vector<8x128xf32> to vector<8x32xf32>
    %246 = arith.mulf %235, %245 : vector<8x32xf32>
    %247 = arith.addf %244, %246 : vector<8x32xf32>
    %248 = math.tanh %247 : vector<8x32xf32>
    %cst_60 = arith.constant 1.000000e+00 : f32
    %249 = vector.broadcast %cst_60 : f32 to vector<8x32xf32>
    %250 = arith.subf %249, %243 : vector<8x32xf32>
    %251 = arith.mulf %250, %248 : vector<8x32xf32>
    %252 = arith.mulf %243, %218 : vector<8x32xf32>
    %253 = arith.addf %251, %252 : vector<8x32xf32>
    %254 = arith.index_cast %222 : i32 to index
    %c0_61 = arith.constant 0 : index
    %255 = vector.load %arg16[%254, %c0_61] : memref<64x32xf32, #tpu.memory_space<vmem>>, vector<8x32xf32>
    tpu.vector_store %arg16[%254, %c0_61], %253 {strides = array<i32>} : memref<64x32xf32, #tpu.memory_space<vmem>>, vector<8x32xf32>,
    %c7_i32 = arith.constant 7 : i32
    %c8_i32_62 = arith.constant 8 : i32
    %256 = arith.muli %c7_i32, %c8_i32_62 : i32
    %257 = tpu.assume_multiple %256, 8 : i32
    %258 = arith.index_cast %257 : i32 to index
    %c0_63 = arith.constant 0 : index
    %259 = vector.load %arg15[%258, %c0_63] : memref<64x128xf32, #tpu.memory_space<vmem>>, vector<8x128xf32>
    %cst_64 = arith.constant dense<0.000000e+00> : vector<8x128xf32>
    %260 = tpu.matmul %253, %7, %cst_64 {dimension_numbers = #tpu.dot_dimension_numbers<[1], [0], [0], [1], [0, 0, 1, 1], [], []>} : vector<8x32xf32>, vector<32x128xf32>, vector<8x128xf32> -> vector<8x128xf32>
    %261 = vector.broadcast %8 : vector<1x128xf32> to vector<8x128xf32>
    %262 = arith.addf %260, %261 : vector<8x128xf32>
    %263 = vector.extract_strided_slice %259 {offsets = [0, 0], sizes = [8, 32], strides = [1, 1]} : vector<8x128xf32> to vector<8x32xf32>
    %264 = vector.extract_strided_slice %262 {offsets = [0, 0], sizes = [8, 32], strides = [1, 1]} : vector<8x128xf32> to vector<8x32xf32>
    %265 = arith.addf %263, %264 : vector<8x32xf32>
    %266 = arith.negf %265 : vector<8x32xf32>
    %267 = math.exp %266 : vector<8x32xf32>
    %cst_65 = arith.constant 1.000000e+00 : f32
    %268 = vector.broadcast %cst_65 : f32 to vector<8x32xf32>
    %269 = arith.addf %268, %267 : vector<8x32xf32>
    %270 = arith.divf %268, %269 : vector<8x32xf32>
    %271 = vector.extract_strided_slice %259 {offsets = [0, 32], sizes = [8, 32], strides = [1, 1]} : vector<8x128xf32> to vector<8x32xf32>
    %272 = vector.extract_strided_slice %262 {offsets = [0, 32], sizes = [8, 32], strides = [1, 1]} : vector<8x128xf32> to vector<8x32xf32>
    %273 = arith.addf %271, %272 : vector<8x32xf32>
    %274 = arith.negf %273 : vector<8x32xf32>
    %275 = math.exp %274 : vector<8x32xf32>
    %cst_66 = arith.constant 1.000000e+00 : f32
    %276 = vector.broadcast %cst_66 : f32 to vector<8x32xf32>
    %277 = arith.addf %276, %275 : vector<8x32xf32>
    %278 = arith.divf %276, %277 : vector<8x32xf32>
    %279 = vector.extract_strided_slice %259 {offsets = [0, 64], sizes = [8, 32], strides = [1, 1]} : vector<8x128xf32> to vector<8x32xf32>
    %280 = vector.extract_strided_slice %262 {offsets = [0, 64], sizes = [8, 32], strides = [1, 1]} : vector<8x128xf32> to vector<8x32xf32>
    %281 = arith.mulf %270, %280 : vector<8x32xf32>
    %282 = arith.addf %279, %281 : vector<8x32xf32>
    %283 = math.tanh %282 : vector<8x32xf32>
    %cst_67 = arith.constant 1.000000e+00 : f32
    %284 = vector.broadcast %cst_67 : f32 to vector<8x32xf32>
    %285 = arith.subf %284, %278 : vector<8x32xf32>
    %286 = arith.mulf %285, %283 : vector<8x32xf32>
    %287 = arith.mulf %278, %253 : vector<8x32xf32>
    %288 = arith.addf %286, %287 : vector<8x32xf32>
    %289 = arith.index_cast %257 : i32 to index
    %c0_68 = arith.constant 0 : index
    %290 = vector.load %arg16[%289, %c0_68] : memref<64x32xf32, #tpu.memory_space<vmem>>, vector<8x32xf32>
    tpu.vector_store %arg16[%289, %c0_68], %288 {strides = array<i32>} : memref<64x32xf32, #tpu.memory_space<vmem>>, vector<8x32xf32>,
    %c8_i32_69 = arith.constant 8 : i32
    %c0_70 = arith.constant 0 : index
    %c0_71 = arith.constant 0 : index
    %c0_72 = arith.constant 0 : index
    %291 = vector.load %arg14[%c0_70, %c0_71, %c0_72] : memref<2x8x32xf32, #tpu.memory_space<vmem>>, vector<1x8x32xf32>
    %292 = vector.shape_cast %291 : vector<1x8x32xf32> to vector<8x32xf32>
    %293 = vector.shape_cast %288 : vector<8x32xf32> to vector<1x8x32xf32>
    tpu.vector_store %arg14[%c0_70, %c0_71, %c0_72], %293 {strides = array<i32>} : memref<2x8x32xf32, #tpu.memory_space<vmem>>, vector<1x8x32xf32>,
    %c0_73 = arith.constant 0 : index
    %c0_74 = arith.constant 0 : index
    %294 = vector.load %arg16[%c0_73, %c0_74] : memref<64x32xf32, #tpu.memory_space<vmem>>, vector<64x32xf32>
    %c0_75 = arith.constant 0 : index
    %c0_76 = arith.constant 0 : index
    %295 = vector.load %arg6[%c0_75, %c0_76] : memref<32x128xf32, #tpu.memory_space<vmem>>, vector<32x128xf32>
    %cst_77 = arith.constant dense<0.000000e+00> : vector<64x128xf32>
    %296 = tpu.matmul %294, %295, %cst_77 {dimension_numbers = #tpu.dot_dimension_numbers<[1], [0], [0], [1], [0, 0, 1, 1], [], []>} : vector<64x32xf32>, vector<32x128xf32>, vector<64x128xf32> -> vector<64x128xf32>
    %c0_78 = arith.constant 0 : index
    %c0_79 = arith.constant 0 : index
    %297 = vector.load %arg8[%c0_78, %c0_79] : memref<1x128xf32, #tpu.memory_space<vmem>>, vector<1x128xf32>
    %298 = vector.broadcast %297 : vector<1x128xf32> to vector<64x128xf32>
    %299 = arith.addf %296, %298 : vector<64x128xf32>
    %c0_80 = arith.constant 0 : index
    %c0_81 = arith.constant 0 : index
    %300 = vector.load %arg15[%c0_80, %c0_81] : memref<64x128xf32, #tpu.memory_space<vmem>>, vector<64x128xf32>
    tpu.vector_store %arg15[%c0_80, %c0_81], %299 {strides = array<i32>} : memref<64x128xf32, #tpu.memory_space<vmem>>, vector<64x128xf32>,
    %c0_82 = arith.constant 0 : index
    %c0_83 = arith.constant 0 : index
    %301 = vector.load %arg7[%c0_82, %c0_83] : memref<32x128xf32, #tpu.memory_space<vmem>>, vector<32x128xf32>
    %c0_84 = arith.constant 0 : index
    %c0_85 = arith.constant 0 : index
    %302 = vector.load %arg9[%c0_84, %c0_85] : memref<1x128xf32, #tpu.memory_space<vmem>>, vector<1x128xf32>
    %c1 = arith.constant 1 : index
    %c0_86 = arith.constant 0 : index
    %c0_87 = arith.constant 0 : index
    %303 = vector.load %arg10[%c1, %c0_86, %c0_87] : memref<2x8x32xf32, #tpu.memory_space<vmem>>, vector<1x8x32xf32>
    %304 = vector.shape_cast %303 : vector<1x8x32xf32> to vector<8x32xf32>
    %c0_i32_88 = arith.constant 0 : i32
    %c8_i32_89 = arith.constant 8 : i32
    %305 = arith.muli %c0_i32_88, %c8_i32_89 : i32
    %306 = tpu.assume_multiple %305, 8 : i32
    %307 = arith.index_cast %306 : i32 to index
    %c0_90 = arith.constant 0 : index
    %308 = vector.load %arg15[%307, %c0_90] : memref<64x128xf32, #tpu.memory_space<vmem>>, vector<8x128xf32>
    %cst_91 = arith.constant dense<0.000000e+00> : vector<8x128xf32>
    %309 = tpu.matmul %304, %301, %cst_91 {dimension_numbers = #tpu.dot_dimension_numbers<[1], [0], [0], [1], [0, 0, 1, 1], [], []>} : vector<8x32xf32>, vector<32x128xf32>, vector<8x128xf32> -> vector<8x128xf32>
    %310 = vector.broadcast %302 : vector<1x128xf32> to vector<8x128xf32>
    %311 = arith.addf %309, %310 : vector<8x128xf32>
    %312 = vector.extract_strided_slice %308 {offsets = [0, 0], sizes = [8, 32], strides = [1, 1]} : vector<8x128xf32> to vector<8x32xf32>
    %313 = vector.extract_strided_slice %311 {offsets = [0, 0], sizes = [8, 32], strides = [1, 1]} : vector<8x128xf32> to vector<8x32xf32>
    %314 = arith.addf %312, %313 : vector<8x32xf32>
    %315 = arith.negf %314 : vector<8x32xf32>
    %316 = math.exp %315 : vector<8x32xf32>
    %cst_92 = arith.constant 1.000000e+00 : f32
    %317 = vector.broadcast %cst_92 : f32 to vector<8x32xf32>
    %318 = arith.addf %317, %316 : vector<8x32xf32>
    %319 = arith.divf %317, %318 : vector<8x32xf32>
    %320 = vector.extract_strided_slice %308 {offsets = [0, 32], sizes = [8, 32], strides = [1, 1]} : vector<8x128xf32> to vector<8x32xf32>
    %321 = vector.extract_strided_slice %311 {offsets = [0, 32], sizes = [8, 32], strides = [1, 1]} : vector<8x128xf32> to vector<8x32xf32>
    %322 = arith.addf %320, %321 : vector<8x32xf32>
    %323 = arith.negf %322 : vector<8x32xf32>
    %324 = math.exp %323 : vector<8x32xf32>
    %cst_93 = arith.constant 1.000000e+00 : f32
    %325 = vector.broadcast %cst_93 : f32 to vector<8x32xf32>
    %326 = arith.addf %325, %324 : vector<8x32xf32>
    %327 = arith.divf %325, %326 : vector<8x32xf32>
    %328 = vector.extract_strided_slice %308 {offsets = [0, 64], sizes = [8, 32], strides = [1, 1]} : vector<8x128xf32> to vector<8x32xf32>
    %329 = vector.extract_strided_slice %311 {offsets = [0, 64], sizes = [8, 32], strides = [1, 1]} : vector<8x128xf32> to vector<8x32xf32>
    %330 = arith.mulf %319, %329 : vector<8x32xf32>
    %331 = arith.addf %328, %330 : vector<8x32xf32>
    %332 = math.tanh %331 : vector<8x32xf32>
    %cst_94 = arith.constant 1.000000e+00 : f32
    %333 = vector.broadcast %cst_94 : f32 to vector<8x32xf32>
    %334 = arith.subf %333, %327 : vector<8x32xf32>
    %335 = arith.mulf %334, %332 : vector<8x32xf32>
    %336 = arith.mulf %327, %304 : vector<8x32xf32>
    %337 = arith.addf %335, %336 : vector<8x32xf32>
    %338 = arith.index_cast %306 : i32 to index
    %c0_95 = arith.constant 0 : index
    %339 = vector.load %arg16[%338, %c0_95] : memref<64x32xf32, #tpu.memory_space<vmem>>, vector<8x32xf32>
    tpu.vector_store %arg16[%338, %c0_95], %337 {strides = array<i32>} : memref<64x32xf32, #tpu.memory_space<vmem>>, vector<8x32xf32>,
    %c1_i32_96 = arith.constant 1 : i32
    %c8_i32_97 = arith.constant 8 : i32
    %340 = arith.muli %c1_i32_96, %c8_i32_97 : i32
    %341 = tpu.assume_multiple %340, 8 : i32
    %342 = arith.index_cast %341 : i32 to index
    %c0_98 = arith.constant 0 : index
    %343 = vector.load %arg15[%342, %c0_98] : memref<64x128xf32, #tpu.memory_space<vmem>>, vector<8x128xf32>
    %cst_99 = arith.constant dense<0.000000e+00> : vector<8x128xf32>
    %344 = tpu.matmul %337, %301, %cst_99 {dimension_numbers = #tpu.dot_dimension_numbers<[1], [0], [0], [1], [0, 0, 1, 1], [], []>} : vector<8x32xf32>, vector<32x128xf32>, vector<8x128xf32> -> vector<8x128xf32>
    %345 = vector.broadcast %302 : vector<1x128xf32> to vector<8x128xf32>
    %346 = arith.addf %344, %345 : vector<8x128xf32>
    %347 = vector.extract_strided_slice %343 {offsets = [0, 0], sizes = [8, 32], strides = [1, 1]} : vector<8x128xf32> to vector<8x32xf32>
    %348 = vector.extract_strided_slice %346 {offsets = [0, 0], sizes = [8, 32], strides = [1, 1]} : vector<8x128xf32> to vector<8x32xf32>
    %349 = arith.addf %347, %348 : vector<8x32xf32>
    %350 = arith.negf %349 : vector<8x32xf32>
    %351 = math.exp %350 : vector<8x32xf32>
    %cst_100 = arith.constant 1.000000e+00 : f32
    %352 = vector.broadcast %cst_100 : f32 to vector<8x32xf32>
    %353 = arith.addf %352, %351 : vector<8x32xf32>
    %354 = arith.divf %352, %353 : vector<8x32xf32>
    %355 = vector.extract_strided_slice %343 {offsets = [0, 32], sizes = [8, 32], strides = [1, 1]} : vector<8x128xf32> to vector<8x32xf32>
    %356 = vector.extract_strided_slice %346 {offsets = [0, 32], sizes = [8, 32], strides = [1, 1]} : vector<8x128xf32> to vector<8x32xf32>
    %357 = arith.addf %355, %356 : vector<8x32xf32>
    %358 = arith.negf %357 : vector<8x32xf32>
    %359 = math.exp %358 : vector<8x32xf32>
    %cst_101 = arith.constant 1.000000e+00 : f32
    %360 = vector.broadcast %cst_101 : f32 to vector<8x32xf32>
    %361 = arith.addf %360, %359 : vector<8x32xf32>
    %362 = arith.divf %360, %361 : vector<8x32xf32>
    %363 = vector.extract_strided_slice %343 {offsets = [0, 64], sizes = [8, 32], strides = [1, 1]} : vector<8x128xf32> to vector<8x32xf32>
    %364 = vector.extract_strided_slice %346 {offsets = [0, 64], sizes = [8, 32], strides = [1, 1]} : vector<8x128xf32> to vector<8x32xf32>
    %365 = arith.mulf %354, %364 : vector<8x32xf32>
    %366 = arith.addf %363, %365 : vector<8x32xf32>
    %367 = math.tanh %366 : vector<8x32xf32>
    %cst_102 = arith.constant 1.000000e+00 : f32
    %368 = vector.broadcast %cst_102 : f32 to vector<8x32xf32>
    %369 = arith.subf %368, %362 : vector<8x32xf32>
    %370 = arith.mulf %369, %367 : vector<8x32xf32>
    %371 = arith.mulf %362, %337 : vector<8x32xf32>
    %372 = arith.addf %370, %371 : vector<8x32xf32>
    %373 = arith.index_cast %341 : i32 to index
    %c0_103 = arith.constant 0 : index
    %374 = vector.load %arg16[%373, %c0_103] : memref<64x32xf32, #tpu.memory_space<vmem>>, vector<8x32xf32>
    tpu.vector_store %arg16[%373, %c0_103], %372 {strides = array<i32>} : memref<64x32xf32, #tpu.memory_space<vmem>>, vector<8x32xf32>,
    %c2_i32_104 = arith.constant 2 : i32
    %c8_i32_105 = arith.constant 8 : i32
    %375 = arith.muli %c2_i32_104, %c8_i32_105 : i32
    %376 = tpu.assume_multiple %375, 8 : i32
    %377 = arith.index_cast %376 : i32 to index
    %c0_106 = arith.constant 0 : index
    %378 = vector.load %arg15[%377, %c0_106] : memref<64x128xf32, #tpu.memory_space<vmem>>, vector<8x128xf32>
    %cst_107 = arith.constant dense<0.000000e+00> : vector<8x128xf32>
    %379 = tpu.matmul %372, %301, %cst_107 {dimension_numbers = #tpu.dot_dimension_numbers<[1], [0], [0], [1], [0, 0, 1, 1], [], []>} : vector<8x32xf32>, vector<32x128xf32>, vector<8x128xf32> -> vector<8x128xf32>
    %380 = vector.broadcast %302 : vector<1x128xf32> to vector<8x128xf32>
    %381 = arith.addf %379, %380 : vector<8x128xf32>
    %382 = vector.extract_strided_slice %378 {offsets = [0, 0], sizes = [8, 32], strides = [1, 1]} : vector<8x128xf32> to vector<8x32xf32>
    %383 = vector.extract_strided_slice %381 {offsets = [0, 0], sizes = [8, 32], strides = [1, 1]} : vector<8x128xf32> to vector<8x32xf32>
    %384 = arith.addf %382, %383 : vector<8x32xf32>
    %385 = arith.negf %384 : vector<8x32xf32>
    %386 = math.exp %385 : vector<8x32xf32>
    %cst_108 = arith.constant 1.000000e+00 : f32
    %387 = vector.broadcast %cst_108 : f32 to vector<8x32xf32>
    %388 = arith.addf %387, %386 : vector<8x32xf32>
    %389 = arith.divf %387, %388 : vector<8x32xf32>
    %390 = vector.extract_strided_slice %378 {offsets = [0, 32], sizes = [8, 32], strides = [1, 1]} : vector<8x128xf32> to vector<8x32xf32>
    %391 = vector.extract_strided_slice %381 {offsets = [0, 32], sizes = [8, 32], strides = [1, 1]} : vector<8x128xf32> to vector<8x32xf32>
    %392 = arith.addf %390, %391 : vector<8x32xf32>
    %393 = arith.negf %392 : vector<8x32xf32>
    %394 = math.exp %393 : vector<8x32xf32>
    %cst_109 = arith.constant 1.000000e+00 : f32
    %395 = vector.broadcast %cst_109 : f32 to vector<8x32xf32>
    %396 = arith.addf %395, %394 : vector<8x32xf32>
    %397 = arith.divf %395, %396 : vector<8x32xf32>
    %398 = vector.extract_strided_slice %378 {offsets = [0, 64], sizes = [8, 32], strides = [1, 1]} : vector<8x128xf32> to vector<8x32xf32>
    %399 = vector.extract_strided_slice %381 {offsets = [0, 64], sizes = [8, 32], strides = [1, 1]} : vector<8x128xf32> to vector<8x32xf32>
    %400 = arith.mulf %389, %399 : vector<8x32xf32>
    %401 = arith.addf %398, %400 : vector<8x32xf32>
    %402 = math.tanh %401 : vector<8x32xf32>
    %cst_110 = arith.constant 1.000000e+00 : f32
    %403 = vector.broadcast %cst_110 : f32 to vector<8x32xf32>
    %404 = arith.subf %403, %397 : vector<8x32xf32>
    %405 = arith.mulf %404, %402 : vector<8x32xf32>
    %406 = arith.mulf %397, %372 : vector<8x32xf32>
    %407 = arith.addf %405, %406 : vector<8x32xf32>
    %408 = arith.index_cast %376 : i32 to index
    %c0_111 = arith.constant 0 : index
    %409 = vector.load %arg16[%408, %c0_111] : memref<64x32xf32, #tpu.memory_space<vmem>>, vector<8x32xf32>
    tpu.vector_store %arg16[%408, %c0_111], %407 {strides = array<i32>} : memref<64x32xf32, #tpu.memory_space<vmem>>, vector<8x32xf32>,
    %c3_i32_112 = arith.constant 3 : i32
    %c8_i32_113 = arith.constant 8 : i32
    %410 = arith.muli %c3_i32_112, %c8_i32_113 : i32
    %411 = tpu.assume_multiple %410, 8 : i32
    %412 = arith.index_cast %411 : i32 to index
    %c0_114 = arith.constant 0 : index
    %413 = vector.load %arg15[%412, %c0_114] : memref<64x128xf32, #tpu.memory_space<vmem>>, vector<8x128xf32>
    %cst_115 = arith.constant dense<0.000000e+00> : vector<8x128xf32>
    %414 = tpu.matmul %407, %301, %cst_115 {dimension_numbers = #tpu.dot_dimension_numbers<[1], [0], [0], [1], [0, 0, 1, 1], [], []>} : vector<8x32xf32>, vector<32x128xf32>, vector<8x128xf32> -> vector<8x128xf32>
    %415 = vector.broadcast %302 : vector<1x128xf32> to vector<8x128xf32>
    %416 = arith.addf %414, %415 : vector<8x128xf32>
    %417 = vector.extract_strided_slice %413 {offsets = [0, 0], sizes = [8, 32], strides = [1, 1]} : vector<8x128xf32> to vector<8x32xf32>
    %418 = vector.extract_strided_slice %416 {offsets = [0, 0], sizes = [8, 32], strides = [1, 1]} : vector<8x128xf32> to vector<8x32xf32>
    %419 = arith.addf %417, %418 : vector<8x32xf32>
    %420 = arith.negf %419 : vector<8x32xf32>
    %421 = math.exp %420 : vector<8x32xf32>
    %cst_116 = arith.constant 1.000000e+00 : f32
    %422 = vector.broadcast %cst_116 : f32 to vector<8x32xf32>
    %423 = arith.addf %422, %421 : vector<8x32xf32>
    %424 = arith.divf %422, %423 : vector<8x32xf32>
    %425 = vector.extract_strided_slice %413 {offsets = [0, 32], sizes = [8, 32], strides = [1, 1]} : vector<8x128xf32> to vector<8x32xf32>
    %426 = vector.extract_strided_slice %416 {offsets = [0, 32], sizes = [8, 32], strides = [1, 1]} : vector<8x128xf32> to vector<8x32xf32>
    %427 = arith.addf %425, %426 : vector<8x32xf32>
    %428 = arith.negf %427 : vector<8x32xf32>
    %429 = math.exp %428 : vector<8x32xf32>
    %cst_117 = arith.constant 1.000000e+00 : f32
    %430 = vector.broadcast %cst_117 : f32 to vector<8x32xf32>
    %431 = arith.addf %430, %429 : vector<8x32xf32>
    %432 = arith.divf %430, %431 : vector<8x32xf32>
    %433 = vector.extract_strided_slice %413 {offsets = [0, 64], sizes = [8, 32], strides = [1, 1]} : vector<8x128xf32> to vector<8x32xf32>
    %434 = vector.extract_strided_slice %416 {offsets = [0, 64], sizes = [8, 32], strides = [1, 1]} : vector<8x128xf32> to vector<8x32xf32>
    %435 = arith.mulf %424, %434 : vector<8x32xf32>
    %436 = arith.addf %433, %435 : vector<8x32xf32>
    %437 = math.tanh %436 : vector<8x32xf32>
    %cst_118 = arith.constant 1.000000e+00 : f32
    %438 = vector.broadcast %cst_118 : f32 to vector<8x32xf32>
    %439 = arith.subf %438, %432 : vector<8x32xf32>
    %440 = arith.mulf %439, %437 : vector<8x32xf32>
    %441 = arith.mulf %432, %407 : vector<8x32xf32>
    %442 = arith.addf %440, %441 : vector<8x32xf32>
    %443 = arith.index_cast %411 : i32 to index
    %c0_119 = arith.constant 0 : index
    %444 = vector.load %arg16[%443, %c0_119] : memref<64x32xf32, #tpu.memory_space<vmem>>, vector<8x32xf32>
    tpu.vector_store %arg16[%443, %c0_119], %442 {strides = array<i32>} : memref<64x32xf32, #tpu.memory_space<vmem>>, vector<8x32xf32>,
    %c4_i32_120 = arith.constant 4 : i32
    %c8_i32_121 = arith.constant 8 : i32
    %445 = arith.muli %c4_i32_120, %c8_i32_121 : i32
    %446 = tpu.assume_multiple %445, 8 : i32
    %447 = arith.index_cast %446 : i32 to index
    %c0_122 = arith.constant 0 : index
    %448 = vector.load %arg15[%447, %c0_122] : memref<64x128xf32, #tpu.memory_space<vmem>>, vector<8x128xf32>
    %cst_123 = arith.constant dense<0.000000e+00> : vector<8x128xf32>
    %449 = tpu.matmul %442, %301, %cst_123 {dimension_numbers = #tpu.dot_dimension_numbers<[1], [0], [0], [1], [0, 0, 1, 1], [], []>} : vector<8x32xf32>, vector<32x128xf32>, vector<8x128xf32> -> vector<8x128xf32>
    %450 = vector.broadcast %302 : vector<1x128xf32> to vector<8x128xf32>
    %451 = arith.addf %449, %450 : vector<8x128xf32>
    %452 = vector.extract_strided_slice %448 {offsets = [0, 0], sizes = [8, 32], strides = [1, 1]} : vector<8x128xf32> to vector<8x32xf32>
    %453 = vector.extract_strided_slice %451 {offsets = [0, 0], sizes = [8, 32], strides = [1, 1]} : vector<8x128xf32> to vector<8x32xf32>
    %454 = arith.addf %452, %453 : vector<8x32xf32>
    %455 = arith.negf %454 : vector<8x32xf32>
    %456 = math.exp %455 : vector<8x32xf32>
    %cst_124 = arith.constant 1.000000e+00 : f32
    %457 = vector.broadcast %cst_124 : f32 to vector<8x32xf32>
    %458 = arith.addf %457, %456 : vector<8x32xf32>
    %459 = arith.divf %457, %458 : vector<8x32xf32>
    %460 = vector.extract_strided_slice %448 {offsets = [0, 32], sizes = [8, 32], strides = [1, 1]} : vector<8x128xf32> to vector<8x32xf32>
    %461 = vector.extract_strided_slice %451 {offsets = [0, 32], sizes = [8, 32], strides = [1, 1]} : vector<8x128xf32> to vector<8x32xf32>
    %462 = arith.addf %460, %461 : vector<8x32xf32>
    %463 = arith.negf %462 : vector<8x32xf32>
    %464 = math.exp %463 : vector<8x32xf32>
    %cst_125 = arith.constant 1.000000e+00 : f32
    %465 = vector.broadcast %cst_125 : f32 to vector<8x32xf32>
    %466 = arith.addf %465, %464 : vector<8x32xf32>
    %467 = arith.divf %465, %466 : vector<8x32xf32>
    %468 = vector.extract_strided_slice %448 {offsets = [0, 64], sizes = [8, 32], strides = [1, 1]} : vector<8x128xf32> to vector<8x32xf32>
    %469 = vector.extract_strided_slice %451 {offsets = [0, 64], sizes = [8, 32], strides = [1, 1]} : vector<8x128xf32> to vector<8x32xf32>
    %470 = arith.mulf %459, %469 : vector<8x32xf32>
    %471 = arith.addf %468, %470 : vector<8x32xf32>
    %472 = math.tanh %471 : vector<8x32xf32>
    %cst_126 = arith.constant 1.000000e+00 : f32
    %473 = vector.broadcast %cst_126 : f32 to vector<8x32xf32>
    %474 = arith.subf %473, %467 : vector<8x32xf32>
    %475 = arith.mulf %474, %472 : vector<8x32xf32>
    %476 = arith.mulf %467, %442 : vector<8x32xf32>
    %477 = arith.addf %475, %476 : vector<8x32xf32>
    %478 = arith.index_cast %446 : i32 to index
    %c0_127 = arith.constant 0 : index
    %479 = vector.load %arg16[%478, %c0_127] : memref<64x32xf32, #tpu.memory_space<vmem>>, vector<8x32xf32>
    tpu.vector_store %arg16[%478, %c0_127], %477 {strides = array<i32>} : memref<64x32xf32, #tpu.memory_space<vmem>>, vector<8x32xf32>,
    %c5_i32_128 = arith.constant 5 : i32
    %c8_i32_129 = arith.constant 8 : i32
    %480 = arith.muli %c5_i32_128, %c8_i32_129 : i32
    %481 = tpu.assume_multiple %480, 8 : i32
    %482 = arith.index_cast %481 : i32 to index
    %c0_130 = arith.constant 0 : index
    %483 = vector.load %arg15[%482, %c0_130] : memref<64x128xf32, #tpu.memory_space<vmem>>, vector<8x128xf32>
    %cst_131 = arith.constant dense<0.000000e+00> : vector<8x128xf32>
    %484 = tpu.matmul %477, %301, %cst_131 {dimension_numbers = #tpu.dot_dimension_numbers<[1], [0], [0], [1], [0, 0, 1, 1], [], []>} : vector<8x32xf32>, vector<32x128xf32>, vector<8x128xf32> -> vector<8x128xf32>
    %485 = vector.broadcast %302 : vector<1x128xf32> to vector<8x128xf32>
    %486 = arith.addf %484, %485 : vector<8x128xf32>
    %487 = vector.extract_strided_slice %483 {offsets = [0, 0], sizes = [8, 32], strides = [1, 1]} : vector<8x128xf32> to vector<8x32xf32>
    %488 = vector.extract_strided_slice %486 {offsets = [0, 0], sizes = [8, 32], strides = [1, 1]} : vector<8x128xf32> to vector<8x32xf32>
    %489 = arith.addf %487, %488 : vector<8x32xf32>
    %490 = arith.negf %489 : vector<8x32xf32>
    %491 = math.exp %490 : vector<8x32xf32>
    %cst_132 = arith.constant 1.000000e+00 : f32
    %492 = vector.broadcast %cst_132 : f32 to vector<8x32xf32>
    %493 = arith.addf %492, %491 : vector<8x32xf32>
    %494 = arith.divf %492, %493 : vector<8x32xf32>
    %495 = vector.extract_strided_slice %483 {offsets = [0, 32], sizes = [8, 32], strides = [1, 1]} : vector<8x128xf32> to vector<8x32xf32>
    %496 = vector.extract_strided_slice %486 {offsets = [0, 32], sizes = [8, 32], strides = [1, 1]} : vector<8x128xf32> to vector<8x32xf32>
    %497 = arith.addf %495, %496 : vector<8x32xf32>
    %498 = arith.negf %497 : vector<8x32xf32>
    %499 = math.exp %498 : vector<8x32xf32>
    %cst_133 = arith.constant 1.000000e+00 : f32
    %500 = vector.broadcast %cst_133 : f32 to vector<8x32xf32>
    %501 = arith.addf %500, %499 : vector<8x32xf32>
    %502 = arith.divf %500, %501 : vector<8x32xf32>
    %503 = vector.extract_strided_slice %483 {offsets = [0, 64], sizes = [8, 32], strides = [1, 1]} : vector<8x128xf32> to vector<8x32xf32>
    %504 = vector.extract_strided_slice %486 {offsets = [0, 64], sizes = [8, 32], strides = [1, 1]} : vector<8x128xf32> to vector<8x32xf32>
    %505 = arith.mulf %494, %504 : vector<8x32xf32>
    %506 = arith.addf %503, %505 : vector<8x32xf32>
    %507 = math.tanh %506 : vector<8x32xf32>
    %cst_134 = arith.constant 1.000000e+00 : f32
    %508 = vector.broadcast %cst_134 : f32 to vector<8x32xf32>
    %509 = arith.subf %508, %502 : vector<8x32xf32>
    %510 = arith.mulf %509, %507 : vector<8x32xf32>
    %511 = arith.mulf %502, %477 : vector<8x32xf32>
    %512 = arith.addf %510, %511 : vector<8x32xf32>
    %513 = arith.index_cast %481 : i32 to index
    %c0_135 = arith.constant 0 : index
    %514 = vector.load %arg16[%513, %c0_135] : memref<64x32xf32, #tpu.memory_space<vmem>>, vector<8x32xf32>
    tpu.vector_store %arg16[%513, %c0_135], %512 {strides = array<i32>} : memref<64x32xf32, #tpu.memory_space<vmem>>, vector<8x32xf32>,
    %c6_i32_136 = arith.constant 6 : i32
    %c8_i32_137 = arith.constant 8 : i32
    %515 = arith.muli %c6_i32_136, %c8_i32_137 : i32
    %516 = tpu.assume_multiple %515, 8 : i32
    %517 = arith.index_cast %516 : i32 to index
    %c0_138 = arith.constant 0 : index
    %518 = vector.load %arg15[%517, %c0_138] : memref<64x128xf32, #tpu.memory_space<vmem>>, vector<8x128xf32>
    %cst_139 = arith.constant dense<0.000000e+00> : vector<8x128xf32>
    %519 = tpu.matmul %512, %301, %cst_139 {dimension_numbers = #tpu.dot_dimension_numbers<[1], [0], [0], [1], [0, 0, 1, 1], [], []>} : vector<8x32xf32>, vector<32x128xf32>, vector<8x128xf32> -> vector<8x128xf32>
    %520 = vector.broadcast %302 : vector<1x128xf32> to vector<8x128xf32>
    %521 = arith.addf %519, %520 : vector<8x128xf32>
    %522 = vector.extract_strided_slice %518 {offsets = [0, 0], sizes = [8, 32], strides = [1, 1]} : vector<8x128xf32> to vector<8x32xf32>
    %523 = vector.extract_strided_slice %521 {offsets = [0, 0], sizes = [8, 32], strides = [1, 1]} : vector<8x128xf32> to vector<8x32xf32>
    %524 = arith.addf %522, %523 : vector<8x32xf32>
    %525 = arith.negf %524 : vector<8x32xf32>
    %526 = math.exp %525 : vector<8x32xf32>
    %cst_140 = arith.constant 1.000000e+00 : f32
    %527 = vector.broadcast %cst_140 : f32 to vector<8x32xf32>
    %528 = arith.addf %527, %526 : vector<8x32xf32>
    %529 = arith.divf %527, %528 : vector<8x32xf32>
    %530 = vector.extract_strided_slice %518 {offsets = [0, 32], sizes = [8, 32], strides = [1, 1]} : vector<8x128xf32> to vector<8x32xf32>
    %531 = vector.extract_strided_slice %521 {offsets = [0, 32], sizes = [8, 32], strides = [1, 1]} : vector<8x128xf32> to vector<8x32xf32>
    %532 = arith.addf %530, %531 : vector<8x32xf32>
    %533 = arith.negf %532 : vector<8x32xf32>
    %534 = math.exp %533 : vector<8x32xf32>
    %cst_141 = arith.constant 1.000000e+00 : f32
    %535 = vector.broadcast %cst_141 : f32 to vector<8x32xf32>
    %536 = arith.addf %535, %534 : vector<8x32xf32>
    %537 = arith.divf %535, %536 : vector<8x32xf32>
    %538 = vector.extract_strided_slice %518 {offsets = [0, 64], sizes = [8, 32], strides = [1, 1]} : vector<8x128xf32> to vector<8x32xf32>
    %539 = vector.extract_strided_slice %521 {offsets = [0, 64], sizes = [8, 32], strides = [1, 1]} : vector<8x128xf32> to vector<8x32xf32>
    %540 = arith.mulf %529, %539 : vector<8x32xf32>
    %541 = arith.addf %538, %540 : vector<8x32xf32>
    %542 = math.tanh %541 : vector<8x32xf32>
    %cst_142 = arith.constant 1.000000e+00 : f32
    %543 = vector.broadcast %cst_142 : f32 to vector<8x32xf32>
    %544 = arith.subf %543, %537 : vector<8x32xf32>
    %545 = arith.mulf %544, %542 : vector<8x32xf32>
    %546 = arith.mulf %537, %512 : vector<8x32xf32>
    %547 = arith.addf %545, %546 : vector<8x32xf32>
    %548 = arith.index_cast %516 : i32 to index
    %c0_143 = arith.constant 0 : index
    %549 = vector.load %arg16[%548, %c0_143] : memref<64x32xf32, #tpu.memory_space<vmem>>, vector<8x32xf32>
    tpu.vector_store %arg16[%548, %c0_143], %547 {strides = array<i32>} : memref<64x32xf32, #tpu.memory_space<vmem>>, vector<8x32xf32>,
    %c7_i32_144 = arith.constant 7 : i32
    %c8_i32_145 = arith.constant 8 : i32
    %550 = arith.muli %c7_i32_144, %c8_i32_145 : i32
    %551 = tpu.assume_multiple %550, 8 : i32
    %552 = arith.index_cast %551 : i32 to index
    %c0_146 = arith.constant 0 : index
    %553 = vector.load %arg15[%552, %c0_146] : memref<64x128xf32, #tpu.memory_space<vmem>>, vector<8x128xf32>
    %cst_147 = arith.constant dense<0.000000e+00> : vector<8x128xf32>
    %554 = tpu.matmul %547, %301, %cst_147 {dimension_numbers = #tpu.dot_dimension_numbers<[1], [0], [0], [1], [0, 0, 1, 1], [], []>} : vector<8x32xf32>, vector<32x128xf32>, vector<8x128xf32> -> vector<8x128xf32>
    %555 = vector.broadcast %302 : vector<1x128xf32> to vector<8x128xf32>
    %556 = arith.addf %554, %555 : vector<8x128xf32>
    %557 = vector.extract_strided_slice %553 {offsets = [0, 0], sizes = [8, 32], strides = [1, 1]} : vector<8x128xf32> to vector<8x32xf32>
    %558 = vector.extract_strided_slice %556 {offsets = [0, 0], sizes = [8, 32], strides = [1, 1]} : vector<8x128xf32> to vector<8x32xf32>
    %559 = arith.addf %557, %558 : vector<8x32xf32>
    %560 = arith.negf %559 : vector<8x32xf32>
    %561 = math.exp %560 : vector<8x32xf32>
    %cst_148 = arith.constant 1.000000e+00 : f32
    %562 = vector.broadcast %cst_148 : f32 to vector<8x32xf32>
    %563 = arith.addf %562, %561 : vector<8x32xf32>
    %564 = arith.divf %562, %563 : vector<8x32xf32>
    %565 = vector.extract_strided_slice %553 {offsets = [0, 32], sizes = [8, 32], strides = [1, 1]} : vector<8x128xf32> to vector<8x32xf32>
    %566 = vector.extract_strided_slice %556 {offsets = [0, 32], sizes = [8, 32], strides = [1, 1]} : vector<8x128xf32> to vector<8x32xf32>
    %567 = arith.addf %565, %566 : vector<8x32xf32>
    %568 = arith.negf %567 : vector<8x32xf32>
    %569 = math.exp %568 : vector<8x32xf32>
    %cst_149 = arith.constant 1.000000e+00 : f32
    %570 = vector.broadcast %cst_149 : f32 to vector<8x32xf32>
    %571 = arith.addf %570, %569 : vector<8x32xf32>
    %572 = arith.divf %570, %571 : vector<8x32xf32>
    %573 = vector.extract_strided_slice %553 {offsets = [0, 64], sizes = [8, 32], strides = [1, 1]} : vector<8x128xf32> to vector<8x32xf32>
    %574 = vector.extract_strided_slice %556 {offsets = [0, 64], sizes = [8, 32], strides = [1, 1]} : vector<8x128xf32> to vector<8x32xf32>
    %575 = arith.mulf %564, %574 : vector<8x32xf32>
    %576 = arith.addf %573, %575 : vector<8x32xf32>
    %577 = math.tanh %576 : vector<8x32xf32>
    %cst_150 = arith.constant 1.000000e+00 : f32
    %578 = vector.broadcast %cst_150 : f32 to vector<8x32xf32>
    %579 = arith.subf %578, %572 : vector<8x32xf32>
    %580 = arith.mulf %579, %577 : vector<8x32xf32>
    %581 = arith.mulf %572, %547 : vector<8x32xf32>
    %582 = arith.addf %580, %581 : vector<8x32xf32>
    %583 = arith.index_cast %551 : i32 to index
    %c0_151 = arith.constant 0 : index
    %584 = vector.load %arg16[%583, %c0_151] : memref<64x32xf32, #tpu.memory_space<vmem>>, vector<8x32xf32>
    tpu.vector_store %arg16[%583, %c0_151], %582 {strides = array<i32>} : memref<64x32xf32, #tpu.memory_space<vmem>>, vector<8x32xf32>,
    %c8_i32_152 = arith.constant 8 : i32
    %c1_153 = arith.constant 1 : index
    %c0_154 = arith.constant 0 : index
    %c0_155 = arith.constant 0 : index
    %585 = vector.load %arg14[%c1_153, %c0_154, %c0_155] : memref<2x8x32xf32, #tpu.memory_space<vmem>>, vector<1x8x32xf32>
    %586 = vector.shape_cast %585 : vector<1x8x32xf32> to vector<8x32xf32>
    %587 = vector.shape_cast %582 : vector<8x32xf32> to vector<1x8x32xf32>
    tpu.vector_store %arg14[%c1_153, %c0_154, %c0_155], %587 {strides = array<i32>} : memref<2x8x32xf32, #tpu.memory_space<vmem>>, vector<1x8x32xf32>,
    %c0_156 = arith.constant 0 : index
    %c0_157 = arith.constant 0 : index
    %588 = vector.load %arg16[%c0_156, %c0_157] : memref<64x32xf32, #tpu.memory_space<vmem>>, vector<64x32xf32>
    %c0_158 = arith.constant 0 : index
    %c0_159 = arith.constant 0 : index
    %589 = vector.load %arg11[%c0_158, %c0_159] : memref<32x128xf32, #tpu.memory_space<vmem>>, vector<32x128xf32>
    %cst_160 = arith.constant dense<0.000000e+00> : vector<64x128xf32>
    %590 = tpu.matmul %588, %589, %cst_160 {dimension_numbers = #tpu.dot_dimension_numbers<[1], [0], [0], [1], [0, 0, 1, 1], [], []>} : vector<64x32xf32>, vector<32x128xf32>, vector<64x128xf32> -> vector<64x128xf32>
    %c0_161 = arith.constant 0 : index
    %c0_162 = arith.constant 0 : index
    %591 = vector.load %arg12[%c0_161, %c0_162] : memref<1x128xf32, #tpu.memory_space<vmem>>, vector<1x128xf32>
    %592 = vector.broadcast %591 : vector<1x128xf32> to vector<64x128xf32>
    %593 = arith.addf %590, %592 : vector<64x128xf32>
    %cst_163 = arith.constant dense<0xFF800000> : vector<64xf32>
    %594 = vector.multi_reduction <maximumf>, %593, %cst_163 [1] : vector<64x128xf32> to vector<64xf32>
    %595 = vector.shape_cast %594 : vector<64xf32> to vector<64x1xf32>
    %596 = vector.broadcast %595 : vector<64x1xf32> to vector<64x128xf32>
    %597 = arith.subf %593, %596 : vector<64x128xf32>
    %598 = math.exp %597 : vector<64x128xf32>
    %cst_164 = arith.constant dense<0.000000e+00> : vector<64xf32>
    %599 = vector.multi_reduction <add>, %598, %cst_164 [1] : vector<64x128xf32> to vector<64xf32>
    %600 = vector.shape_cast %599 : vector<64xf32> to vector<64x1xf32>
    %601 = vector.broadcast %600 : vector<64x1xf32> to vector<64x128xf32>
    %602 = arith.divf %598, %601 : vector<64x128xf32>
    %c0_165 = arith.constant 0 : index
    %c0_166 = arith.constant 0 : index
    %603 = vector.load %arg13[%c0_165, %c0_166] : memref<64x128xf32, #tpu.memory_space<vmem>>, vector<64x128xf32>
    tpu.vector_store %arg13[%c0_165, %c0_166], %602 {strides = array<i32>} : memref<64x128xf32, #tpu.memory_space<vmem>>, vector<64x128xf32>,
    return
  }
  func.func @transform_0(%arg0: i32) -> (i32, i32) {
    %c0_i32 = arith.constant 0 : i32
    %c0_i32_0 = arith.constant 0 : i32
    %c0_i32_1 = arith.constant 0 : i32
    return %c0_i32, %c0_i32_0 : i32, i32
  }
  func.func @transform_1(%arg0: i32) -> (i32, i32) {
    %c0_i32 = arith.constant 0 : i32
    %c0_i32_0 = arith.constant 0 : i32
    %c0_i32_1 = arith.constant 0 : i32
    return %c0_i32, %c0_i32_0 : i32, i32
  }
  func.func @transform_2(%arg0: i32) -> (i32, i32) {
    %c0_i32 = arith.constant 0 : i32
    %c0_i32_0 = arith.constant 0 : i32
    %c0_i32_1 = arith.constant 0 : i32
    return %c0_i32, %c0_i32_0 : i32, i32
  }
  func.func @transform_3(%arg0: i32) -> (i32, i32) {
    %c0_i32 = arith.constant 0 : i32
    %c0_i32_0 = arith.constant 0 : i32
    %c0_i32_1 = arith.constant 0 : i32
    return %c0_i32, %c0_i32_0 : i32, i32
  }
  func.func @transform_4(%arg0: i32) -> (i32, i32) {
    %c0_i32 = arith.constant 0 : i32
    %c0_i32_0 = arith.constant 0 : i32
    %c0_i32_1 = arith.constant 0 : i32
    return %c0_i32, %c0_i32_0 : i32, i32
  }
  func.func @transform_5(%arg0: i32) -> (i32, i32) {
    %c0_i32 = arith.constant 0 : i32
    %c0_i32_0 = arith.constant 0 : i32
    %c0_i32_1 = arith.constant 0 : i32
    return %c0_i32, %c0_i32_0 : i32, i32
  }
  func.func @transform_6(%arg0: i32) -> (i32, i32) {
    %c0_i32 = arith.constant 0 : i32
    %c0_i32_0 = arith.constant 0 : i32
    %c0_i32_1 = arith.constant 0 : i32
    return %c0_i32, %c0_i32_0 : i32, i32
  }
  func.func @transform_7(%arg0: i32) -> (i32, i32) {
    %c0_i32 = arith.constant 0 : i32
    %c0_i32_0 = arith.constant 0 : i32
    %c0_i32_1 = arith.constant 0 : i32
    return %c0_i32, %c0_i32_0 : i32, i32
  }
  func.func @transform_8(%arg0: i32) -> (i32, i32) {
    %c0_i32 = arith.constant 0 : i32
    %c0_i32_0 = arith.constant 0 : i32
    %c0_i32_1 = arith.constant 0 : i32
    return %c0_i32, %c0_i32_0 : i32, i32
  }
  func.func @transform_9(%arg0: i32) -> (i32, i32, i32) {
    %c0_i32 = arith.constant 0 : i32
    %c0_i32_0 = arith.constant 0 : i32
    %c0_i32_1 = arith.constant 0 : i32
    %c0_i32_2 = arith.constant 0 : i32
    return %c0_i32, %c0_i32_0, %c0_i32_1 : i32, i32, i32
  }
  func.func @transform_10(%arg0: i32) -> (i32, i32) {
    %c0_i32 = arith.constant 0 : i32
    %c0_i32_0 = arith.constant 0 : i32
    %c0_i32_1 = arith.constant 0 : i32
    return %c0_i32, %c0_i32_0 : i32, i32
  }
  func.func @transform_11(%arg0: i32) -> (i32, i32) {
    %c0_i32 = arith.constant 0 : i32
    %c0_i32_0 = arith.constant 0 : i32
    %c0_i32_1 = arith.constant 0 : i32
    return %c0_i32, %c0_i32_0 : i32, i32
  }
  func.func @transform_12(%arg0: i32) -> (i32, i32) {
    %c0_i32 = arith.constant 0 : i32
    %c0_i32_0 = arith.constant 0 : i32
    %c0_i32_1 = arith.constant 0 : i32
    return %c0_i32, %c0_i32_0 : i32, i32
  }
  func.func @transform_13(%arg0: i32) -> (i32, i32, i32) {
    %c0_i32 = arith.constant 0 : i32
    %c0_i32_0 = arith.constant 0 : i32
    %c0_i32_1 = arith.constant 0 : i32
    %c0_i32_2 = arith.constant 0 : i32
    return %c0_i32, %c0_i32_0, %c0_i32_1 : i32, i32, i32
  }
}

</mosaic_0001>

<llo_original>
// kernel: gru_network_forward.1
$region0: #{gru_network_forward.1}
  #allocation0 [shape = 'u32[]', space=smem, size = 0x4, offset = 0x4, fixed_abs, tag = 'smem constant byte address 0x4 - core index']
  #allocation1 [shape = 'u32[144,128]{1,0:T(1,128)}', space=vmem, size = 0x12000, scoped, tag = 'internal scratch']
  #allocation2 [shape = 'f32[64,128]{1,0:T(8,128)}', space=vmem, size = 0x8000, scoped, tag = 'scratch operand']
  #allocation3 [shape = 'f32[64,32]{1,0:T(8,128)}', space=vmem, size = 0x8000, scoped, tag = 'scratch operand']
  %s0 = inlined_call_operand.vmem [shape: f32[64,7], index: 0, kind: input, shape index: {}]
  %s1 = inlined_call_operand.vmem [shape: f32[7,128], index: 1, kind: input, shape index: {}]
  %s2 = inlined_call_operand.vmem [shape: f32[32,128], index: 2, kind: input, shape index: {}]
  %s3 = inlined_call_operand.vmem [shape: f32[1,128], index: 3, kind: input, shape index: {}]
  %s4 = inlined_call_operand.vmem [shape: f32[1,128], index: 4, kind: input, shape index: {}]
  %s5 = inlined_call_operand.vmem [shape: f32[32,128], index: 5, kind: input, shape index: {}]
  %s6 = inlined_call_operand.vmem [shape: f32[32,128], index: 6, kind: input, shape index: {}]
  %s7 = inlined_call_operand.vmem [shape: f32[1,128], index: 7, kind: input, shape index: {}]
  %s8 = inlined_call_operand.vmem [shape: f32[1,128], index: 8, kind: input, shape index: {}]
  %s9 = inlined_call_operand.vmem [shape: f32[2,8,32], index: 9, kind: input, shape index: {}]
  %s10 = inlined_call_operand.vmem [shape: f32[32,128], index: 10, kind: input, shape index: {}]
  %s11 = inlined_call_operand.vmem [shape: f32[1,128], index: 11, kind: input, shape index: {}]
  %s12 = inlined_call_operand.vmem [shape: f32[64,128], index: 12, kind: output, shape index: {0}]
  %s13 = inlined_call_operand.hbm [shape: f32[2,8,32], index: 13, kind: output, shape index: {1}]
  %14 = xla_tuple %s12, %s13
  %s15 = sld [smem:[#allocation0]]
  $region66: #{gru_network_forward.1} parent=0
    _
  %s17 = ssub.s32 1, %s15
  %s18 = scalar_select 0, %s17, %s15
  $region1: #{gru_network_forward.1} parent=0
    #allocation4 [shape = 'u8[8192]{0}', space=vmem, size = 0x2000, scoped, tag = 'output window, operand 1, single buffered']
    #allocation5 [shape = 's32[1]{0}', space=sflag, size = 0x4, scoped, tag = 'scoped memory for gru_network_forward.1']
    %19 = vsyncpa [#allocation5], 0
    // Predicated region
    $region2: #{gru_network_forward.1} parent=1 // pred_check
      _
    $region3: #{gru_network_forward.1} parent=1 // pred_check_branch
      %21 = sbr.rel (0) target = $region5
    $region4: #{gru_network_forward.1} parent=1 // pred_region
      _
    $region5: #{gru_network_forward.1} parent=1 // pred_fallthru
      _
    // Predicated region
    $region6: #{gru_network_forward.1} parent=1 // pred_check
      _
    $region7: #{gru_network_forward.1} parent=1 // pred_check_branch
      %23 = sbr.rel (0) target = $region9
    $region8: #{gru_network_forward.1} parent=1 // pred_region
      _
    $region9: #{gru_network_forward.1} parent=1 // pred_fallthru
      _
    // Predicated region
    $region10: #{gru_network_forward.1} parent=1 // pred_check
      _
    $region11: #{gru_network_forward.1} parent=1 // pred_check_branch
      %25 = sbr.rel (0) target = $region13
    $region12: #{gru_network_forward.1} parent=1 // pred_region
      _
    $region13: #{gru_network_forward.1} parent=1 // pred_fallthru
      _
    // Predicated region
    $region14: #{gru_network_forward.1} parent=1 // pred_check
      _
    $region15: #{gru_network_forward.1} parent=1 // pred_check_branch
      %27 = sbr.rel (0) target = $region17
    $region16: #{gru_network_forward.1} parent=1 // pred_region
      _
    $region17: #{gru_network_forward.1} parent=1 // pred_fallthru
      _
    // Predicated region
    $region18: #{gru_network_forward.1} parent=1 // pred_check
      _
    $region19: #{gru_network_forward.1} parent=1 // pred_check_branch
      %29 = sbr.rel (0) target = $region21
    $region20: #{gru_network_forward.1} parent=1 // pred_region
      _
    $region21: #{gru_network_forward.1} parent=1 // pred_fallthru
      _
    // Predicated region
    $region22: #{gru_network_forward.1} parent=1 // pred_check
      _
    $region23: #{gru_network_forward.1} parent=1 // pred_check_branch
      %31 = sbr.rel (0) target = $region25
    $region24: #{gru_network_forward.1} parent=1 // pred_region
      _
    $region25: #{gru_network_forward.1} parent=1 // pred_fallthru
      _
    // Predicated region
    $region26: #{gru_network_forward.1} parent=1 // pred_check
      _
    $region27: #{gru_network_forward.1} parent=1 // pred_check_branch
      %33 = sbr.rel (0) target = $region29
    $region28: #{gru_network_forward.1} parent=1 // pred_region
      _
    $region29: #{gru_network_forward.1} parent=1 // pred_fallthru
      _
    // Predicated region
    $region30: #{gru_network_forward.1} parent=1 // pred_check
      _
    $region31: #{gru_network_forward.1} parent=1 // pred_check_branch
      %35 = sbr.rel (0) target = $region33
    $region32: #{gru_network_forward.1} parent=1 // pred_region
      _
    $region33: #{gru_network_forward.1} parent=1 // pred_fallthru
      _
    // Predicated region
    $region34: #{gru_network_forward.1} parent=1 // pred_check
      _
    $region35: #{gru_network_forward.1} parent=1 // pred_check_branch
      %37 = sbr.rel (0) target = $region37
    $region36: #{gru_network_forward.1} parent=1 // pred_region
      _
    $region37: #{gru_network_forward.1} parent=1 // pred_fallthru
      _
    // Predicated region
    $region38: #{gru_network_forward.1} parent=1 // pred_check
      _
    $region39: #{gru_network_forward.1} parent=1 // pred_check_branch
      %39 = sbr.rel (0) target = $region41
    $region40: #{gru_network_forward.1} parent=1 // pred_region
      _
    $region41: #{gru_network_forward.1} parent=1 // pred_fallthru
      _
    // Predicated region
    $region42: #{gru_network_forward.1} parent=1 // pred_check
      _
    $region43: #{gru_network_forward.1} parent=1 // pred_check_branch
      %41 = sbr.rel (0) target = $region45
    $region44: #{gru_network_forward.1} parent=1 // pred_region
      _
    $region45: #{gru_network_forward.1} parent=1 // pred_fallthru
      _
    // Predicated region
    $region46: #{gru_network_forward.1} parent=1 // pred_check
      _
    $region47: #{gru_network_forward.1} parent=1 // pred_check_branch
      %43 = sbr.rel (0) target = $region49
    $region48: #{gru_network_forward.1} parent=1 // pred_region
      _
    $region49: #{gru_network_forward.1} parent=1 // pred_fallthru
      _
    %v44 = vld [vmem:[%s0] sm:$0xff]
    %v45 = vld [vmem:[%s0 + $0x8] sm:$0xff]
    %v46 = vld [vmem:[%s0 + $0x10] sm:$0xff]
    %v47 = vld [vmem:[%s0 + $0x18] sm:$0xff]
    %v48 = vld [vmem:[%s0 + $0x20] sm:$0xff]
    %v49 = vld [vmem:[%s0 + $0x28] sm:$0xff]
    %v50 = vld [vmem:[%s0 + $0x30] sm:$0xff]
    %v51 = vld [vmem:[%s0 + $0x38] sm:$0xff]
    %v52 = vld [vmem:[%s1] sm:$0x7f]
    %v53 = vld [vmem:[%s3] sm:$0x1]
    %v55 = vlaneseq
    %v56 = vshrl.u32 %v55, 7
    %v57 = vsub.s32 0, %v56
    %v58 = vrot.slane %v53, %v57
    %vm60 = vcmask 56320
    %v62 = vsel %vm60, %v44, 0
    %v65 = vsel %vm60, %v45, 0
    %v68 = vsel %vm60, %v46, 0
    %v71 = vsel %vm60, %v47, 0
    %v74 = vsel %vm60, %v48, 0
    %v77 = vsel %vm60, %v49, 0
    %v80 = vsel %vm60, %v50, 0
    %v83 = vsel %vm60, %v51, 0
    %vm85 = vcmask 1046528
    %v87 = vsel %vm85, %v52, 0
    %89 = vmatprep.subr.mxu0 0.0
    %90 = vmatpush1.msra.mxu0 %v87
    %91 = vmatprep.subr.mxu0 0.0
    %92 = vmatpush1.msra.mxu0 0.0
    %93 = vmatprep.subr.mxu0 0.0
    %94 = vmatpush1.msra.mxu0 0.0
    %95 = vmatprep.subr.mxu0 0.0
    %96 = vmatpush1.msra.mxu0 0.0
    %97 = vmatprep.subr.mxu0 0.0
    %98 = vmatpush1.msra.mxu0 0.0
    %99 = vmatprep.subr.mxu0 0.0
    %100 = vmatpush1.msra.mxu0 0.0
    %101 = vmatprep.subr.mxu0 0.0
    %102 = vmatpush1.msra.mxu0 0.0
    %103 = vmatprep.subr.mxu0 0.0
    %104 = vmatpush1.msra.mxu0 0.0
    %105 = vmatprep.subr.mxu0 0.0
    %106 = vmatpush1.msra.mxu0 0.0
    %107 = vmatprep.subr.mxu0 0.0
    %108 = vmatpush1.msra.mxu0 0.0
    %109 = vmatprep.subr.mxu0 0.0
    %110 = vmatpush1.msra.mxu0 0.0
    %111 = vmatprep.subr.mxu0 0.0
    %112 = vmatpush1.msra.mxu0 0.0
    %113 = vmatprep.subr.mxu0 0.0
    %114 = vmatpush1.msra.mxu0 0.0
    %115 = vmatprep.subr.mxu0 0.0
    %116 = vmatpush1.msra.mxu0 0.0
    %117 = vmatprep.subr.mxu0 0.0
    %118 = vmatpush1.msra.mxu0 0.0
    %119 = vmatprep.subr.mxu0 0.0
    %120 = vmatpush1.msra.mxu0 0.0
    %121 = vmatprep.subr.mxu0 0.0
    %122 = vmatpush1.msra.mxu0 0.0
    %123 = vmatprep.subr.mxu0 0.0
    %124 = vmatpush1.msra.mxu0 0.0
    %125 = vmatprep.subr.mxu0 0.0
    %126 = vmatpush1.msra.mxu0 0.0
    %127 = vmatprep.subr.mxu0 0.0
    %128 = vmatpush1.msra.mxu0 0.0
    %129 = vmatprep.subr.mxu0 0.0
    %130 = vmatpush1.msra.mxu0 0.0
    %131 = vmatprep.subr.mxu0 0.0
    %132 = vmatpush1.msra.mxu0 0.0
    %133 = vmatprep.subr.mxu0 0.0
    %134 = vmatpush1.msra.mxu0 0.0
    %135 = vmatprep.subr.mxu0 0.0
    %136 = vmatpush1.msra.mxu0 0.0
    %137 = vmatprep.subr.mxu0 0.0
    %138 = vmatpush1.msra.mxu0 0.0
    %139 = vmatprep.subr.mxu0 0.0
    %140 = vmatpush1.msra.mxu0 0.0
    %141 = vmatprep.subr.mxu0 0.0
    %142 = vmatpush1.msra.mxu0 0.0
    %143 = vmatprep.subr.mxu0 0.0
    %144 = vmatpush1.msra.mxu0 0.0
    %145 = vmatprep.subr.mxu0 0.0
    %146 = vmatpush1.msra.mxu0 0.0
    %147 = vmatprep.subr.mxu0 0.0
    %148 = vmatpush1.msra.mxu0 0.0
    %149 = vmatprep.subr.mxu0 0.0
    %150 = vmatpush1.msra.mxu0 0.0
    %151 = vmatprep.subr.mxu0 0.0
    %152 = vmatpush1.msra.mxu0 0.0
    %153 = vmatprep.mubr.f32.mxu0 0.0
    %154 = vmatmul.mubr.f32.gmra.mrb[0].mxu0 %v62
    %v155 = vpop.f32.mrb[0].mxu0
    %v156 = vadd.f32 %v58, %v155
    %v157 = vpop.f32.mrb[0].mxu0
    %158 = vmatprep.mubr.f32.mxu0 0.0
    %159 = vmatmul.mubr.f32.gmra.mrb[0].mxu0 %v65
    %v160 = vpop.f32.mrb[0].mxu0
    %v161 = vadd.f32 %v58, %v160
    %v162 = vpop.f32.mrb[0].mxu0
    %163 = vmatprep.mubr.f32.mxu0 0.0
    %164 = vmatmul.mubr.f32.gmra.mrb[0].mxu0 %v68
    %v165 = vpop.f32.mrb[0].mxu0
    %v166 = vadd.f32 %v58, %v165
    %v167 = vpop.f32.mrb[0].mxu0
    %168 = vmatprep.mubr.f32.mxu0 0.0
    %169 = vmatmul.mubr.f32.gmra.mrb[0].mxu0 %v71
    %v170 = vpop.f32.mrb[0].mxu0
    %v171 = vadd.f32 %v58, %v170
    %v172 = vpop.f32.mrb[0].mxu0
    %173 = vmatprep.mubr.f32.mxu0 0.0
    %174 = vmatmul.mubr.f32.gmra.mrb[0].mxu0 %v74
    %v175 = vpop.f32.mrb[0].mxu0
    %v176 = vadd.f32 %v58, %v175
    %v177 = vpop.f32.mrb[0].mxu0
    %178 = vmatprep.mubr.f32.mxu0 0.0
    %179 = vmatmul.mubr.f32.gmra.mrb[0].mxu0 %v77
    %v180 = vpop.f32.mrb[0].mxu0
    %v181 = vadd.f32 %v58, %v180
    %v182 = vpop.f32.mrb[0].mxu0
    %183 = vmatprep.mubr.f32.mxu0 0.0
    %184 = vmatmul.mubr.f32.gmra.mrb[0].mxu0 %v80
    %v185 = vpop.f32.mrb[0].mxu0
    %v186 = vadd.f32 %v58, %v185
    %v187 = vpop.f32.mrb[0].mxu0
    %188 = vmatprep.mubr.f32.mxu0 0.0
    %189 = vmatmul.mubr.f32.gmra.mrb[0].mxu0 %v83
    %v190 = vpop.f32.mrb[0].mxu0
    %v191 = vadd.f32 %v58, %v190
    %v192 = vpop.f32.mrb[0].mxu0
    %193 = vdwg.mxu0
    %194 = vst [vmem:[#allocation2] sm:$0xff] %v156
    %195 = vst [vmem:[#allocation2 + $0x8] sm:$0xff] %v161
    %196 = vst [vmem:[#allocation2 + $0x10] sm:$0xff] %v166
    %197 = vst [vmem:[#allocation2 + $0x18] sm:$0xff] %v171
    %198 = vst [vmem:[#allocation2 + $0x20] sm:$0xff] %v176
    %199 = vst [vmem:[#allocation2 + $0x28] sm:$0xff] %v181
    %200 = vst [vmem:[#allocation2 + $0x30] sm:$0xff] %v186
    %201 = vst [vmem:[#allocation2 + $0x38] sm:$0xff] %v191
    %v202 = vld [vmem:[%s2] sm:$0xff]
    %v203 = vld [vmem:[%s2 + $0x8] sm:$0xff]
    %v204 = vld [vmem:[%s2 + $0x10] sm:$0xff]
    %v205 = vld [vmem:[%s2 + $0x18] sm:$0xff]
    %v206 = vld [vmem:[%s4] sm:$0x1]
    %v207 = vld [vmem:[%s9] sm:$0xff]
    %v208 = vld [vmem:[#allocation2] sm:$0xff]
    %v210 = vlaneseq
    %v211 = vshrl.u32 %v210, 7
    %v212 = vsub.s32 0, %v211
    %v213 = vrot.slane %v206, %v212
    %vm215 = vcmask 261120
    %v217 = vsel %vm215, %v207, 0
    %219 = vmatprep.subr.mxu0 0.0
    %220 = vmatpush1.msra.mxu0 %v202
    %221 = vmatprep.subr.mxu0 0.0
    %222 = vmatpush1.msra.mxu0 %v203
    %223 = vmatprep.subr.mxu0 0.0
    %224 = vmatpush1.msra.mxu0 %v204
    %225 = vmatprep.subr.mxu0 0.0
    %226 = vmatpush1.msra.mxu0 %v205
    %227 = vmatprep.subr.mxu0 0.0
    %228 = vmatpush1.msra.mxu0 0.0
    %229 = vmatprep.subr.mxu0 0.0
    %230 = vmatpush1.msra.mxu0 0.0
    %231 = vmatprep.subr.mxu0 0.0
    %232 = vmatpush1.msra.mxu0 0.0
    %233 = vmatprep.subr.mxu0 0.0
    %234 = vmatpush1.msra.mxu0 0.0
    %235 = vmatprep.subr.mxu0 0.0
    %236 = vmatpush1.msra.mxu0 0.0
    %237 = vmatprep.subr.mxu0 0.0
    %238 = vmatpush1.msra.mxu0 0.0
    %239 = vmatprep.subr.mxu0 0.0
    %240 = vmatpush1.msra.mxu0 0.0
    %241 = vmatprep.subr.mxu0 0.0
    %242 = vmatpush1.msra.mxu0 0.0
    %243 = vmatprep.subr.mxu0 0.0
    %244 = vmatpush1.msra.mxu0 0.0
    %245 = vmatprep.subr.mxu0 0.0
    %246 = vmatpush1.msra.mxu0 0.0
    %247 = vmatprep.subr.mxu0 0.0
    %248 = vmatpush1.msra.mxu0 0.0
    %249 = vmatprep.subr.mxu0 0.0
    %250 = vmatpush1.msra.mxu0 0.0
    %251 = vmatprep.subr.mxu0 0.0
    %252 = vmatpush1.msra.mxu0 0.0
    %253 = vmatprep.subr.mxu0 0.0
    %254 = vmatpush1.msra.mxu0 0.0
    %255 = vmatprep.subr.mxu0 0.0
    %256 = vmatpush1.msra.mxu0 0.0
    %257 = vmatprep.subr.mxu0 0.0
    %258 = vmatpush1.msra.mxu0 0.0
    %259 = vmatprep.subr.mxu0 0.0
    %260 = vmatpush1.msra.mxu0 0.0
    %261 = vmatprep.subr.mxu0 0.0
    %262 = vmatpush1.msra.mxu0 0.0
    %263 = vmatprep.subr.mxu0 0.0
    %264 = vmatpush1.msra.mxu0 0.0
    %265 = vmatprep.subr.mxu0 0.0
    %266 = vmatpush1.msra.mxu0 0.0
    %267 = vmatprep.subr.mxu0 0.0
    %268 = vmatpush1.msra.mxu0 0.0
    %269 = vmatprep.subr.mxu0 0.0
    %270 = vmatpush1.msra.mxu0 0.0
    %271 = vmatprep.subr.mxu0 0.0
    %272 = vmatpush1.msra.mxu0 0.0
    %273 = vmatprep.subr.mxu0 0.0
    %274 = vmatpush1.msra.mxu0 0.0
    %275 = vmatprep.subr.mxu0 0.0
    %276 = vmatpush1.msra.mxu0 0.0
    %277 = vmatprep.subr.mxu0 0.0
    %278 = vmatpush1.msra.mxu0 0.0
    %279 = vmatprep.subr.mxu0 0.0
    %280 = vmatpush1.msra.mxu0 0.0
    %281 = vmatprep.subr.mxu0 0.0
    %282 = vmatpush1.msra.mxu0 0.0
    %283 = vmatprep.mubr.f32.mxu0 0.0
    %284 = vmatmul.mubr.f32.gmra.mrb[0].mxu0 %v217
    %v285 = vpop.f32.mrb[0].mxu0
    %v286 = vadd.f32 %v213, %v285
    %v287 = vpop.f32.mrb[0].mxu0
    %288 = vdwg.mxu0
    %v289 = vadd.f32 %v208, %v286
    %v290 = vxor.u32 %v289, 2147483648
    %v291 = vmul.f32 %v290, 1.442695
    %v292 = vpow.pop %v291
    %v293 = vadd.f32 %v292, 1.0
    %v294 = vrcp.pop %v293
    %v295 = vmul.f32 1.0, %v294
    %297 = vrot.lane.b32.xlu0 %v286, 64
    %v298 = vpop.permute.xlu0 %297
    %v300 = vmul.f32 %v295, %v298
    %302 = vrot.lane.b32.xlu0 %v300, 64
    %v303 = vpop.permute.xlu0 %302
    %v305 = vadd.f32 %v208, %v303
    %v306 = vtanh.pop %v305
    %v307 = vsub.f32 1.0, %v295
    %309 = vrot.lane.b32.xlu0 %v306, 96
    %v310 = vpop.permute.xlu0 %309
    %v312 = vmul.f32 %v307, %v310
    %313 = vrot.lane.b32.xlu0 %v207, 32
    %v314 = vpop.permute.xlu0 %313
    %v316 = vmul.f32 %v295, %v314
    %v317 = vadd.f32 %v312, %v316
    %319 = vrot.lane.b32.xlu0 %v317, 96
    %v320 = vpop.permute.xlu0 %319
    %322 = vst.msk [vmem:[#allocation3] sm:$0xff] %vm215, %v320
    %s323 = scalar_lea.vmem [#allocation2], 8
    %v324 = vld [vmem:[%s323] sm:$0xff]
    %v325 = vsel %vm215, %v320, 0
    %327 = vmatprep.subr.mxu0 0.0
    %328 = vmatpush1.msra.mxu0 %v202
    %329 = vmatprep.subr.mxu0 0.0
    %330 = vmatpush1.msra.mxu0 %v203
    %331 = vmatprep.subr.mxu0 0.0
    %332 = vmatpush1.msra.mxu0 %v204
    %333 = vmatprep.subr.mxu0 0.0
    %334 = vmatpush1.msra.mxu0 %v205
    %335 = vmatprep.subr.mxu0 0.0
    %336 = vmatpush1.msra.mxu0 0.0
    %337 = vmatprep.subr.mxu0 0.0
    %338 = vmatpush1.msra.mxu0 0.0
    %339 = vmatprep.subr.mxu0 0.0
    %340 = vmatpush1.msra.mxu0 0.0
    %341 = vmatprep.subr.mxu0 0.0
    %342 = vmatpush1.msra.mxu0 0.0
    %343 = vmatprep.subr.mxu0 0.0
    %344 = vmatpush1.msra.mxu0 0.0
    %345 = vmatprep.subr.mxu0 0.0
    %346 = vmatpush1.msra.mxu0 0.0
    %347 = vmatprep.subr.mxu0 0.0
    %348 = vmatpush1.msra.mxu0 0.0
    %349 = vmatprep.subr.mxu0 0.0
    %350 = vmatpush1.msra.mxu0 0.0
    %351 = vmatprep.subr.mxu0 0.0
    %352 = vmatpush1.msra.mxu0 0.0
    %353 = vmatprep.subr.mxu0 0.0
    %354 = vmatpush1.msra.mxu0 0.0
    %355 = vmatprep.subr.mxu0 0.0
    %356 = vmatpush1.msra.mxu0 0.0
    %357 = vmatprep.subr.mxu0 0.0
    %358 = vmatpush1.msra.mxu0 0.0
    %359 = vmatprep.subr.mxu0 0.0
    %360 = vmatpush1.msra.mxu0 0.0
    %361 = vmatprep.subr.mxu0 0.0
    %362 = vmatpush1.msra.mxu0 0.0
    %363 = vmatprep.subr.mxu0 0.0
    %364 = vmatpush1.msra.mxu0 0.0
    %365 = vmatprep.subr.mxu0 0.0
    %366 = vmatpush1.msra.mxu0 0.0
    %367 = vmatprep.subr.mxu0 0.0
    %368 = vmatpush1.msra.mxu0 0.0
    %369 = vmatprep.subr.mxu0 0.0
    %370 = vmatpush1.msra.mxu0 0.0
    %371 = vmatprep.subr.mxu0 0.0
    %372 = vmatpush1.msra.mxu0 0.0
    %373 = vmatprep.subr.mxu0 0.0
    %374 = vmatpush1.msra.mxu0 0.0
    %375 = vmatprep.subr.mxu0 0.0
    %376 = vmatpush1.msra.mxu0 0.0
    %377 = vmatprep.subr.mxu0 0.0
    %378 = vmatpush1.msra.mxu0 0.0
    %379 = vmatprep.subr.mxu0 0.0
    %380 = vmatpush1.msra.mxu0 0.0
    %381 = vmatprep.subr.mxu0 0.0
    %382 = vmatpush1.msra.mxu0 0.0
    %383 = vmatprep.subr.mxu0 0.0
    %384 = vmatpush1.msra.mxu0 0.0
    %385 = vmatprep.subr.mxu0 0.0
    %386 = vmatpush1.msra.mxu0 0.0
    %387 = vmatprep.subr.mxu0 0.0
    %388 = vmatpush1.msra.mxu0 0.0
    %389 = vmatprep.subr.mxu0 0.0
    %390 = vmatpush1.msra.mxu0 0.0
    %391 = vmatprep.mubr.f32.mxu0 0.0
    %392 = vmatmul.mubr.f32.gmra.mrb[0].mxu0 %v325
    %v393 = vpop.f32.mrb[0].mxu0
    %v394 = vadd.f32 %v213, %v393
    %v395 = vpop.f32.mrb[0].mxu0
    %396 = vdwg.mxu0
    %v397 = vadd.f32 %v324, %v394
    %v398 = vxor.u32 %v397, 2147483648
    %v399 = vmul.f32 %v398, 1.442695
    %v400 = vpow.pop %v399
    %v401 = vadd.f32 %v400, 1.0
    %v402 = vrcp.pop %v401
    %v403 = vmul.f32 1.0, %v402
    %405 = vrot.lane.b32.xlu0 %v394, 64
    %v406 = vpop.permute.xlu0 %405
    %v408 = vmul.f32 %v403, %v406
    %410 = vrot.lane.b32.xlu0 %v408, 64
    %v411 = vpop.permute.xlu0 %410
    %v413 = vadd.f32 %v324, %v411
    %v414 = vtanh.pop %v413
    %v415 = vsub.f32 1.0, %v403
    %417 = vrot.lane.b32.xlu0 %v414, 96
    %v418 = vpop.permute.xlu0 %417
    %v420 = vmul.f32 %v415, %v418
    %v421 = vmul.f32 %v403, %v317
    %v422 = vadd.f32 %v420, %v421
    %424 = vrot.lane.b32.xlu0 %v422, 96
    %v425 = vpop.permute.xlu0 %424
    %s427 = scalar_lea.vmem [#allocation3], 8
    %428 = vst.msk [vmem:[%s427] sm:$0xff] %vm215, %v425
    %s429 = scalar_lea.vmem [#allocation2], 16
    %v430 = vld [vmem:[%s429] sm:$0xff]
    %v431 = vsel %vm215, %v425, 0
    %433 = vmatprep.subr.mxu0 0.0
    %434 = vmatpush1.msra.mxu0 %v202
    %435 = vmatprep.subr.mxu0 0.0
    %436 = vmatpush1.msra.mxu0 %v203
    %437 = vmatprep.subr.mxu0 0.0
    %438 = vmatpush1.msra.mxu0 %v204
    %439 = vmatprep.subr.mxu0 0.0
    %440 = vmatpush1.msra.mxu0 %v205
    %441 = vmatprep.subr.mxu0 0.0
    %442 = vmatpush1.msra.mxu0 0.0
    %443 = vmatprep.subr.mxu0 0.0
    %444 = vmatpush1.msra.mxu0 0.0
    %445 = vmatprep.subr.mxu0 0.0
    %446 = vmatpush1.msra.mxu0 0.0
    %447 = vmatprep.subr.mxu0 0.0
    %448 = vmatpush1.msra.mxu0 0.0
    %449 = vmatprep.subr.mxu0 0.0
    %450 = vmatpush1.msra.mxu0 0.0
    %451 = vmatprep.subr.mxu0 0.0
    %452 = vmatpush1.msra.mxu0 0.0
    %453 = vmatprep.subr.mxu0 0.0
    %454 = vmatpush1.msra.mxu0 0.0
    %455 = vmatprep.subr.mxu0 0.0
    %456 = vmatpush1.msra.mxu0 0.0
    %457 = vmatprep.subr.mxu0 0.0
    %458 = vmatpush1.msra.mxu0 0.0
    %459 = vmatprep.subr.mxu0 0.0
    %460 = vmatpush1.msra.mxu0 0.0
    %461 = vmatprep.subr.mxu0 0.0
    %462 = vmatpush1.msra.mxu0 0.0
    %463 = vmatprep.subr.mxu0 0.0
    %464 = vmatpush1.msra.mxu0 0.0
    %465 = vmatprep.subr.mxu0 0.0
    %466 = vmatpush1.msra.mxu0 0.0
    %467 = vmatprep.subr.mxu0 0.0
    %468 = vmatpush1.msra.mxu0 0.0
    %469 = vmatprep.subr.mxu0 0.0
    %470 = vmatpush1.msra.mxu0 0.0
    %471 = vmatprep.subr.mxu0 0.0
    %472 = vmatpush1.msra.mxu0 0.0
    %473 = vmatprep.subr.mxu0 0.0
    %474 = vmatpush1.msra.mxu0 0.0
    %475 = vmatprep.subr.mxu0 0.0
    %476 = vmatpush1.msra.mxu0 0.0
    %477 = vmatprep.subr.mxu0 0.0
    %478 = vmatpush1.msra.mxu0 0.0
    %479 = vmatprep.subr.mxu0 0.0
    %480 = vmatpush1.msra.mxu0 0.0
    %481 = vmatprep.subr.mxu0 0.0
    %482 = vmatpush1.msra.mxu0 0.0
    %483 = vmatprep.subr.mxu0 0.0
    %484 = vmatpush1.msra.mxu0 0.0
    %485 = vmatprep.subr.mxu0 0.0
    %486 = vmatpush1.msra.mxu0 0.0
    %487 = vmatprep.subr.mxu0 0.0
    %488 = vmatpush1.msra.mxu0 0.0
    %489 = vmatprep.subr.mxu0 0.0
    %490 = vmatpush1.msra.mxu0 0.0
    %491 = vmatprep.subr.mxu0 0.0
    %492 = vmatpush1.msra.mxu0 0.0
    %493 = vmatprep.subr.mxu0 0.0
    %494 = vmatpush1.msra.mxu0 0.0
    %495 = vmatprep.subr.mxu0 0.0
    %496 = vmatpush1.msra.mxu0 0.0
    %497 = vmatprep.mubr.f32.mxu0 0.0
    %498 = vmatmul.mubr.f32.gmra.mrb[0].mxu0 %v431
    %v499 = vpop.f32.mrb[0].mxu0
    %v500 = vadd.f32 %v213, %v499
    %v501 = vpop.f32.mrb[0].mxu0
    %502 = vdwg.mxu0
    %v503 = vadd.f32 %v430, %v500
    %v504 = vxor.u32 %v503, 2147483648
    %v505 = vmul.f32 %v504, 1.442695
    %v506 = vpow.pop %v505
    %v507 = vadd.f32 %v506, 1.0
    %v508 = vrcp.pop %v507
    %v509 = vmul.f32 1.0, %v508
    %511 = vrot.lane.b32.xlu0 %v500, 64
    %v512 = vpop.permute.xlu0 %511
    %v514 = vmul.f32 %v509, %v512
    %516 = vrot.lane.b32.xlu0 %v514, 64
    %v517 = vpop.permute.xlu0 %516
    %v519 = vadd.f32 %v430, %v517
    %v520 = vtanh.pop %v519
    %v521 = vsub.f32 1.0, %v509
    %523 = vrot.lane.b32.xlu0 %v520, 96
    %v524 = vpop.permute.xlu0 %523
    %v526 = vmul.f32 %v521, %v524
    %v527 = vmul.f32 %v509, %v422
    %v528 = vadd.f32 %v526, %v527
    %530 = vrot.lane.b32.xlu0 %v528, 96
    %v531 = vpop.permute.xlu0 %530
    %s533 = scalar_lea.vmem [#allocation3], 16
    %534 = vst.msk [vmem:[%s533] sm:$0xff] %vm215, %v531
    %s535 = scalar_lea.vmem [#allocation2], 24
    %v536 = vld [vmem:[%s535] sm:$0xff]
    %v537 = vsel %vm215, %v531, 0
    %539 = vmatprep.subr.mxu0 0.0
    %540 = vmatpush1.msra.mxu0 %v202
    %541 = vmatprep.subr.mxu0 0.0
    %542 = vmatpush1.msra.mxu0 %v203
    %543 = vmatprep.subr.mxu0 0.0
    %544 = vmatpush1.msra.mxu0 %v204
    %545 = vmatprep.subr.mxu0 0.0
    %546 = vmatpush1.msra.mxu0 %v205
    %547 = vmatprep.subr.mxu0 0.0
    %548 = vmatpush1.msra.mxu0 0.0
    %549 = vmatprep.subr.mxu0 0.0
    %550 = vmatpush1.msra.mxu0 0.0
    %551 = vmatprep.subr.mxu0 0.0
    %552 = vmatpush1.msra.mxu0 0.0
    %553 = vmatprep.subr.mxu0 0.0
    %554 = vmatpush1.msra.mxu0 0.0
    %555 = vmatprep.subr.mxu0 0.0
    %556 = vmatpush1.msra.mxu0 0.0
    %557 = vmatprep.subr.mxu0 0.0
    %558 = vmatpush1.msra.mxu0 0.0
    %559 = vmatprep.subr.mxu0 0.0
    %560 = vmatpush1.msra.mxu0 0.0
    %561 = vmatprep.subr.mxu0 0.0
    %562 = vmatpush1.msra.mxu0 0.0
    %563 = vmatprep.subr.mxu0 0.0
    %564 = vmatpush1.msra.mxu0 0.0
    %565 = vmatprep.subr.mxu0 0.0
    %566 = vmatpush1.msra.mxu0 0.0
    %567 = vmatprep.subr.mxu0 0.0
    %568 = vmatpush1.msra.mxu0 0.0
    %569 = vmatprep.subr.mxu0 0.0
    %570 = vmatpush1.msra.mxu0 0.0
    %571 = vmatprep.subr.mxu0 0.0
    %572 = vmatpush1.msra.mxu0 0.0
    %573 = vmatprep.subr.mxu0 0.0
    %574 = vmatpush1.msra.mxu0 0.0
    %575 = vmatprep.subr.mxu0 0.0
    %576 = vmatpush1.msra.mxu0 0.0
    %577 = vmatprep.subr.mxu0 0.0
    %578 = vmatpush1.msra.mxu0 0.0
    %579 = vmatprep.subr.mxu0 0.0
    %580 = vmatpush1.msra.mxu0 0.0
    %581 = vmatprep.subr.mxu0 0.0
    %582 = vmatpush1.msra.mxu0 0.0
    %583 = vmatprep.subr.mxu0 0.0
    %584 = vmatpush1.msra.mxu0 0.0
    %585 = vmatprep.subr.mxu0 0.0
    %586 = vmatpush1.msra.mxu0 0.0
    %587 = vmatprep.subr.mxu0 0.0
    %588 = vmatpush1.msra.mxu0 0.0
    %589 = vmatprep.subr.mxu0 0.0
    %590 = vmatpush1.msra.mxu0 0.0
    %591 = vmatprep.subr.mxu0 0.0
    %592 = vmatpush1.msra.mxu0 0.0
    %593 = vmatprep.subr.mxu0 0.0
    %594 = vmatpush1.msra.mxu0 0.0
    %595 = vmatprep.subr.mxu0 0.0
    %596 = vmatpush1.msra.mxu0 0.0
    %597 = vmatprep.subr.mxu0 0.0
    %598 = vmatpush1.msra.mxu0 0.0
    %599 = vmatprep.subr.mxu0 0.0
    %600 = vmatpush1.msra.mxu0 0.0
    %601 = vmatprep.subr.mxu0 0.0
    %602 = vmatpush1.msra.mxu0 0.0
    %603 = vmatprep.mubr.f32.mxu0 0.0
    %604 = vmatmul.mubr.f32.gmra.mrb[0].mxu0 %v537
    %v605 = vpop.f32.mrb[0].mxu0
    %v606 = vadd.f32 %v213, %v605
    %v607 = vpop.f32.mrb[0].mxu0
    %608 = vdwg.mxu0
    %v609 = vadd.f32 %v536, %v606
    %v610 = vxor.u32 %v609, 2147483648
    %v611 = vmul.f32 %v610, 1.442695
    %v612 = vpow.pop %v611
    %v613 = vadd.f32 %v612, 1.0
    %v614 = vrcp.pop %v613
    %v615 = vmul.f32 1.0, %v614
    %617 = vrot.lane.b32.xlu0 %v606, 64
    %v618 = vpop.permute.xlu0 %617
    %v620 = vmul.f32 %v615, %v618
    %622 = vrot.lane.b32.xlu0 %v620, 64
    %v623 = vpop.permute.xlu0 %622
    %v625 = vadd.f32 %v536, %v623
    %v626 = vtanh.pop %v625
    %v627 = vsub.f32 1.0, %v615
    %629 = vrot.lane.b32.xlu0 %v626, 96
    %v630 = vpop.permute.xlu0 %629
    %v632 = vmul.f32 %v627, %v630
    %v633 = vmul.f32 %v615, %v528
    %v634 = vadd.f32 %v632, %v633
    %636 = vrot.lane.b32.xlu0 %v634, 96
    %v637 = vpop.permute.xlu0 %636
    %s639 = scalar_lea.vmem [#allocation3], 24
    %640 = vst.msk [vmem:[%s639] sm:$0xff] %vm215, %v637
    %s641 = scalar_lea.vmem [#allocation2], 32
    %v642 = vld [vmem:[%s641] sm:$0xff]
    %v643 = vsel %vm215, %v637, 0
    %645 = vmatprep.subr.mxu0 0.0
    %646 = vmatpush1.msra.mxu0 %v202
    %647 = vmatprep.subr.mxu0 0.0
    %648 = vmatpush1.msra.mxu0 %v203
    %649 = vmatprep.subr.mxu0 0.0
    %650 = vmatpush1.msra.mxu0 %v204
    %651 = vmatprep.subr.mxu0 0.0
    %652 = vmatpush1.msra.mxu0 %v205
    %653 = vmatprep.subr.mxu0 0.0
    %654 = vmatpush1.msra.mxu0 0.0
    %655 = vmatprep.subr.mxu0 0.0
    %656 = vmatpush1.msra.mxu0 0.0
    %657 = vmatprep.subr.mxu0 0.0
    %658 = vmatpush1.msra.mxu0 0.0
    %659 = vmatprep.subr.mxu0 0.0
    %660 = vmatpush1.msra.mxu0 0.0
    %661 = vmatprep.subr.mxu0 0.0
    %662 = vmatpush1.msra.mxu0 0.0
    %663 = vmatprep.subr.mxu0 0.0
    %664 = vmatpush1.msra.mxu0 0.0
    %665 = vmatprep.subr.mxu0 0.0
    %666 = vmatpush1.msra.mxu0 0.0
    %667 = vmatprep.subr.mxu0 0.0
    %668 = vmatpush1.msra.mxu0 0.0
    %669 = vmatprep.subr.mxu0 0.0
    %670 = vmatpush1.msra.mxu0 0.0
    %671 = vmatprep.subr.mxu0 0.0
    %672 = vmatpush1.msra.mxu0 0.0
    %673 = vmatprep.subr.mxu0 0.0
    %674 = vmatpush1.msra.mxu0 0.0
    %675 = vmatprep.subr.mxu0 0.0
    %676 = vmatpush1.msra.mxu0 0.0
    %677 = vmatprep.subr.mxu0 0.0
    %678 = vmatpush1.msra.mxu0 0.0
    %679 = vmatprep.subr.mxu0 0.0
    %680 = vmatpush1.msra.mxu0 0.0
    %681 = vmatprep.subr.mxu0 0.0
    %682 = vmatpush1.msra.mxu0 0.0
    %683 = vmatprep.subr.mxu0 0.0
    %684 = vmatpush1.msra.mxu0 0.0
    %685 = vmatprep.subr.mxu0 0.0
    %686 = vmatpush1.msra.mxu0 0.0
    %687 = vmatprep.subr.mxu0 0.0
    %688 = vmatpush1.msra.mxu0 0.0
    %689 = vmatprep.subr.mxu0 0.0
    %690 = vmatpush1.msra.mxu0 0.0
    %691 = vmatprep.subr.mxu0 0.0
    %692 = vmatpush1.msra.mxu0 0.0
    %693 = vmatprep.subr.mxu0 0.0
    %694 = vmatpush1.msra.mxu0 0.0
    %695 = vmatprep.subr.mxu0 0.0
    %696 = vmatpush1.msra.mxu0 0.0
    %697 = vmatprep.subr.mxu0 0.0
    %698 = vmatpush1.msra.mxu0 0.0
    %699 = vmatprep.subr.mxu0 0.0
    %700 = vmatpush1.msra.mxu0 0.0
    %701 = vmatprep.subr.mxu0 0.0
    %702 = vmatpush1.msra.mxu0 0.0
    %703 = vmatprep.subr.mxu0 0.0
    %704 = vmatpush1.msra.mxu0 0.0
    %705 = vmatprep.subr.mxu0 0.0
    %706 = vmatpush1.msra.mxu0 0.0
    %707 = vmatprep.subr.mxu0 0.0
    %708 = vmatpush1.msra.mxu0 0.0
    %709 = vmatprep.mubr.f32.mxu0 0.0
    %710 = vmatmul.mubr.f32.gmra.mrb[0].mxu0 %v643
    %v711 = vpop.f32.mrb[0].mxu0
    %v712 = vadd.f32 %v213, %v711
    %v713 = vpop.f32.mrb[0].mxu0
    %714 = vdwg.mxu0
    %v715 = vadd.f32 %v642, %v712
    %v716 = vxor.u32 %v715, 2147483648
    %v717 = vmul.f32 %v716, 1.442695
    %v718 = vpow.pop %v717
    %v719 = vadd.f32 %v718, 1.0
    %v720 = vrcp.pop %v719
    %v721 = vmul.f32 1.0, %v720
    %723 = vrot.lane.b32.xlu0 %v712, 64
    %v724 = vpop.permute.xlu0 %723
    %v726 = vmul.f32 %v721, %v724
    %728 = vrot.lane.b32.xlu0 %v726, 64
    %v729 = vpop.permute.xlu0 %728
    %v731 = vadd.f32 %v642, %v729
    %v732 = vtanh.pop %v731
    %v733 = vsub.f32 1.0, %v721
    %735 = vrot.lane.b32.xlu0 %v732, 96
    %v736 = vpop.permute.xlu0 %735
    %v738 = vmul.f32 %v733, %v736
    %v739 = vmul.f32 %v721, %v634
    %v740 = vadd.f32 %v738, %v739
    %742 = vrot.lane.b32.xlu0 %v740, 96
    %v743 = vpop.permute.xlu0 %742
    %s745 = scalar_lea.vmem [#allocation3], 32
    %746 = vst.msk [vmem:[%s745] sm:$0xff] %vm215, %v743
    %s747 = scalar_lea.vmem [#allocation2], 40
    %v748 = vld [vmem:[%s747] sm:$0xff]
    %v749 = vsel %vm215, %v743, 0
    %751 = vmatprep.subr.mxu0 0.0
    %752 = vmatpush1.msra.mxu0 %v202
    %753 = vmatprep.subr.mxu0 0.0
    %754 = vmatpush1.msra.mxu0 %v203
    %755 = vmatprep.subr.mxu0 0.0
    %756 = vmatpush1.msra.mxu0 %v204
    %757 = vmatprep.subr.mxu0 0.0
    %758 = vmatpush1.msra.mxu0 %v205
    %759 = vmatprep.subr.mxu0 0.0
    %760 = vmatpush1.msra.mxu0 0.0
    %761 = vmatprep.subr.mxu0 0.0
    %762 = vmatpush1.msra.mxu0 0.0
    %763 = vmatprep.subr.mxu0 0.0
    %764 = vmatpush1.msra.mxu0 0.0
    %765 = vmatprep.subr.mxu0 0.0
    %766 = vmatpush1.msra.mxu0 0.0
    %767 = vmatprep.subr.mxu0 0.0
    %768 = vmatpush1.msra.mxu0 0.0
    %769 = vmatprep.subr.mxu0 0.0
    %770 = vmatpush1.msra.mxu0 0.0
    %771 = vmatprep.subr.mxu0 0.0
    %772 = vmatpush1.msra.mxu0 0.0
    %773 = vmatprep.subr.mxu0 0.0
    %774 = vmatpush1.msra.mxu0 0.0
    %775 = vmatprep.subr.mxu0 0.0
    %776 = vmatpush1.msra.mxu0 0.0
    %777 = vmatprep.subr.mxu0 0.0
    %778 = vmatpush1.msra.mxu0 0.0
    %779 = vmatprep.subr.mxu0 0.0
    %780 = vmatpush1.msra.mxu0 0.0
    %781 = vmatprep.subr.mxu0 0.0
    %782 = vmatpush1.msra.mxu0 0.0
    %783 = vmatprep.subr.mxu0 0.0
    %784 = vmatpush1.msra.mxu0 0.0
    %785 = vmatprep.subr.mxu0 0.0
    %786 = vmatpush1.msra.mxu0 0.0
    %787 = vmatprep.subr.mxu0 0.0
    %788 = vmatpush1.msra.mxu0 0.0
    %789 = vmatprep.subr.mxu0 0.0
    %790 = vmatpush1.msra.mxu0 0.0
    %791 = vmatprep.subr.mxu0 0.0
    %792 = vmatpush1.msra.mxu0 0.0
    %793 = vmatprep.subr.mxu0 0.0
    %794 = vmatpush1.msra.mxu0 0.0
    %795 = vmatprep.subr.mxu0 0.0
    %796 = vmatpush1.msra.mxu0 0.0
    %797 = vmatprep.subr.mxu0 0.0
    %798 = vmatpush1.msra.mxu0 0.0
    %799 = vmatprep.subr.mxu0 0.0
    %800 = vmatpush1.msra.mxu0 0.0
    %801 = vmatprep.subr.mxu0 0.0
    %802 = vmatpush1.msra.mxu0 0.0
    %803 = vmatprep.subr.mxu0 0.0
    %804 = vmatpush1.msra.mxu0 0.0
    %805 = vmatprep.subr.mxu0 0.0
    %806 = vmatpush1.msra.mxu0 0.0
    %807 = vmatprep.subr.mxu0 0.0
    %808 = vmatpush1.msra.mxu0 0.0
    %809 = vmatprep.subr.mxu0 0.0
    %810 = vmatpush1.msra.mxu0 0.0
    %811 = vmatprep.subr.mxu0 0.0
    %812 = vmatpush1.msra.mxu0 0.0
    %813 = vmatprep.subr.mxu0 0.0
    %814 = vmatpush1.msra.mxu0 0.0
    %815 = vmatprep.mubr.f32.mxu0 0.0
    %816 = vmatmul.mubr.f32.gmra.mrb[0].mxu0 %v749
    %v817 = vpop.f32.mrb[0].mxu0
    %v818 = vadd.f32 %v213, %v817
    %v819 = vpop.f32.mrb[0].mxu0
    %820 = vdwg.mxu0
    %v821 = vadd.f32 %v748, %v818
    %v822 = vxor.u32 %v821, 2147483648
    %v823 = vmul.f32 %v822, 1.442695
    %v824 = vpow.pop %v823
    %v825 = vadd.f32 %v824, 1.0
    %v826 = vrcp.pop %v825
    %v827 = vmul.f32 1.0, %v826
    %829 = vrot.lane.b32.xlu0 %v818, 64
    %v830 = vpop.permute.xlu0 %829
    %v832 = vmul.f32 %v827, %v830
    %834 = vrot.lane.b32.xlu0 %v832, 64
    %v835 = vpop.permute.xlu0 %834
    %v837 = vadd.f32 %v748, %v835
    %v838 = vtanh.pop %v837
    %v839 = vsub.f32 1.0, %v827
    %841 = vrot.lane.b32.xlu0 %v838, 96
    %v842 = vpop.permute.xlu0 %841
    %v844 = vmul.f32 %v839, %v842
    %v845 = vmul.f32 %v827, %v740
    %v846 = vadd.f32 %v844, %v845
    %848 = vrot.lane.b32.xlu0 %v846, 96
    %v849 = vpop.permute.xlu0 %848
    %s851 = scalar_lea.vmem [#allocation3], 40
    %852 = vst.msk [vmem:[%s851] sm:$0xff] %vm215, %v849
    %s853 = scalar_lea.vmem [#allocation2], 48
    %v854 = vld [vmem:[%s853] sm:$0xff]
    %v855 = vsel %vm215, %v849, 0
    %857 = vmatprep.subr.mxu0 0.0
    %858 = vmatpush1.msra.mxu0 %v202
    %859 = vmatprep.subr.mxu0 0.0
    %860 = vmatpush1.msra.mxu0 %v203
    %861 = vmatprep.subr.mxu0 0.0
    %862 = vmatpush1.msra.mxu0 %v204
    %863 = vmatprep.subr.mxu0 0.0
    %864 = vmatpush1.msra.mxu0 %v205
    %865 = vmatprep.subr.mxu0 0.0
    %866 = vmatpush1.msra.mxu0 0.0
    %867 = vmatprep.subr.mxu0 0.0
    %868 = vmatpush1.msra.mxu0 0.0
    %869 = vmatprep.subr.mxu0 0.0
    %870 = vmatpush1.msra.mxu0 0.0
    %871 = vmatprep.subr.mxu0 0.0
    %872 = vmatpush1.msra.mxu0 0.0
    %873 = vmatprep.subr.mxu0 0.0
    %874 = vmatpush1.msra.mxu0 0.0
    %875 = vmatprep.subr.mxu0 0.0
    %876 = vmatpush1.msra.mxu0 0.0
    %877 = vmatprep.subr.mxu0 0.0
    %878 = vmatpush1.msra.mxu0 0.0
    %879 = vmatprep.subr.mxu0 0.0
    %880 = vmatpush1.msra.mxu0 0.0
    %881 = vmatprep.subr.mxu0 0.0
    %882 = vmatpush1.msra.mxu0 0.0
    %883 = vmatprep.subr.mxu0 0.0
    %884 = vmatpush1.msra.mxu0 0.0
    %885 = vmatprep.subr.mxu0 0.0
    %886 = vmatpush1.msra.mxu0 0.0
    %887 = vmatprep.subr.mxu0 0.0
    %888 = vmatpush1.msra.mxu0 0.0
    %889 = vmatprep.subr.mxu0 0.0
    %890 = vmatpush1.msra.mxu0 0.0
    %891 = vmatprep.subr.mxu0 0.0
    %892 = vmatpush1.msra.mxu0 0.0
    %893 = vmatprep.subr.mxu0 0.0
    %894 = vmatpush1.msra.mxu0 0.0
    %895 = vmatprep.subr.mxu0 0.0
    %896 = vmatpush1.msra.mxu0 0.0
    %897 = vmatprep.subr.mxu0 0.0
    %898 = vmatpush1.msra.mxu0 0.0
    %899 = vmatprep.subr.mxu0 0.0
    %900 = vmatpush1.msra.mxu0 0.0
    %901 = vmatprep.subr.mxu0 0.0
    %902 = vmatpush1.msra.mxu0 0.0
    %903 = vmatprep.subr.mxu0 0.0
    %904 = vmatpush1.msra.mxu0 0.0
    %905 = vmatprep.subr.mxu0 0.0
    %906 = vmatpush1.msra.mxu0 0.0
    %907 = vmatprep.subr.mxu0 0.0
    %908 = vmatpush1.msra.mxu0 0.0
    %909 = vmatprep.subr.mxu0 0.0
    %910 = vmatpush1.msra.mxu0 0.0
    %911 = vmatprep.subr.mxu0 0.0
    %912 = vmatpush1.msra.mxu0 0.0
    %913 = vmatprep.subr.mxu0 0.0
    %914 = vmatpush1.msra.mxu0 0.0
    %915 = vmatprep.subr.mxu0 0.0
    %916 = vmatpush1.msra.mxu0 0.0
    %917 = vmatprep.subr.mxu0 0.0
    %918 = vmatpush1.msra.mxu0 0.0
    %919 = vmatprep.subr.mxu0 0.0
    %920 = vmatpush1.msra.mxu0 0.0
    %921 = vmatprep.mubr.f32.mxu0 0.0
    %922 = vmatmul.mubr.f32.gmra.mrb[0].mxu0 %v855
    %v923 = vpop.f32.mrb[0].mxu0
    %v924 = vadd.f32 %v213, %v923
    %v925 = vpop.f32.mrb[0].mxu0
    %926 = vdwg.mxu0
    %v927 = vadd.f32 %v854, %v924
    %v928 = vxor.u32 %v927, 2147483648
    %v929 = vmul.f32 %v928, 1.442695
    %v930 = vpow.pop %v929
    %v931 = vadd.f32 %v930, 1.0
    %v932 = vrcp.pop %v931
    %v933 = vmul.f32 1.0, %v932
    %935 = vrot.lane.b32.xlu0 %v924, 64
    %v936 = vpop.permute.xlu0 %935
    %v938 = vmul.f32 %v933, %v936
    %940 = vrot.lane.b32.xlu0 %v938, 64
    %v941 = vpop.permute.xlu0 %940
    %v943 = vadd.f32 %v854, %v941
    %v944 = vtanh.pop %v943
    %v945 = vsub.f32 1.0, %v933
    %947 = vrot.lane.b32.xlu0 %v944, 96
    %v948 = vpop.permute.xlu0 %947
    %v950 = vmul.f32 %v945, %v948
    %v951 = vmul.f32 %v933, %v846
    %v952 = vadd.f32 %v950, %v951
    %954 = vrot.lane.b32.xlu0 %v952, 96
    %v955 = vpop.permute.xlu0 %954
    %s957 = scalar_lea.vmem [#allocation3], 48
    %958 = vst.msk [vmem:[%s957] sm:$0xff] %vm215, %v955
    %s959 = scalar_lea.vmem [#allocation2], 56
    %v960 = vld [vmem:[%s959] sm:$0xff]
    %v961 = vsel %vm215, %v955, 0
    %963 = vmatprep.subr.mxu0 0.0
    %964 = vmatpush1.msra.mxu0 %v202
    %965 = vmatprep.subr.mxu0 0.0
    %966 = vmatpush1.msra.mxu0 %v203
    %967 = vmatprep.subr.mxu0 0.0
    %968 = vmatpush1.msra.mxu0 %v204
    %969 = vmatprep.subr.mxu0 0.0
    %970 = vmatpush1.msra.mxu0 %v205
    %971 = vmatprep.subr.mxu0 0.0
    %972 = vmatpush1.msra.mxu0 0.0
    %973 = vmatprep.subr.mxu0 0.0
    %974 = vmatpush1.msra.mxu0 0.0
    %975 = vmatprep.subr.mxu0 0.0
    %976 = vmatpush1.msra.mxu0 0.0
    %977 = vmatprep.subr.mxu0 0.0
    %978 = vmatpush1.msra.mxu0 0.0
    %979 = vmatprep.subr.mxu0 0.0
    %980 = vmatpush1.msra.mxu0 0.0
    %981 = vmatprep.subr.mxu0 0.0
    %982 = vmatpush1.msra.mxu0 0.0
    %983 = vmatprep.subr.mxu0 0.0
    %984 = vmatpush1.msra.mxu0 0.0
    %985 = vmatprep.subr.mxu0 0.0
    %986 = vmatpush1.msra.mxu0 0.0
    %987 = vmatprep.subr.mxu0 0.0
    %988 = vmatpush1.msra.mxu0 0.0
    %989 = vmatprep.subr.mxu0 0.0
    %990 = vmatpush1.msra.mxu0 0.0
    %991 = vmatprep.subr.mxu0 0.0
    %992 = vmatpush1.msra.mxu0 0.0
    %993 = vmatprep.subr.mxu0 0.0
    %994 = vmatpush1.msra.mxu0 0.0
    %995 = vmatprep.subr.mxu0 0.0
    %996 = vmatpush1.msra.mxu0 0.0
    %997 = vmatprep.subr.mxu0 0.0
    %998 = vmatpush1.msra.mxu0 0.0
    %999 = vmatprep.subr.mxu0 0.0
    %1000 = vmatpush1.msra.mxu0 0.0
    %1001 = vmatprep.subr.mxu0 0.0
    %1002 = vmatpush1.msra.mxu0 0.0
    %1003 = vmatprep.subr.mxu0 0.0
    %1004 = vmatpush1.msra.mxu0 0.0
    %1005 = vmatprep.subr.mxu0 0.0
    %1006 = vmatpush1.msra.mxu0 0.0
    %1007 = vmatprep.subr.mxu0 0.0
    %1008 = vmatpush1.msra.mxu0 0.0
    %1009 = vmatprep.subr.mxu0 0.0
    %1010 = vmatpush1.msra.mxu0 0.0
    %1011 = vmatprep.subr.mxu0 0.0
    %1012 = vmatpush1.msra.mxu0 0.0
    %1013 = vmatprep.subr.mxu0 0.0
    %1014 = vmatpush1.msra.mxu0 0.0
    %1015 = vmatprep.subr.mxu0 0.0
    %1016 = vmatpush1.msra.mxu0 0.0
    %1017 = vmatprep.subr.mxu0 0.0
    %1018 = vmatpush1.msra.mxu0 0.0
    %1019 = vmatprep.subr.mxu0 0.0
    %1020 = vmatpush1.msra.mxu0 0.0
    %1021 = vmatprep.subr.mxu0 0.0
    %1022 = vmatpush1.msra.mxu0 0.0
    %1023 = vmatprep.subr.mxu0 0.0
    %1024 = vmatpush1.msra.mxu0 0.0
    %1025 = vmatprep.subr.mxu0 0.0
    %1026 = vmatpush1.msra.mxu0 0.0
    %1027 = vmatprep.mubr.f32.mxu0 0.0
    %1028 = vmatmul.mubr.f32.gmra.mrb[0].mxu0 %v961
    %v1029 = vpop.f32.mrb[0].mxu0
    %v1030 = vadd.f32 %v213, %v1029
    %v1031 = vpop.f32.mrb[0].mxu0
    %1032 = vdwg.mxu0
    %v1033 = vadd.f32 %v960, %v1030
    %v1034 = vxor.u32 %v1033, 2147483648
    %v1035 = vmul.f32 %v1034, 1.442695
    %v1036 = vpow.pop %v1035
    %v1037 = vadd.f32 %v1036, 1.0
    %v1038 = vrcp.pop %v1037
    %v1039 = vmul.f32 1.0, %v1038
    %1041 = vrot.lane.b32.xlu0 %v1030, 64
    %v1042 = vpop.permute.xlu0 %1041
    %v1044 = vmul.f32 %v1039, %v1042
    %1046 = vrot.lane.b32.xlu0 %v1044, 64
    %v1047 = vpop.permute.xlu0 %1046
    %v1049 = vadd.f32 %v960, %v1047
    %v1050 = vtanh.pop %v1049
    %v1051 = vsub.f32 1.0, %v1039
    %1053 = vrot.lane.b32.xlu0 %v1050, 96
    %v1054 = vpop.permute.xlu0 %1053
    %v1056 = vmul.f32 %v1051, %v1054
    %v1057 = vmul.f32 %v1039, %v952
    %v1058 = vadd.f32 %v1056, %v1057
    %1060 = vrot.lane.b32.xlu0 %v1058, 96
    %v1061 = vpop.permute.xlu0 %1060
    %s1063 = scalar_lea.vmem [#allocation3], 56
    %1064 = vst.msk [vmem:[%s1063] sm:$0xff] %vm215, %v1061
    %1065 = vst.msk [vmem:[#allocation4] sm:$0xff] %vm215, %v1061
    %v1066 = vld [vmem:[#allocation3] sm:$0xff]
    %v1067 = vld [vmem:[#allocation3 + $0x8] sm:$0xff]
    %v1068 = vld [vmem:[#allocation3 + $0x10] sm:$0xff]
    %v1069 = vld [vmem:[#allocation3 + $0x18] sm:$0xff]
    %v1070 = vld [vmem:[#allocation3 + $0x20] sm:$0xff]
    %v1071 = vld [vmem:[#allocation3 + $0x28] sm:$0xff]
    %v1072 = vld [vmem:[#allocation3 + $0x30] sm:$0xff]
    %v1073 = vld [vmem:[#allocation3 + $0x38] sm:$0xff]
    %v1074 = vld [vmem:[%s5] sm:$0xff]
    %v1075 = vld [vmem:[%s5 + $0x8] sm:$0xff]
    %v1076 = vld [vmem:[%s5 + $0x10] sm:$0xff]
    %v1077 = vld [vmem:[%s5 + $0x18] sm:$0xff]
    %v1078 = vld [vmem:[%s7] sm:$0x1]
    %v1080 = vlaneseq
    %v1081 = vshrl.u32 %v1080, 7
    %v1082 = vsub.s32 0, %v1081
    %v1083 = vrot.slane %v1078, %v1082
    %v1086 = vsel %vm215, %v1066, 0
    %v1089 = vsel %vm215, %v1067, 0
    %v1092 = vsel %vm215, %v1068, 0
    %v1095 = vsel %vm215, %v1069, 0
    %v1098 = vsel %vm215, %v1070, 0
    %v1101 = vsel %vm215, %v1071, 0
    %v1104 = vsel %vm215, %v1072, 0
    %v1107 = vsel %vm215, %v1073, 0
    %1109 = vmatprep.subr.mxu0 0.0
    %1110 = vmatpush1.msra.mxu0 %v1074
    %1111 = vmatprep.subr.mxu0 0.0
    %1112 = vmatpush1.msra.mxu0 %v1075
    %1113 = vmatprep.subr.mxu0 0.0
    %1114 = vmatpush1.msra.mxu0 %v1076
    %1115 = vmatprep.subr.mxu0 0.0
    %1116 = vmatpush1.msra.mxu0 %v1077
    %1117 = vmatprep.subr.mxu0 0.0
    %1118 = vmatpush1.msra.mxu0 0.0
    %1119 = vmatprep.subr.mxu0 0.0
    %1120 = vmatpush1.msra.mxu0 0.0
    %1121 = vmatprep.subr.mxu0 0.0
    %1122 = vmatpush1.msra.mxu0 0.0
    %1123 = vmatprep.subr.mxu0 0.0
    %1124 = vmatpush1.msra.mxu0 0.0
    %1125 = vmatprep.subr.mxu0 0.0
    %1126 = vmatpush1.msra.mxu0 0.0
    %1127 = vmatprep.subr.mxu0 0.0
    %1128 = vmatpush1.msra.mxu0 0.0
    %1129 = vmatprep.subr.mxu0 0.0
    %1130 = vmatpush1.msra.mxu0 0.0
    %1131 = vmatprep.subr.mxu0 0.0
    %1132 = vmatpush1.msra.mxu0 0.0
    %1133 = vmatprep.subr.mxu0 0.0
    %1134 = vmatpush1.msra.mxu0 0.0
    %1135 = vmatprep.subr.mxu0 0.0
    %1136 = vmatpush1.msra.mxu0 0.0
    %1137 = vmatprep.subr.mxu0 0.0
    %1138 = vmatpush1.msra.mxu0 0.0
    %1139 = vmatprep.subr.mxu0 0.0
    %1140 = vmatpush1.msra.mxu0 0.0
    %1141 = vmatprep.subr.mxu0 0.0
    %1142 = vmatpush1.msra.mxu0 0.0
    %1143 = vmatprep.subr.mxu0 0.0
    %1144 = vmatpush1.msra.mxu0 0.0
    %1145 = vmatprep.subr.mxu0 0.0
    %1146 = vmatpush1.msra.mxu0 0.0
    %1147 = vmatprep.subr.mxu0 0.0
    %1148 = vmatpush1.msra.mxu0 0.0
    %1149 = vmatprep.subr.mxu0 0.0
    %1150 = vmatpush1.msra.mxu0 0.0
    %1151 = vmatprep.subr.mxu0 0.0
    %1152 = vmatpush1.msra.mxu0 0.0
    %1153 = vmatprep.subr.mxu0 0.0
    %1154 = vmatpush1.msra.mxu0 0.0
    %1155 = vmatprep.subr.mxu0 0.0
    %1156 = vmatpush1.msra.mxu0 0.0
    %1157 = vmatprep.subr.mxu0 0.0
    %1158 = vmatpush1.msra.mxu0 0.0
    %1159 = vmatprep.subr.mxu0 0.0
    %1160 = vmatpush1.msra.mxu0 0.0
    %1161 = vmatprep.subr.mxu0 0.0
    %1162 = vmatpush1.msra.mxu0 0.0
    %1163 = vmatprep.subr.mxu0 0.0
    %1164 = vmatpush1.msra.mxu0 0.0
    %1165 = vmatprep.subr.mxu0 0.0
    %1166 = vmatpush1.msra.mxu0 0.0
    %1167 = vmatprep.subr.mxu0 0.0
    %1168 = vmatpush1.msra.mxu0 0.0
    %1169 = vmatprep.subr.mxu0 0.0
    %1170 = vmatpush1.msra.mxu0 0.0
    %1171 = vmatprep.subr.mxu0 0.0
    %1172 = vmatpush1.msra.mxu0 0.0
    %1173 = vmatprep.mubr.f32.mxu0 0.0
    %1174 = vmatmul.mubr.f32.gmra.mrb[0].mxu0 %v1086
    %v1175 = vpop.f32.mrb[0].mxu0
    %v1176 = vadd.f32 %v1083, %v1175
    %v1177 = vpop.f32.mrb[0].mxu0
    %1178 = vmatprep.mubr.f32.mxu0 0.0
    %1179 = vmatmul.mubr.f32.gmra.mrb[0].mxu0 %v1089
    %v1180 = vpop.f32.mrb[0].mxu0
    %v1181 = vadd.f32 %v1083, %v1180
    %v1182 = vpop.f32.mrb[0].mxu0
    %1183 = vmatprep.mubr.f32.mxu0 0.0
    %1184 = vmatmul.mubr.f32.gmra.mrb[0].mxu0 %v1092
    %v1185 = vpop.f32.mrb[0].mxu0
    %v1186 = vadd.f32 %v1083, %v1185
    %v1187 = vpop.f32.mrb[0].mxu0
    %1188 = vmatprep.mubr.f32.mxu0 0.0
    %1189 = vmatmul.mubr.f32.gmra.mrb[0].mxu0 %v1095
    %v1190 = vpop.f32.mrb[0].mxu0
    %v1191 = vadd.f32 %v1083, %v1190
    %v1192 = vpop.f32.mrb[0].mxu0
    %1193 = vmatprep.mubr.f32.mxu0 0.0
    %1194 = vmatmul.mubr.f32.gmra.mrb[0].mxu0 %v1098
    %v1195 = vpop.f32.mrb[0].mxu0
    %v1196 = vadd.f32 %v1083, %v1195
    %v1197 = vpop.f32.mrb[0].mxu0
    %1198 = vmatprep.mubr.f32.mxu0 0.0
    %1199 = vmatmul.mubr.f32.gmra.mrb[0].mxu0 %v1101
    %v1200 = vpop.f32.mrb[0].mxu0
    %v1201 = vadd.f32 %v1083, %v1200
    %v1202 = vpop.f32.mrb[0].mxu0
    %1203 = vmatprep.mubr.f32.mxu0 0.0
    %1204 = vmatmul.mubr.f32.gmra.mrb[0].mxu0 %v1104
    %v1205 = vpop.f32.mrb[0].mxu0
    %v1206 = vadd.f32 %v1083, %v1205
    %v1207 = vpop.f32.mrb[0].mxu0
    %1208 = vmatprep.mubr.f32.mxu0 0.0
    %1209 = vmatmul.mubr.f32.gmra.mrb[0].mxu0 %v1107
    %v1210 = vpop.f32.mrb[0].mxu0
    %v1211 = vadd.f32 %v1083, %v1210
    %v1212 = vpop.f32.mrb[0].mxu0
    %1213 = vdwg.mxu0
    %1214 = vst [vmem:[#allocation2] sm:$0xff] %v1176
    %1215 = vst [vmem:[#allocation2 + $0x8] sm:$0xff] %v1181
    %1216 = vst [vmem:[#allocation2 + $0x10] sm:$0xff] %v1186
    %1217 = vst [vmem:[#allocation2 + $0x18] sm:$0xff] %v1191
    %1218 = vst [vmem:[#allocation2 + $0x20] sm:$0xff] %v1196
    %1219 = vst [vmem:[#allocation2 + $0x28] sm:$0xff] %v1201
    %1220 = vst [vmem:[#allocation2 + $0x30] sm:$0xff] %v1206
    %1221 = vst [vmem:[#allocation2 + $0x38] sm:$0xff] %v1211
    %v1222 = vld [vmem:[%s6] sm:$0xff]
    %v1223 = vld [vmem:[%s6 + $0x8] sm:$0xff]
    %v1224 = vld [vmem:[%s6 + $0x10] sm:$0xff]
    %v1225 = vld [vmem:[%s6 + $0x18] sm:$0xff]
    %v1226 = vld [vmem:[%s8] sm:$0x1]
    %s1227 = scalar_lea.vmem %s9, 8
    %v1228 = vld [vmem:[%s1227] sm:$0xff]
    %v1229 = vld [vmem:[#allocation2] sm:$0xff]
    %v1231 = vlaneseq
    %v1232 = vshrl.u32 %v1231, 7
    %v1233 = vsub.s32 0, %v1232
    %v1234 = vrot.slane %v1226, %v1233
    %v1237 = vsel %vm215, %v1228, 0
    %1239 = vmatprep.subr.mxu0 0.0
    %1240 = vmatpush1.msra.mxu0 %v1222
    %1241 = vmatprep.subr.mxu0 0.0
    %1242 = vmatpush1.msra.mxu0 %v1223
    %1243 = vmatprep.subr.mxu0 0.0
    %1244 = vmatpush1.msra.mxu0 %v1224
    %1245 = vmatprep.subr.mxu0 0.0
    %1246 = vmatpush1.msra.mxu0 %v1225
    %1247 = vmatprep.subr.mxu0 0.0
    %1248 = vmatpush1.msra.mxu0 0.0
    %1249 = vmatprep.subr.mxu0 0.0
    %1250 = vmatpush1.msra.mxu0 0.0
    %1251 = vmatprep.subr.mxu0 0.0
    %1252 = vmatpush1.msra.mxu0 0.0
    %1253 = vmatprep.subr.mxu0 0.0
    %1254 = vmatpush1.msra.mxu0 0.0
    %1255 = vmatprep.subr.mxu0 0.0
    %1256 = vmatpush1.msra.mxu0 0.0
    %1257 = vmatprep.subr.mxu0 0.0
    %1258 = vmatpush1.msra.mxu0 0.0
    %1259 = vmatprep.subr.mxu0 0.0
    %1260 = vmatpush1.msra.mxu0 0.0
    %1261 = vmatprep.subr.mxu0 0.0
    %1262 = vmatpush1.msra.mxu0 0.0
    %1263 = vmatprep.subr.mxu0 0.0
    %1264 = vmatpush1.msra.mxu0 0.0
    %1265 = vmatprep.subr.mxu0 0.0
    %1266 = vmatpush1.msra.mxu0 0.0
    %1267 = vmatprep.subr.mxu0 0.0
    %1268 = vmatpush1.msra.mxu0 0.0
    %1269 = vmatprep.subr.mxu0 0.0
    %1270 = vmatpush1.msra.mxu0 0.0
    %1271 = vmatprep.subr.mxu0 0.0
    %1272 = vmatpush1.msra.mxu0 0.0
    %1273 = vmatprep.subr.mxu0 0.0
    %1274 = vmatpush1.msra.mxu0 0.0
    %1275 = vmatprep.subr.mxu0 0.0
    %1276 = vmatpush1.msra.mxu0 0.0
    %1277 = vmatprep.subr.mxu0 0.0
    %1278 = vmatpush1.msra.mxu0 0.0
    %1279 = vmatprep.subr.mxu0 0.0
    %1280 = vmatpush1.msra.mxu0 0.0
    %1281 = vmatprep.subr.mxu0 0.0
    %1282 = vmatpush1.msra.mxu0 0.0
    %1283 = vmatprep.subr.mxu0 0.0
    %1284 = vmatpush1.msra.mxu0 0.0
    %1285 = vmatprep.subr.mxu0 0.0
    %1286 = vmatpush1.msra.mxu0 0.0
    %1287 = vmatprep.subr.mxu0 0.0
    %1288 = vmatpush1.msra.mxu0 0.0
    %1289 = vmatprep.subr.mxu0 0.0
    %1290 = vmatpush1.msra.mxu0 0.0
    %1291 = vmatprep.subr.mxu0 0.0
    %1292 = vmatpush1.msra.mxu0 0.0
    %1293 = vmatprep.subr.mxu0 0.0
    %1294 = vmatpush1.msra.mxu0 0.0
    %1295 = vmatprep.subr.mxu0 0.0
    %1296 = vmatpush1.msra.mxu0 0.0
    %1297 = vmatprep.subr.mxu0 0.0
    %1298 = vmatpush1.msra.mxu0 0.0
    %1299 = vmatprep.subr.mxu0 0.0
    %1300 = vmatpush1.msra.mxu0 0.0
    %1301 = vmatprep.subr.mxu0 0.0
    %1302 = vmatpush1.msra.mxu0 0.0
    %1303 = vmatprep.mubr.f32.mxu0 0.0
    %1304 = vmatmul.mubr.f32.gmra.mrb[0].mxu0 %v1237
    %v1305 = vpop.f32.mrb[0].mxu0
    %v1306 = vadd.f32 %v1234, %v1305
    %v1307 = vpop.f32.mrb[0].mxu0
    %1308 = vdwg.mxu0
    %v1309 = vadd.f32 %v1229, %v1306
    %v1310 = vxor.u32 %v1309, 2147483648
    %v1311 = vmul.f32 %v1310, 1.442695
    %v1312 = vpow.pop %v1311
    %v1313 = vadd.f32 %v1312, 1.0
    %v1314 = vrcp.pop %v1313
    %v1315 = vmul.f32 1.0, %v1314
    %1317 = vrot.lane.b32.xlu0 %v1306, 64
    %v1318 = vpop.permute.xlu0 %1317
    %v1320 = vmul.f32 %v1315, %v1318
    %1322 = vrot.lane.b32.xlu0 %v1320, 64
    %v1323 = vpop.permute.xlu0 %1322
    %v1325 = vadd.f32 %v1229, %v1323
    %v1326 = vtanh.pop %v1325
    %v1327 = vsub.f32 1.0, %v1315
    %1329 = vrot.lane.b32.xlu0 %v1326, 96
    %v1330 = vpop.permute.xlu0 %1329
    %v1332 = vmul.f32 %v1327, %v1330
    %1333 = vrot.lane.b32.xlu0 %v1228, 32
    %v1334 = vpop.permute.xlu0 %1333
    %v1336 = vmul.f32 %v1315, %v1334
    %v1337 = vadd.f32 %v1332, %v1336
    %1339 = vrot.lane.b32.xlu0 %v1337, 96
    %v1340 = vpop.permute.xlu0 %1339
    %1342 = vst.msk [vmem:[#allocation3] sm:$0xff] %vm215, %v1340
    %v1343 = vld [vmem:[%s323] sm:$0xff]
    %v1344 = vsel %vm215, %v1340, 0
    %1346 = vmatprep.subr.mxu0 0.0
    %1347 = vmatpush1.msra.mxu0 %v1222
    %1348 = vmatprep.subr.mxu0 0.0
    %1349 = vmatpush1.msra.mxu0 %v1223
    %1350 = vmatprep.subr.mxu0 0.0
    %1351 = vmatpush1.msra.mxu0 %v1224
    %1352 = vmatprep.subr.mxu0 0.0
    %1353 = vmatpush1.msra.mxu0 %v1225
    %1354 = vmatprep.subr.mxu0 0.0
    %1355 = vmatpush1.msra.mxu0 0.0
    %1356 = vmatprep.subr.mxu0 0.0
    %1357 = vmatpush1.msra.mxu0 0.0
    %1358 = vmatprep.subr.mxu0 0.0
    %1359 = vmatpush1.msra.mxu0 0.0
    %1360 = vmatprep.subr.mxu0 0.0
    %1361 = vmatpush1.msra.mxu0 0.0
    %1362 = vmatprep.subr.mxu0 0.0
    %1363 = vmatpush1.msra.mxu0 0.0
    %1364 = vmatprep.subr.mxu0 0.0
    %1365 = vmatpush1.msra.mxu0 0.0
    %1366 = vmatprep.subr.mxu0 0.0
    %1367 = vmatpush1.msra.mxu0 0.0
    %1368 = vmatprep.subr.mxu0 0.0
    %1369 = vmatpush1.msra.mxu0 0.0
    %1370 = vmatprep.subr.mxu0 0.0
    %1371 = vmatpush1.msra.mxu0 0.0
    %1372 = vmatprep.subr.mxu0 0.0
    %1373 = vmatpush1.msra.mxu0 0.0
    %1374 = vmatprep.subr.mxu0 0.0
    %1375 = vmatpush1.msra.mxu0 0.0
    %1376 = vmatprep.subr.mxu0 0.0
    %1377 = vmatpush1.msra.mxu0 0.0
    %1378 = vmatprep.subr.mxu0 0.0
    %1379 = vmatpush1.msra.mxu0 0.0
    %1380 = vmatprep.subr.mxu0 0.0
    %1381 = vmatpush1.msra.mxu0 0.0
    %1382 = vmatprep.subr.mxu0 0.0
    %1383 = vmatpush1.msra.mxu0 0.0
    %1384 = vmatprep.subr.mxu0 0.0
    %1385 = vmatpush1.msra.mxu0 0.0
    %1386 = vmatprep.subr.mxu0 0.0
    %1387 = vmatpush1.msra.mxu0 0.0
    %1388 = vmatprep.subr.mxu0 0.0
    %1389 = vmatpush1.msra.mxu0 0.0
    %1390 = vmatprep.subr.mxu0 0.0
    %1391 = vmatpush1.msra.mxu0 0.0
    %1392 = vmatprep.subr.mxu0 0.0
    %1393 = vmatpush1.msra.mxu0 0.0
    %1394 = vmatprep.subr.mxu0 0.0
    %1395 = vmatpush1.msra.mxu0 0.0
    %1396 = vmatprep.subr.mxu0 0.0
    %1397 = vmatpush1.msra.mxu0 0.0
    %1398 = vmatprep.subr.mxu0 0.0
    %1399 = vmatpush1.msra.mxu0 0.0
    %1400 = vmatprep.subr.mxu0 0.0
    %1401 = vmatpush1.msra.mxu0 0.0
    %1402 = vmatprep.subr.mxu0 0.0
    %1403 = vmatpush1.msra.mxu0 0.0
    %1404 = vmatprep.subr.mxu0 0.0
    %1405 = vmatpush1.msra.mxu0 0.0
    %1406 = vmatprep.subr.mxu0 0.0
    %1407 = vmatpush1.msra.mxu0 0.0
    %1408 = vmatprep.subr.mxu0 0.0
    %1409 = vmatpush1.msra.mxu0 0.0
    %1410 = vmatprep.mubr.f32.mxu0 0.0
    %1411 = vmatmul.mubr.f32.gmra.mrb[0].mxu0 %v1344
    %v1412 = vpop.f32.mrb[0].mxu0
    %v1413 = vadd.f32 %v1234, %v1412
    %v1414 = vpop.f32.mrb[0].mxu0
    %1415 = vdwg.mxu0
    %v1416 = vadd.f32 %v1343, %v1413
    %v1417 = vxor.u32 %v1416, 2147483648
    %v1418 = vmul.f32 %v1417, 1.442695
    %v1419 = vpow.pop %v1418
    %v1420 = vadd.f32 %v1419, 1.0
    %v1421 = vrcp.pop %v1420
    %v1422 = vmul.f32 1.0, %v1421
    %1424 = vrot.lane.b32.xlu0 %v1413, 64
    %v1425 = vpop.permute.xlu0 %1424
    %v1427 = vmul.f32 %v1422, %v1425
    %1429 = vrot.lane.b32.xlu0 %v1427, 64
    %v1430 = vpop.permute.xlu0 %1429
    %v1432 = vadd.f32 %v1343, %v1430
    %v1433 = vtanh.pop %v1432
    %v1434 = vsub.f32 1.0, %v1422
    %1436 = vrot.lane.b32.xlu0 %v1433, 96
    %v1437 = vpop.permute.xlu0 %1436
    %v1439 = vmul.f32 %v1434, %v1437
    %v1440 = vmul.f32 %v1422, %v1337
    %v1441 = vadd.f32 %v1439, %v1440
    %1443 = vrot.lane.b32.xlu0 %v1441, 96
    %v1444 = vpop.permute.xlu0 %1443
    %1446 = vst.msk [vmem:[%s427] sm:$0xff] %vm215, %v1444
    %v1447 = vld [vmem:[%s429] sm:$0xff]
    %v1448 = vsel %vm215, %v1444, 0
    %1450 = vmatprep.subr.mxu0 0.0
    %1451 = vmatpush1.msra.mxu0 %v1222
    %1452 = vmatprep.subr.mxu0 0.0
    %1453 = vmatpush1.msra.mxu0 %v1223
    %1454 = vmatprep.subr.mxu0 0.0
    %1455 = vmatpush1.msra.mxu0 %v1224
    %1456 = vmatprep.subr.mxu0 0.0
    %1457 = vmatpush1.msra.mxu0 %v1225
    %1458 = vmatprep.subr.mxu0 0.0
    %1459 = vmatpush1.msra.mxu0 0.0
    %1460 = vmatprep.subr.mxu0 0.0
    %1461 = vmatpush1.msra.mxu0 0.0
    %1462 = vmatprep.subr.mxu0 0.0
    %1463 = vmatpush1.msra.mxu0 0.0
    %1464 = vmatprep.subr.mxu0 0.0
    %1465 = vmatpush1.msra.mxu0 0.0
    %1466 = vmatprep.subr.mxu0 0.0
    %1467 = vmatpush1.msra.mxu0 0.0
    %1468 = vmatprep.subr.mxu0 0.0
    %1469 = vmatpush1.msra.mxu0 0.0
    %1470 = vmatprep.subr.mxu0 0.0
    %1471 = vmatpush1.msra.mxu0 0.0
    %1472 = vmatprep.subr.mxu0 0.0
    %1473 = vmatpush1.msra.mxu0 0.0
    %1474 = vmatprep.subr.mxu0 0.0
    %1475 = vmatpush1.msra.mxu0 0.0
    %1476 = vmatprep.subr.mxu0 0.0
    %1477 = vmatpush1.msra.mxu0 0.0
    %1478 = vmatprep.subr.mxu0 0.0
    %1479 = vmatpush1.msra.mxu0 0.0
    %1480 = vmatprep.subr.mxu0 0.0
    %1481 = vmatpush1.msra.mxu0 0.0
    %1482 = vmatprep.subr.mxu0 0.0
    %1483 = vmatpush1.msra.mxu0 0.0
    %1484 = vmatprep.subr.mxu0 0.0
    %1485 = vmatpush1.msra.mxu0 0.0
    %1486 = vmatprep.subr.mxu0 0.0
    %1487 = vmatpush1.msra.mxu0 0.0
    %1488 = vmatprep.subr.mxu0 0.0
    %1489 = vmatpush1.msra.mxu0 0.0
    %1490 = vmatprep.subr.mxu0 0.0
    %1491 = vmatpush1.msra.mxu0 0.0
    %1492 = vmatprep.subr.mxu0 0.0
    %1493 = vmatpush1.msra.mxu0 0.0
    %1494 = vmatprep.subr.mxu0 0.0
    %1495 = vmatpush1.msra.mxu0 0.0
    %1496 = vmatprep.subr.mxu0 0.0
    %1497 = vmatpush1.msra.mxu0 0.0
    %1498 = vmatprep.subr.mxu0 0.0
    %1499 = vmatpush1.msra.mxu0 0.0
    %1500 = vmatprep.subr.mxu0 0.0
    %1501 = vmatpush1.msra.mxu0 0.0
    %1502 = vmatprep.subr.mxu0 0.0
    %1503 = vmatpush1.msra.mxu0 0.0
    %1504 = vmatprep.subr.mxu0 0.0
    %1505 = vmatpush1.msra.mxu0 0.0
    %1506 = vmatprep.subr.mxu0 0.0
    %1507 = vmatpush1.msra.mxu0 0.0
    %1508 = vmatprep.subr.mxu0 0.0
    %1509 = vmatpush1.msra.mxu0 0.0
    %1510 = vmatprep.subr.mxu0 0.0
    %1511 = vmatpush1.msra.mxu0 0.0
    %1512 = vmatprep.subr.mxu0 0.0
    %1513 = vmatpush1.msra.mxu0 0.0
    %1514 = vmatprep.mubr.f32.mxu0 0.0
    %1515 = vmatmul.mubr.f32.gmra.mrb[0].mxu0 %v1448
    %v1516 = vpop.f32.mrb[0].mxu0
    %v1517 = vadd.f32 %v1234, %v1516
    %v1518 = vpop.f32.mrb[0].mxu0
    %1519 = vdwg.mxu0
    %v1520 = vadd.f32 %v1447, %v1517
    %v1521 = vxor.u32 %v1520, 2147483648
    %v1522 = vmul.f32 %v1521, 1.442695
    %v1523 = vpow.pop %v1522
    %v1524 = vadd.f32 %v1523, 1.0
    %v1525 = vrcp.pop %v1524
    %v1526 = vmul.f32 1.0, %v1525
    %1528 = vrot.lane.b32.xlu0 %v1517, 64
    %v1529 = vpop.permute.xlu0 %1528
    %v1531 = vmul.f32 %v1526, %v1529
    %1533 = vrot.lane.b32.xlu0 %v1531, 64
    %v1534 = vpop.permute.xlu0 %1533
    %v1536 = vadd.f32 %v1447, %v1534
    %v1537 = vtanh.pop %v1536
    %v1538 = vsub.f32 1.0, %v1526
    %1540 = vrot.lane.b32.xlu0 %v1537, 96
    %v1541 = vpop.permute.xlu0 %1540
    %v1543 = vmul.f32 %v1538, %v1541
    %v1544 = vmul.f32 %v1526, %v1441
    %v1545 = vadd.f32 %v1543, %v1544
    %1547 = vrot.lane.b32.xlu0 %v1545, 96
    %v1548 = vpop.permute.xlu0 %1547
    %1550 = vst.msk [vmem:[%s533] sm:$0xff] %vm215, %v1548
    %v1551 = vld [vmem:[%s535] sm:$0xff]
    %v1552 = vsel %vm215, %v1548, 0
    %1554 = vmatprep.subr.mxu0 0.0
    %1555 = vmatpush1.msra.mxu0 %v1222
    %1556 = vmatprep.subr.mxu0 0.0
    %1557 = vmatpush1.msra.mxu0 %v1223
    %1558 = vmatprep.subr.mxu0 0.0
    %1559 = vmatpush1.msra.mxu0 %v1224
    %1560 = vmatprep.subr.mxu0 0.0
    %1561 = vmatpush1.msra.mxu0 %v1225
    %1562 = vmatprep.subr.mxu0 0.0
    %1563 = vmatpush1.msra.mxu0 0.0
    %1564 = vmatprep.subr.mxu0 0.0
    %1565 = vmatpush1.msra.mxu0 0.0
    %1566 = vmatprep.subr.mxu0 0.0
    %1567 = vmatpush1.msra.mxu0 0.0
    %1568 = vmatprep.subr.mxu0 0.0
    %1569 = vmatpush1.msra.mxu0 0.0
    %1570 = vmatprep.subr.mxu0 0.0
    %1571 = vmatpush1.msra.mxu0 0.0
    %1572 = vmatprep.subr.mxu0 0.0
    %1573 = vmatpush1.msra.mxu0 0.0
    %1574 = vmatprep.subr.mxu0 0.0
    %1575 = vmatpush1.msra.mxu0 0.0
    %1576 = vmatprep.subr.mxu0 0.0
    %1577 = vmatpush1.msra.mxu0 0.0
    %1578 = vmatprep.subr.mxu0 0.0
    %1579 = vmatpush1.msra.mxu0 0.0
    %1580 = vmatprep.subr.mxu0 0.0
    %1581 = vmatpush1.msra.mxu0 0.0
    %1582 = vmatprep.subr.mxu0 0.0
    %1583 = vmatpush1.msra.mxu0 0.0
    %1584 = vmatprep.subr.mxu0 0.0
    %1585 = vmatpush1.msra.mxu0 0.0
    %1586 = vmatprep.subr.mxu0 0.0
    %1587 = vmatpush1.msra.mxu0 0.0
    %1588 = vmatprep.subr.mxu0 0.0
    %1589 = vmatpush1.msra.mxu0 0.0
    %1590 = vmatprep.subr.mxu0 0.0
    %1591 = vmatpush1.msra.mxu0 0.0
    %1592 = vmatprep.subr.mxu0 0.0
    %1593 = vmatpush1.msra.mxu0 0.0
    %1594 = vmatprep.subr.mxu0 0.0
    %1595 = vmatpush1.msra.mxu0 0.0
    %1596 = vmatprep.subr.mxu0 0.0
    %1597 = vmatpush1.msra.mxu0 0.0
    %1598 = vmatprep.subr.mxu0 0.0
    %1599 = vmatpush1.msra.mxu0 0.0
    %1600 = vmatprep.subr.mxu0 0.0
    %1601 = vmatpush1.msra.mxu0 0.0
    %1602 = vmatprep.subr.mxu0 0.0
    %1603 = vmatpush1.msra.mxu0 0.0
    %1604 = vmatprep.subr.mxu0 0.0
    %1605 = vmatpush1.msra.mxu0 0.0
    %1606 = vmatprep.subr.mxu0 0.0
    %1607 = vmatpush1.msra.mxu0 0.0
    %1608 = vmatprep.subr.mxu0 0.0
    %1609 = vmatpush1.msra.mxu0 0.0
    %1610 = vmatprep.subr.mxu0 0.0
    %1611 = vmatpush1.msra.mxu0 0.0
    %1612 = vmatprep.subr.mxu0 0.0
    %1613 = vmatpush1.msra.mxu0 0.0
    %1614 = vmatprep.subr.mxu0 0.0
    %1615 = vmatpush1.msra.mxu0 0.0
    %1616 = vmatprep.subr.mxu0 0.0
    %1617 = vmatpush1.msra.mxu0 0.0
    %1618 = vmatprep.mubr.f32.mxu0 0.0
    %1619 = vmatmul.mubr.f32.gmra.mrb[0].mxu0 %v1552
    %v1620 = vpop.f32.mrb[0].mxu0
    %v1621 = vadd.f32 %v1234, %v1620
    %v1622 = vpop.f32.mrb[0].mxu0
    %1623 = vdwg.mxu0
    %v1624 = vadd.f32 %v1551, %v1621
    %v1625 = vxor.u32 %v1624, 2147483648
    %v1626 = vmul.f32 %v1625, 1.442695
    %v1627 = vpow.pop %v1626
    %v1628 = vadd.f32 %v1627, 1.0
    %v1629 = vrcp.pop %v1628
    %v1630 = vmul.f32 1.0, %v1629
    %1632 = vrot.lane.b32.xlu0 %v1621, 64
    %v1633 = vpop.permute.xlu0 %1632
    %v1635 = vmul.f32 %v1630, %v1633
    %1637 = vrot.lane.b32.xlu0 %v1635, 64
    %v1638 = vpop.permute.xlu0 %1637
    %v1640 = vadd.f32 %v1551, %v1638
    %v1641 = vtanh.pop %v1640
    %v1642 = vsub.f32 1.0, %v1630
    %1644 = vrot.lane.b32.xlu0 %v1641, 96
    %v1645 = vpop.permute.xlu0 %1644
    %v1647 = vmul.f32 %v1642, %v1645
    %v1648 = vmul.f32 %v1630, %v1545
    %v1649 = vadd.f32 %v1647, %v1648
    %1651 = vrot.lane.b32.xlu0 %v1649, 96
    %v1652 = vpop.permute.xlu0 %1651
    %1654 = vst.msk [vmem:[%s639] sm:$0xff] %vm215, %v1652
    %v1655 = vld [vmem:[%s641] sm:$0xff]
    %v1656 = vsel %vm215, %v1652, 0
    %1658 = vmatprep.subr.mxu0 0.0
    %1659 = vmatpush1.msra.mxu0 %v1222
    %1660 = vmatprep.subr.mxu0 0.0
    %1661 = vmatpush1.msra.mxu0 %v1223
    %1662 = vmatprep.subr.mxu0 0.0
    %1663 = vmatpush1.msra.mxu0 %v1224
    %1664 = vmatprep.subr.mxu0 0.0
    %1665 = vmatpush1.msra.mxu0 %v1225
    %1666 = vmatprep.subr.mxu0 0.0
    %1667 = vmatpush1.msra.mxu0 0.0
    %1668 = vmatprep.subr.mxu0 0.0
    %1669 = vmatpush1.msra.mxu0 0.0
    %1670 = vmatprep.subr.mxu0 0.0
    %1671 = vmatpush1.msra.mxu0 0.0
    %1672 = vmatprep.subr.mxu0 0.0
    %1673 = vmatpush1.msra.mxu0 0.0
    %1674 = vmatprep.subr.mxu0 0.0
    %1675 = vmatpush1.msra.mxu0 0.0
    %1676 = vmatprep.subr.mxu0 0.0
    %1677 = vmatpush1.msra.mxu0 0.0
    %1678 = vmatprep.subr.mxu0 0.0
    %1679 = vmatpush1.msra.mxu0 0.0
    %1680 = vmatprep.subr.mxu0 0.0
    %1681 = vmatpush1.msra.mxu0 0.0
    %1682 = vmatprep.subr.mxu0 0.0
    %1683 = vmatpush1.msra.mxu0 0.0
    %1684 = vmatprep.subr.mxu0 0.0
    %1685 = vmatpush1.msra.mxu0 0.0
    %1686 = vmatprep.subr.mxu0 0.0
    %1687 = vmatpush1.msra.mxu0 0.0
    %1688 = vmatprep.subr.mxu0 0.0
    %1689 = vmatpush1.msra.mxu0 0.0
    %1690 = vmatprep.subr.mxu0 0.0
    %1691 = vmatpush1.msra.mxu0 0.0
    %1692 = vmatprep.subr.mxu0 0.0
    %1693 = vmatpush1.msra.mxu0 0.0
    %1694 = vmatprep.subr.mxu0 0.0
    %1695 = vmatpush1.msra.mxu0 0.0
    %1696 = vmatprep.subr.mxu0 0.0
    %1697 = vmatpush1.msra.mxu0 0.0
    %1698 = vmatprep.subr.mxu0 0.0
    %1699 = vmatpush1.msra.mxu0 0.0
    %1700 = vmatprep.subr.mxu0 0.0
    %1701 = vmatpush1.msra.mxu0 0.0
    %1702 = vmatprep.subr.mxu0 0.0
    %1703 = vmatpush1.msra.mxu0 0.0
    %1704 = vmatprep.subr.mxu0 0.0
    %1705 = vmatpush1.msra.mxu0 0.0
    %1706 = vmatprep.subr.mxu0 0.0
    %1707 = vmatpush1.msra.mxu0 0.0
    %1708 = vmatprep.subr.mxu0 0.0
    %1709 = vmatpush1.msra.mxu0 0.0
    %1710 = vmatprep.subr.mxu0 0.0
    %1711 = vmatpush1.msra.mxu0 0.0
    %1712 = vmatprep.subr.mxu0 0.0
    %1713 = vmatpush1.msra.mxu0 0.0
    %1714 = vmatprep.subr.mxu0 0.0
    %1715 = vmatpush1.msra.mxu0 0.0
    %1716 = vmatprep.subr.mxu0 0.0
    %1717 = vmatpush1.msra.mxu0 0.0
    %1718 = vmatprep.subr.mxu0 0.0
    %1719 = vmatpush1.msra.mxu0 0.0
    %1720 = vmatprep.subr.mxu0 0.0
    %1721 = vmatpush1.msra.mxu0 0.0
    %1722 = vmatprep.mubr.f32.mxu0 0.0
    %1723 = vmatmul.mubr.f32.gmra.mrb[0].mxu0 %v1656
    %v1724 = vpop.f32.mrb[0].mxu0
    %v1725 = vadd.f32 %v1234, %v1724
    %v1726 = vpop.f32.mrb[0].mxu0
    %1727 = vdwg.mxu0
    %v1728 = vadd.f32 %v1655, %v1725
    %v1729 = vxor.u32 %v1728, 2147483648
    %v1730 = vmul.f32 %v1729, 1.442695
    %v1731 = vpow.pop %v1730
    %v1732 = vadd.f32 %v1731, 1.0
    %v1733 = vrcp.pop %v1732
    %v1734 = vmul.f32 1.0, %v1733
    %1736 = vrot.lane.b32.xlu0 %v1725, 64
    %v1737 = vpop.permute.xlu0 %1736
    %v1739 = vmul.f32 %v1734, %v1737
    %1741 = vrot.lane.b32.xlu0 %v1739, 64
    %v1742 = vpop.permute.xlu0 %1741
    %v1744 = vadd.f32 %v1655, %v1742
    %v1745 = vtanh.pop %v1744
    %v1746 = vsub.f32 1.0, %v1734
    %1748 = vrot.lane.b32.xlu0 %v1745, 96
    %v1749 = vpop.permute.xlu0 %1748
    %v1751 = vmul.f32 %v1746, %v1749
    %v1752 = vmul.f32 %v1734, %v1649
    %v1753 = vadd.f32 %v1751, %v1752
    %1755 = vrot.lane.b32.xlu0 %v1753, 96
    %v1756 = vpop.permute.xlu0 %1755
    %1758 = vst.msk [vmem:[%s745] sm:$0xff] %vm215, %v1756
    %v1759 = vld [vmem:[%s747] sm:$0xff]
    %v1760 = vsel %vm215, %v1756, 0
    %1762 = vmatprep.subr.mxu0 0.0
    %1763 = vmatpush1.msra.mxu0 %v1222
    %1764 = vmatprep.subr.mxu0 0.0
    %1765 = vmatpush1.msra.mxu0 %v1223
    %1766 = vmatprep.subr.mxu0 0.0
    %1767 = vmatpush1.msra.mxu0 %v1224
    %1768 = vmatprep.subr.mxu0 0.0
    %1769 = vmatpush1.msra.mxu0 %v1225
    %1770 = vmatprep.subr.mxu0 0.0
    %1771 = vmatpush1.msra.mxu0 0.0
    %1772 = vmatprep.subr.mxu0 0.0
    %1773 = vmatpush1.msra.mxu0 0.0
    %1774 = vmatprep.subr.mxu0 0.0
    %1775 = vmatpush1.msra.mxu0 0.0
    %1776 = vmatprep.subr.mxu0 0.0
    %1777 = vmatpush1.msra.mxu0 0.0
    %1778 = vmatprep.subr.mxu0 0.0
    %1779 = vmatpush1.msra.mxu0 0.0
    %1780 = vmatprep.subr.mxu0 0.0
    %1781 = vmatpush1.msra.mxu0 0.0
    %1782 = vmatprep.subr.mxu0 0.0
    %1783 = vmatpush1.msra.mxu0 0.0
    %1784 = vmatprep.subr.mxu0 0.0
    %1785 = vmatpush1.msra.mxu0 0.0
    %1786 = vmatprep.subr.mxu0 0.0
    %1787 = vmatpush1.msra.mxu0 0.0
    %1788 = vmatprep.subr.mxu0 0.0
    %1789 = vmatpush1.msra.mxu0 0.0
    %1790 = vmatprep.subr.mxu0 0.0
    %1791 = vmatpush1.msra.mxu0 0.0
    %1792 = vmatprep.subr.mxu0 0.0
    %1793 = vmatpush1.msra.mxu0 0.0
    %1794 = vmatprep.subr.mxu0 0.0
    %1795 = vmatpush1.msra.mxu0 0.0
    %1796 = vmatprep.subr.mxu0 0.0
    %1797 = vmatpush1.msra.mxu0 0.0
    %1798 = vmatprep.subr.mxu0 0.0
    %1799 = vmatpush1.msra.mxu0 0.0
    %1800 = vmatprep.subr.mxu0 0.0
    %1801 = vmatpush1.msra.mxu0 0.0
    %1802 = vmatprep.subr.mxu0 0.0
    %1803 = vmatpush1.msra.mxu0 0.0
    %1804 = vmatprep.subr.mxu0 0.0
    %1805 = vmatpush1.msra.mxu0 0.0
    %1806 = vmatprep.subr.mxu0 0.0
    %1807 = vmatpush1.msra.mxu0 0.0
    %1808 = vmatprep.subr.mxu0 0.0
    %1809 = vmatpush1.msra.mxu0 0.0
    %1810 = vmatprep.subr.mxu0 0.0
    %1811 = vmatpush1.msra.mxu0 0.0
    %1812 = vmatprep.subr.mxu0 0.0
    %1813 = vmatpush1.msra.mxu0 0.0
    %1814 = vmatprep.subr.mxu0 0.0
    %1815 = vmatpush1.msra.mxu0 0.0
    %1816 = vmatprep.subr.mxu0 0.0
    %1817 = vmatpush1.msra.mxu0 0.0
    %1818 = vmatprep.subr.mxu0 0.0
    %1819 = vmatpush1.msra.mxu0 0.0
    %1820 = vmatprep.subr.mxu0 0.0
    %1821 = vmatpush1.msra.mxu0 0.0
    %1822 = vmatprep.subr.mxu0 0.0
    %1823 = vmatpush1.msra.mxu0 0.0
    %1824 = vmatprep.subr.mxu0 0.0
    %1825 = vmatpush1.msra.mxu0 0.0
    %1826 = vmatprep.mubr.f32.mxu0 0.0
    %1827 = vmatmul.mubr.f32.gmra.mrb[0].mxu0 %v1760
    %v1828 = vpop.f32.mrb[0].mxu0
    %v1829 = vadd.f32 %v1234, %v1828
    %v1830 = vpop.f32.mrb[0].mxu0
    %1831 = vdwg.mxu0
    %v1832 = vadd.f32 %v1759, %v1829
    %v1833 = vxor.u32 %v1832, 2147483648
    %v1834 = vmul.f32 %v1833, 1.442695
    %v1835 = vpow.pop %v1834
    %v1836 = vadd.f32 %v1835, 1.0
    %v1837 = vrcp.pop %v1836
    %v1838 = vmul.f32 1.0, %v1837
    %1840 = vrot.lane.b32.xlu0 %v1829, 64
    %v1841 = vpop.permute.xlu0 %1840
    %v1843 = vmul.f32 %v1838, %v1841
    %1845 = vrot.lane.b32.xlu0 %v1843, 64
    %v1846 = vpop.permute.xlu0 %1845
    %v1848 = vadd.f32 %v1759, %v1846
    %v1849 = vtanh.pop %v1848
    %v1850 = vsub.f32 1.0, %v1838
    %1852 = vrot.lane.b32.xlu0 %v1849, 96
    %v1853 = vpop.permute.xlu0 %1852
    %v1855 = vmul.f32 %v1850, %v1853
    %v1856 = vmul.f32 %v1838, %v1753
    %v1857 = vadd.f32 %v1855, %v1856
    %1859 = vrot.lane.b32.xlu0 %v1857, 96
    %v1860 = vpop.permute.xlu0 %1859
    %1862 = vst.msk [vmem:[%s851] sm:$0xff] %vm215, %v1860
    %v1863 = vld [vmem:[%s853] sm:$0xff]
    %v1864 = vsel %vm215, %v1860, 0
    %1866 = vmatprep.subr.mxu0 0.0
    %1867 = vmatpush1.msra.mxu0 %v1222
    %1868 = vmatprep.subr.mxu0 0.0
    %1869 = vmatpush1.msra.mxu0 %v1223
    %1870 = vmatprep.subr.mxu0 0.0
    %1871 = vmatpush1.msra.mxu0 %v1224
    %1872 = vmatprep.subr.mxu0 0.0
    %1873 = vmatpush1.msra.mxu0 %v1225
    %1874 = vmatprep.subr.mxu0 0.0
    %1875 = vmatpush1.msra.mxu0 0.0
    %1876 = vmatprep.subr.mxu0 0.0
    %1877 = vmatpush1.msra.mxu0 0.0
    %1878 = vmatprep.subr.mxu0 0.0
    %1879 = vmatpush1.msra.mxu0 0.0
    %1880 = vmatprep.subr.mxu0 0.0
    %1881 = vmatpush1.msra.mxu0 0.0
    %1882 = vmatprep.subr.mxu0 0.0
    %1883 = vmatpush1.msra.mxu0 0.0
    %1884 = vmatprep.subr.mxu0 0.0
    %1885 = vmatpush1.msra.mxu0 0.0
    %1886 = vmatprep.subr.mxu0 0.0
    %1887 = vmatpush1.msra.mxu0 0.0
    %1888 = vmatprep.subr.mxu0 0.0
    %1889 = vmatpush1.msra.mxu0 0.0
    %1890 = vmatprep.subr.mxu0 0.0
    %1891 = vmatpush1.msra.mxu0 0.0
    %1892 = vmatprep.subr.mxu0 0.0
    %1893 = vmatpush1.msra.mxu0 0.0
    %1894 = vmatprep.subr.mxu0 0.0
    %1895 = vmatpush1.msra.mxu0 0.0
    %1896 = vmatprep.subr.mxu0 0.0
    %1897 = vmatpush1.msra.mxu0 0.0
    %1898 = vmatprep.subr.mxu0 0.0
    %1899 = vmatpush1.msra.mxu0 0.0
    %1900 = vmatprep.subr.mxu0 0.0
    %1901 = vmatpush1.msra.mxu0 0.0
    %1902 = vmatprep.subr.mxu0 0.0
    %1903 = vmatpush1.msra.mxu0 0.0
    %1904 = vmatprep.subr.mxu0 0.0
    %1905 = vmatpush1.msra.mxu0 0.0
    %1906 = vmatprep.subr.mxu0 0.0
    %1907 = vmatpush1.msra.mxu0 0.0
    %1908 = vmatprep.subr.mxu0 0.0
    %1909 = vmatpush1.msra.mxu0 0.0
    %1910 = vmatprep.subr.mxu0 0.0
    %1911 = vmatpush1.msra.mxu0 0.0
    %1912 = vmatprep.subr.mxu0 0.0
    %1913 = vmatpush1.msra.mxu0 0.0
    %1914 = vmatprep.subr.mxu0 0.0
    %1915 = vmatpush1.msra.mxu0 0.0
    %1916 = vmatprep.subr.mxu0 0.0
    %1917 = vmatpush1.msra.mxu0 0.0
    %1918 = vmatprep.subr.mxu0 0.0
    %1919 = vmatpush1.msra.mxu0 0.0
    %1920 = vmatprep.subr.mxu0 0.0
    %1921 = vmatpush1.msra.mxu0 0.0
    %1922 = vmatprep.subr.mxu0 0.0
    %1923 = vmatpush1.msra.mxu0 0.0
    %1924 = vmatprep.subr.mxu0 0.0
    %1925 = vmatpush1.msra.mxu0 0.0
    %1926 = vmatprep.subr.mxu0 0.0
    %1927 = vmatpush1.msra.mxu0 0.0
    %1928 = vmatprep.subr.mxu0 0.0
    %1929 = vmatpush1.msra.mxu0 0.0
    %1930 = vmatprep.mubr.f32.mxu0 0.0
    %1931 = vmatmul.mubr.f32.gmra.mrb[0].mxu0 %v1864
    %v1932 = vpop.f32.mrb[0].mxu0
    %v1933 = vadd.f32 %v1234, %v1932
    %v1934 = vpop.f32.mrb[0].mxu0
    %1935 = vdwg.mxu0
    %v1936 = vadd.f32 %v1863, %v1933
    %v1937 = vxor.u32 %v1936, 2147483648
    %v1938 = vmul.f32 %v1937, 1.442695
    %v1939 = vpow.pop %v1938
    %v1940 = vadd.f32 %v1939, 1.0
    %v1941 = vrcp.pop %v1940
    %v1942 = vmul.f32 1.0, %v1941
    %1944 = vrot.lane.b32.xlu0 %v1933, 64
    %v1945 = vpop.permute.xlu0 %1944
    %v1947 = vmul.f32 %v1942, %v1945
    %1949 = vrot.lane.b32.xlu0 %v1947, 64
    %v1950 = vpop.permute.xlu0 %1949
    %v1952 = vadd.f32 %v1863, %v1950
    %v1953 = vtanh.pop %v1952
    %v1954 = vsub.f32 1.0, %v1942
    %1956 = vrot.lane.b32.xlu0 %v1953, 96
    %v1957 = vpop.permute.xlu0 %1956
    %v1959 = vmul.f32 %v1954, %v1957
    %v1960 = vmul.f32 %v1942, %v1857
    %v1961 = vadd.f32 %v1959, %v1960
    %1963 = vrot.lane.b32.xlu0 %v1961, 96
    %v1964 = vpop.permute.xlu0 %1963
    %1966 = vst.msk [vmem:[%s957] sm:$0xff] %vm215, %v1964
    %v1967 = vld [vmem:[%s959] sm:$0xff]
    %v1968 = vsel %vm215, %v1964, 0
    %1970 = vmatprep.subr.mxu0 0.0
    %1971 = vmatpush1.msra.mxu0 %v1222
    %1972 = vmatprep.subr.mxu0 0.0
    %1973 = vmatpush1.msra.mxu0 %v1223
    %1974 = vmatprep.subr.mxu0 0.0
    %1975 = vmatpush1.msra.mxu0 %v1224
    %1976 = vmatprep.subr.mxu0 0.0
    %1977 = vmatpush1.msra.mxu0 %v1225
    %1978 = vmatprep.subr.mxu0 0.0
    %1979 = vmatpush1.msra.mxu0 0.0
    %1980 = vmatprep.subr.mxu0 0.0
    %1981 = vmatpush1.msra.mxu0 0.0
    %1982 = vmatprep.subr.mxu0 0.0
    %1983 = vmatpush1.msra.mxu0 0.0
    %1984 = vmatprep.subr.mxu0 0.0
    %1985 = vmatpush1.msra.mxu0 0.0
    %1986 = vmatprep.subr.mxu0 0.0
    %1987 = vmatpush1.msra.mxu0 0.0
    %1988 = vmatprep.subr.mxu0 0.0
    %1989 = vmatpush1.msra.mxu0 0.0
    %1990 = vmatprep.subr.mxu0 0.0
    %1991 = vmatpush1.msra.mxu0 0.0
    %1992 = vmatprep.subr.mxu0 0.0
    %1993 = vmatpush1.msra.mxu0 0.0
    %1994 = vmatprep.subr.mxu0 0.0
    %1995 = vmatpush1.msra.mxu0 0.0
    %1996 = vmatprep.subr.mxu0 0.0
    %1997 = vmatpush1.msra.mxu0 0.0
    %1998 = vmatprep.subr.mxu0 0.0
    %1999 = vmatpush1.msra.mxu0 0.0
    %2000 = vmatprep.subr.mxu0 0.0
    %2001 = vmatpush1.msra.mxu0 0.0
    %2002 = vmatprep.subr.mxu0 0.0
    %2003 = vmatpush1.msra.mxu0 0.0
    %2004 = vmatprep.subr.mxu0 0.0
    %2005 = vmatpush1.msra.mxu0 0.0
    %2006 = vmatprep.subr.mxu0 0.0
    %2007 = vmatpush1.msra.mxu0 0.0
    %2008 = vmatprep.subr.mxu0 0.0
    %2009 = vmatpush1.msra.mxu0 0.0
    %2010 = vmatprep.subr.mxu0 0.0
    %2011 = vmatpush1.msra.mxu0 0.0
    %2012 = vmatprep.subr.mxu0 0.0
    %2013 = vmatpush1.msra.mxu0 0.0
    %2014 = vmatprep.subr.mxu0 0.0
    %2015 = vmatpush1.msra.mxu0 0.0
    %2016 = vmatprep.subr.mxu0 0.0
    %2017 = vmatpush1.msra.mxu0 0.0
    %2018 = vmatprep.subr.mxu0 0.0
    %2019 = vmatpush1.msra.mxu0 0.0
    %2020 = vmatprep.subr.mxu0 0.0
    %2021 = vmatpush1.msra.mxu0 0.0
    %2022 = vmatprep.subr.mxu0 0.0
    %2023 = vmatpush1.msra.mxu0 0.0
    %2024 = vmatprep.subr.mxu0 0.0
    %2025 = vmatpush1.msra.mxu0 0.0
    %2026 = vmatprep.subr.mxu0 0.0
    %2027 = vmatpush1.msra.mxu0 0.0
    %2028 = vmatprep.subr.mxu0 0.0
    %2029 = vmatpush1.msra.mxu0 0.0
    %2030 = vmatprep.subr.mxu0 0.0
    %2031 = vmatpush1.msra.mxu0 0.0
    %2032 = vmatprep.subr.mxu0 0.0
    %2033 = vmatpush1.msra.mxu0 0.0
    %2034 = vmatprep.mubr.f32.mxu0 0.0
    %2035 = vmatmul.mubr.f32.gmra.mrb[0].mxu0 %v1968
    %v2036 = vpop.f32.mrb[0].mxu0
    %v2037 = vadd.f32 %v1234, %v2036
    %v2038 = vpop.f32.mrb[0].mxu0
    %2039 = vdwg.mxu0
    %v2040 = vadd.f32 %v1967, %v2037
    %v2041 = vxor.u32 %v2040, 2147483648
    %v2042 = vmul.f32 %v2041, 1.442695
    %v2043 = vpow.pop %v2042
    %v2044 = vadd.f32 %v2043, 1.0
    %v2045 = vrcp.pop %v2044
    %v2046 = vmul.f32 1.0, %v2045
    %2048 = vrot.lane.b32.xlu0 %v2037, 64
    %v2049 = vpop.permute.xlu0 %2048
    %v2051 = vmul.f32 %v2046, %v2049
    %2053 = vrot.lane.b32.xlu0 %v2051, 64
    %v2054 = vpop.permute.xlu0 %2053
    %v2056 = vadd.f32 %v1967, %v2054
    %v2057 = vtanh.pop %v2056
    %v2058 = vsub.f32 1.0, %v2046
    %2060 = vrot.lane.b32.xlu0 %v2057, 96
    %v2061 = vpop.permute.xlu0 %2060
    %v2063 = vmul.f32 %v2058, %v2061
    %v2064 = vmul.f32 %v2046, %v1961
    %v2065 = vadd.f32 %v2063, %v2064
    %2067 = vrot.lane.b32.xlu0 %v2065, 96
    %v2068 = vpop.permute.xlu0 %2067
    %2070 = vst.msk [vmem:[%s1063] sm:$0xff] %vm215, %v2068
    %s2071 = scalar_lea.vmem [#allocation4], 8
    %2072 = vst.msk [vmem:[%s2071] sm:$0xff] %vm215, %v2068
    %v2073 = vld [vmem:[#allocation3] sm:$0xff]
    %v2074 = vld [vmem:[#allocation3 + $0x8] sm:$0xff]
    %v2075 = vld [vmem:[#allocation3 + $0x10] sm:$0xff]
    %v2076 = vld [vmem:[#allocation3 + $0x18] sm:$0xff]
    %v2077 = vld [vmem:[#allocation3 + $0x20] sm:$0xff]
    %v2078 = vld [vmem:[#allocation3 + $0x28] sm:$0xff]
    %v2079 = vld [vmem:[#allocation3 + $0x30] sm:$0xff]
    %v2080 = vld [vmem:[#allocation3 + $0x38] sm:$0xff]
    %v2081 = vld [vmem:[%s10] sm:$0xff]
    %v2082 = vld [vmem:[%s10 + $0x8] sm:$0xff]
    %v2083 = vld [vmem:[%s10 + $0x10] sm:$0xff]
    %v2084 = vld [vmem:[%s10 + $0x18] sm:$0xff]
    %v2085 = vld [vmem:[%s11] sm:$0x1]
    %v2087 = vlaneseq
    %v2088 = vshrl.u32 %v2087, 7
    %v2089 = vsub.s32 0, %v2088
    %v2090 = vrot.slane %v2085, %v2089
    %v2093 = vsel %vm215, %v2073, 0
    %v2096 = vsel %vm215, %v2074, 0
    %v2099 = vsel %vm215, %v2075, 0
    %v2102 = vsel %vm215, %v2076, 0
    %v2105 = vsel %vm215, %v2077, 0
    %v2108 = vsel %vm215, %v2078, 0
    %v2111 = vsel %vm215, %v2079, 0
    %v2114 = vsel %vm215, %v2080, 0
    %2116 = vmatprep.subr.mxu0 0.0
    %2117 = vmatpush1.msra.mxu0 %v2081
    %2118 = vmatprep.subr.mxu0 0.0
    %2119 = vmatpush1.msra.mxu0 %v2082
    %2120 = vmatprep.subr.mxu0 0.0
    %2121 = vmatpush1.msra.mxu0 %v2083
    %2122 = vmatprep.subr.mxu0 0.0
    %2123 = vmatpush1.msra.mxu0 %v2084
    %2124 = vmatprep.subr.mxu0 0.0
    %2125 = vmatpush1.msra.mxu0 0.0
    %2126 = vmatprep.subr.mxu0 0.0
    %2127 = vmatpush1.msra.mxu0 0.0
    %2128 = vmatprep.subr.mxu0 0.0
    %2129 = vmatpush1.msra.mxu0 0.0
    %2130 = vmatprep.subr.mxu0 0.0
    %2131 = vmatpush1.msra.mxu0 0.0
    %2132 = vmatprep.subr.mxu0 0.0
    %2133 = vmatpush1.msra.mxu0 0.0
    %2134 = vmatprep.subr.mxu0 0.0
    %2135 = vmatpush1.msra.mxu0 0.0
    %2136 = vmatprep.subr.mxu0 0.0
    %2137 = vmatpush1.msra.mxu0 0.0
    %2138 = vmatprep.subr.mxu0 0.0
    %2139 = vmatpush1.msra.mxu0 0.0
    %2140 = vmatprep.subr.mxu0 0.0
    %2141 = vmatpush1.msra.mxu0 0.0
    %2142 = vmatprep.subr.mxu0 0.0
    %2143 = vmatpush1.msra.mxu0 0.0
    %2144 = vmatprep.subr.mxu0 0.0
    %2145 = vmatpush1.msra.mxu0 0.0
    %2146 = vmatprep.subr.mxu0 0.0
    %2147 = vmatpush1.msra.mxu0 0.0
    %2148 = vmatprep.subr.mxu0 0.0
    %2149 = vmatpush1.msra.mxu0 0.0
    %2150 = vmatprep.subr.mxu0 0.0
    %2151 = vmatpush1.msra.mxu0 0.0
    %2152 = vmatprep.subr.mxu0 0.0
    %2153 = vmatpush1.msra.mxu0 0.0
    %2154 = vmatprep.subr.mxu0 0.0
    %2155 = vmatpush1.msra.mxu0 0.0
    %2156 = vmatprep.subr.mxu0 0.0
    %2157 = vmatpush1.msra.mxu0 0.0
    %2158 = vmatprep.subr.mxu0 0.0
    %2159 = vmatpush1.msra.mxu0 0.0
    %2160 = vmatprep.subr.mxu0 0.0
    %2161 = vmatpush1.msra.mxu0 0.0
    %2162 = vmatprep.subr.mxu0 0.0
    %2163 = vmatpush1.msra.mxu0 0.0
    %2164 = vmatprep.subr.mxu0 0.0
    %2165 = vmatpush1.msra.mxu0 0.0
    %2166 = vmatprep.subr.mxu0 0.0
    %2167 = vmatpush1.msra.mxu0 0.0
    %2168 = vmatprep.subr.mxu0 0.0
    %2169 = vmatpush1.msra.mxu0 0.0
    %2170 = vmatprep.subr.mxu0 0.0
    %2171 = vmatpush1.msra.mxu0 0.0
    %2172 = vmatprep.subr.mxu0 0.0
    %2173 = vmatpush1.msra.mxu0 0.0
    %2174 = vmatprep.subr.mxu0 0.0
    %2175 = vmatpush1.msra.mxu0 0.0
    %2176 = vmatprep.subr.mxu0 0.0
    %2177 = vmatpush1.msra.mxu0 0.0
    %2178 = vmatprep.subr.mxu0 0.0
    %2179 = vmatpush1.msra.mxu0 0.0
    %2180 = vmatprep.mubr.f32.mxu0 0.0
    %2181 = vmatmul.mubr.f32.gmra.mrb[0].mxu0 %v2093
    %v2182 = vpop.f32.mrb[0].mxu0
    %v2183 = vadd.f32 %v2090, %v2182
    %v2184 = vpop.f32.mrb[0].mxu0
    %2185 = vmatprep.mubr.f32.mxu0 0.0
    %2186 = vmatmul.mubr.f32.gmra.mrb[0].mxu0 %v2096
    %v2187 = vpop.f32.mrb[0].mxu0
    %v2188 = vadd.f32 %v2090, %v2187
    %v2189 = vpop.f32.mrb[0].mxu0
    %2190 = vmatprep.mubr.f32.mxu0 0.0
    %2191 = vmatmul.mubr.f32.gmra.mrb[0].mxu0 %v2099
    %v2192 = vpop.f32.mrb[0].mxu0
    %v2193 = vadd.f32 %v2090, %v2192
    %v2194 = vpop.f32.mrb[0].mxu0
    %2195 = vmatprep.mubr.f32.mxu0 0.0
    %2196 = vmatmul.mubr.f32.gmra.mrb[0].mxu0 %v2102
    %v2197 = vpop.f32.mrb[0].mxu0
    %v2198 = vadd.f32 %v2090, %v2197
    %v2199 = vpop.f32.mrb[0].mxu0
    %2200 = vmatprep.mubr.f32.mxu0 0.0
    %2201 = vmatmul.mubr.f32.gmra.mrb[0].mxu0 %v2105
    %v2202 = vpop.f32.mrb[0].mxu0
    %v2203 = vadd.f32 %v2090, %v2202
    %v2204 = vpop.f32.mrb[0].mxu0
    %2205 = vmatprep.mubr.f32.mxu0 0.0
    %2206 = vmatmul.mubr.f32.gmra.mrb[0].mxu0 %v2108
    %v2207 = vpop.f32.mrb[0].mxu0
    %v2208 = vadd.f32 %v2090, %v2207
    %v2209 = vpop.f32.mrb[0].mxu0
    %2210 = vmatprep.mubr.f32.mxu0 0.0
    %2211 = vmatmul.mubr.f32.gmra.mrb[0].mxu0 %v2111
    %v2212 = vpop.f32.mrb[0].mxu0
    %v2213 = vadd.f32 %v2090, %v2212
    %v2214 = vpop.f32.mrb[0].mxu0
    %2215 = vmatprep.mubr.f32.mxu0 0.0
    %2216 = vmatmul.mubr.f32.gmra.mrb[0].mxu0 %v2114
    %v2217 = vpop.f32.mrb[0].mxu0
    %v2218 = vadd.f32 %v2090, %v2217
    %v2219 = vpop.f32.mrb[0].mxu0
    %2220 = vdwg.mxu0
    %2221 = vmax.xlane.f32.xlu0 %v2183
    %v2222 = vpop.xlane.xlu0 %2221
    %2223 = vmax.xlane.f32.xlu0 %v2188
    %v2224 = vpop.xlane.xlu0 %2223
    %2225 = vmax.xlane.f32.xlu0 %v2193
    %v2226 = vpop.xlane.xlu0 %2225
    %2227 = vmax.xlane.f32.xlu0 %v2198
    %v2228 = vpop.xlane.xlu0 %2227
    %2229 = vmax.xlane.f32.xlu0 %v2203
    %v2230 = vpop.xlane.xlu0 %2229
    %2231 = vmax.xlane.f32.xlu0 %v2208
    %v2232 = vpop.xlane.xlu0 %2231
    %2233 = vmax.xlane.f32.xlu0 %v2213
    %v2234 = vpop.xlane.xlu0 %2233
    %2235 = vmax.xlane.f32.xlu0 %v2218
    %v2236 = vpop.xlane.xlu0 %2235
    %v2237 = vsub.f32 %v2183, %v2222
    %v2238 = vsub.f32 %v2188, %v2224
    %v2239 = vsub.f32 %v2193, %v2226
    %v2240 = vsub.f32 %v2198, %v2228
    %v2241 = vsub.f32 %v2203, %v2230
    %v2242 = vsub.f32 %v2208, %v2232
    %v2243 = vsub.f32 %v2213, %v2234
    %v2244 = vsub.f32 %v2218, %v2236
    %v2245 = vmul.f32 %v2237, 1.442695
    %v2246 = vpow.pop %v2245
    %v2247 = vmul.f32 %v2238, 1.442695
    %v2248 = vpow.pop %v2247
    %v2249 = vmul.f32 %v2239, 1.442695
    %v2250 = vpow.pop %v2249
    %v2251 = vmul.f32 %v2240, 1.442695
    %v2252 = vpow.pop %v2251
    %v2253 = vmul.f32 %v2241, 1.442695
    %v2254 = vpow.pop %v2253
    %v2255 = vmul.f32 %v2242, 1.442695
    %v2256 = vpow.pop %v2255
    %v2257 = vmul.f32 %v2243, 1.442695
    %v2258 = vpow.pop %v2257
    %v2259 = vmul.f32 %v2244, 1.442695
    %v2260 = vpow.pop %v2259
    %2261 = vadd.xlane.f32.xlu0 %v2246
    %v2262 = vpop.xlane.xlu0 %2261
    %2263 = vadd.xlane.f32.xlu0 %v2248
    %v2264 = vpop.xlane.xlu0 %2263
    %2265 = vadd.xlane.f32.xlu0 %v2250
    %v2266 = vpop.xlane.xlu0 %2265
    %2267 = vadd.xlane.f32.xlu0 %v2252
    %v2268 = vpop.xlane.xlu0 %2267
    %2269 = vadd.xlane.f32.xlu0 %v2254
    %v2270 = vpop.xlane.xlu0 %2269
    %2271 = vadd.xlane.f32.xlu0 %v2256
    %v2272 = vpop.xlane.xlu0 %2271
    %2273 = vadd.xlane.f32.xlu0 %v2258
    %v2274 = vpop.xlane.xlu0 %2273
    %2275 = vadd.xlane.f32.xlu0 %v2260
    %v2276 = vpop.xlane.xlu0 %2275
    %v2277 = vrcp.pop %v2262
    %v2278 = vmul.f32 %v2246, %v2277
    %v2279 = vrcp.pop %v2264
    %v2280 = vmul.f32 %v2248, %v2279
    %v2281 = vrcp.pop %v2266
    %v2282 = vmul.f32 %v2250, %v2281
    %v2283 = vrcp.pop %v2268
    %v2284 = vmul.f32 %v2252, %v2283
    %v2285 = vrcp.pop %v2270
    %v2286 = vmul.f32 %v2254, %v2285
    %v2287 = vrcp.pop %v2272
    %v2288 = vmul.f32 %v2256, %v2287
    %v2289 = vrcp.pop %v2274
    %v2290 = vmul.f32 %v2258, %v2289
    %v2291 = vrcp.pop %v2276
    %v2292 = vmul.f32 %v2260, %v2291
    %2293 = vst [vmem:[%s12] sm:$0xff] %v2278
    %2294 = vst [vmem:[%s12 + $0x8] sm:$0xff] %v2280
    %2295 = vst [vmem:[%s12 + $0x10] sm:$0xff] %v2282
    %2296 = vst [vmem:[%s12 + $0x18] sm:$0xff] %v2284
    %2297 = vst [vmem:[%s12 + $0x20] sm:$0xff] %v2286
    %2298 = vst [vmem:[%s12 + $0x28] sm:$0xff] %v2288
    %2299 = vst [vmem:[%s12 + $0x30] sm:$0xff] %v2290
    %2300 = vst [vmem:[%s12 + $0x38] sm:$0xff] %v2292
    // Predicated region
    $region50: #{gru_network_forward.1} parent=1 // pred_check
      _
    $region51: #{gru_network_forward.1} parent=1 // pred_check_branch
      %2302 = sbr.rel (0) target = $region53
    $region52: #{gru_network_forward.1} parent=1 // pred_region
      _
    $region53: #{gru_network_forward.1} parent=1 // pred_fallthru
      _
    // Predicated region
    $region54: #{gru_network_forward.1} parent=1 // pred_check
      _
    $region55: #{gru_network_forward.1} parent=1 // pred_check_branch
      %2304 = sbr.rel (0) target = $region57
    $region56: #{gru_network_forward.1} parent=1 // pred_region
      %s2306 = ssub.s32 256, 256
      %2307 = vsyncadd [#allocation5], %s2306
      %s2308 = sshll.u32 [#allocation4], 4
      %s2309 = int_to_ptr.vmem [resolvable:$true] %s2308
      %2314 = dma.vmem_to_hbm [thread:$0]  %s2309, 256, %s13, [#allocation5], 128, 128, 8
    $region57: #{gru_network_forward.1} parent=1 // pred_fallthru
      _
    // Predicated region
    $region58: #{gru_network_forward.1} parent=1 // pred_check
      _
    $region59: #{gru_network_forward.1} parent=1 // pred_check_branch
      %2316 = sbr.rel (0) target = $region61
    $region60: #{gru_network_forward.1} parent=1 // pred_region
      _
    $region61: #{gru_network_forward.1} parent=1 // pred_fallthru
      _
    // Predicated region
    $region62: #{gru_network_forward.1} parent=1 // pred_check
      _
    $region63: #{gru_network_forward.1} parent=1 // pred_check_branch
      %2318 = sbr.rel (0) target = $region65
    $region64: #{gru_network_forward.1} parent=1 // pred_region
      %2319 = dma.done [#allocation5], 256
    $region65: #{gru_network_forward.1} parent=1 // pred_fallthru
      _
    %2320 = vsyncpa [#allocation5], 1

</llo_original>
